<compile_context>
chip_gen: v6e
topology: v6e:2x2x1
jax: 0.10.0
libtpu: 0.0.40
codegen_flags: <defaults>
</compile_context>

<pallas_src>
import math
import functools
import numpy as np

import jax
import jax.numpy as jnp
from jax import lax
from jax.experimental import pallas as pl
from jax.experimental.pallas import tpu as pltpu


CONFIG = dict(
    vocab_size=64,
    hidden_size=32,
    num_attention_heads=4,
    num_hidden_layers=2,
    intermediate_size=64,
    max_position_embeddings=16,
    rms_norm_eps=1e-6,
    rotary_pct=0.5,
    rotary_base=10000,
)

CPAD = 128   # lane-aligned width of each projection block in the fused QKV slab


# ---------------------------------------------------------------------------
# fused Pallas kernel: all layers + final norm + head, one sequence / program
# ---------------------------------------------------------------------------
def qwen_fused_kernel(
    x_ref,        # (T, D)       embeddings for this sequence
    n1_ref,       # (L, 1, D)    RMSNorm-1 scales
    wqkv_ref,     # (L, D, 5*CPAD)  [Wq*s | Wk | Wv | Wq@P*s | Wk@P], 128-aligned
    bqkv_ref,     # (L, 1, 5*CPAD)
    wo_ref,       # (L, D, D)
    bo_ref,       # (L, 1, D)
    n2_ref,       # (L, 1, D)
    w1_ref,       # (L, D, F)
    b1_ref,       # (L, 1, F)
    w2_ref,       # (L, F, D)
    b2_ref,       # (L, 1, D)
    nf_ref,       # (1, D)       final norm scale
    wh_ref,       # (D, VPAD)    head weight, zero-padded to 128 lanes
    cos_ref,      # (T, D)       RoPE cos
    sin_ref,      # (T, D)       RoPE sin
    bias_ref,     # (T, H*T)     causal additive bias tiled over heads (0/-1e30)
    hm_ref,       # (H, 1, D)    per-head channel 0/1 masks
    s2c_ref,      # (H*T, D)     segment->channel ones map (softmax denominators)
    out_ref,      # (T, VPAD)
    *, num_layers, num_heads, head_dim, eps,
):
    D = num_heads * head_dim

    def rmsnorm(v, scale):
        # matches torch: v * (scale / (||v||_2 + eps)); divide routed to EUP
        nrm = jnp.sqrt(jnp.sum(v * v, axis=-1, keepdims=True))
        return v * (scale * pl.reciprocal(nrm + eps, approx=True))

    x = x_ref[...]                          # (T, D)
    cos = cos_ref[...]
    sin = sin_ref[...]
    bias = bias_ref[...]                    # (T, H*T)
    s2c = s2c_ref[...]                      # (H*T, D)

    for l in range(num_layers):
        # ---- attention branch ----
        xn = rmsnorm(x, n1_ref[l])
        proj = jnp.dot(xn, wqkv_ref[l],
                       preferred_element_type=jnp.float32) + bqkv_ref[l]
        # RoPE: q_rot = q*cos + (q@P)*sin; 1/sqrt(hd) already folded into q cols.
        # All slices start at 128-lane boundaries (no relayout).
        q = proj[:, 0 * CPAD:0 * CPAD + D] * cos + proj[:, 3 * CPAD:3 * CPAD + D] * sin
        k = proj[:, 1 * CPAD:1 * CPAD + D] * cos + proj[:, 4 * CPAD:4 * CPAD + D] * sin
        v = proj[:, 2 * CPAD:2 * CPAD + D]

        # concatenated-head attention: stack per-head masked K/V along sublanes
        kcat = jnp.concatenate([k * hm_ref[h] for h in range(num_heads)], axis=0)
        vcat = jnp.concatenate([v * hm_ref[h] for h in range(num_heads)], axis=0)

        s = lax.dot_general(q, kcat, (((1,), (1,)), ((), ())),
                            preferred_element_type=jnp.float32) + bias   # (T, H*T)
        # global row max is a valid shift for every head segment of the row
        m = jnp.max(s, axis=-1, keepdims=True)
        e = jnp.exp(s - m)
        denom = jnp.dot(e, s2c, preferred_element_type=jnp.float32)      # (T, D)
        ctx = jnp.dot(e, vcat, preferred_element_type=jnp.float32)       # (T, D)
        ctx = ctx * pl.reciprocal(denom, approx=True)

        x = x + jnp.dot(ctx, wo_ref[l],
                        preferred_element_type=jnp.float32) + bo_ref[l]

        # ---- feed-forward branch ----
        xn2 = rmsnorm(x, n2_ref[l])
        hid = jnp.dot(xn2, w1_ref[l],
                      preferred_element_type=jnp.float32) + b1_ref[l]
        hid = hid * jax.nn.sigmoid(hid)     # SiLU
        x = x + jnp.dot(hid, w2_ref[l],
                        preferred_element_type=jnp.float32) + b2_ref[l]

    # ---- final norm + lane-dense (padded) head projection ----
    xf = rmsnorm(x, nf_ref[...])
    out_ref[...] = jnp.dot(xf, wh_ref[...], preferred_element_type=jnp.float32)


# ---------------------------------------------------------------------------
# host-side parameter packing (done once) + forward wrapper
# ---------------------------------------------------------------------------
def prepare_fused(params, cfg, T, cos_t, sin_t, pmat):
    D = cfg["hidden_size"]
    V = cfg["vocab_size"]
    H = cfg["num_attention_heads"]
    hd = D // H
    VPAD = max(128, ((V + 127) // 128) * 128)
    inv_scale = 1.0 / math.sqrt(hd)

    layers = params["layers"]

    def pack_qkv(ly):
        blocks_w = [ly["wq"] * inv_scale, ly["wk"], ly["wv"],
                    (ly["wq"] @ pmat) * inv_scale, ly["wk"] @ pmat]
        blocks_b = [ly["bq"] * inv_scale, ly["bk"], ly["bv"],
                    (ly["bq"] @ pmat) * inv_scale, ly["bk"] @ pmat]
        w = jnp.zeros((D, 5 * CPAD), jnp.float32)
        b = jnp.zeros((1, 5 * CPAD), jnp.float32)
        for i in range(5):
            w = w.at[:, i * CPAD:i * CPAD + D].set(blocks_w[i])
            b = b.at[:, i * CPAD:i * CPAD + D].set(blocks_b[i])
        return w, b

    packed = [pack_qkv(ly) for ly in layers]
    wqkv = jnp.stack([p[0] for p in packed])                    # (L, D, 5*CPAD)
    bqkv = jnp.stack([p[1] for p in packed])                    # (L, 1, 5*CPAD)
    stk = lambda key: jnp.stack([ly[key] for ly in layers])

    wh_pad = jnp.zeros((D, VPAD), jnp.float32).at[:, :V].set(params["w_head"])

    # per-sequence causal additive bias, tiled over the head segments (lanes)
    r = np.arange(T)[:, None]
    c = np.arange(T)[None, :]
    causal = np.where(c <= r, 0.0, -1e30).astype(np.float32)    # (T, T)
    attn_bias = jnp.asarray(np.tile(causal, (1, H)))            # (T, H*T)

    hm = np.zeros((H, 1, D), np.float32)
    for h in range(H):
        hm[h, 0, h * hd:(h + 1) * hd] = 1.0

    s2c = np.zeros((H * T, D), np.float32)
    for h in range(H):
        s2c[h * T:(h + 1) * T, h * hd:(h + 1) * hd] = 1.0

    return dict(
        n1=stk("n1"), wqkv=wqkv, bqkv=bqkv, wo=stk("wo"), bo=stk("bo"),
        n2=stk("n2"), w1=stk("w1"), b1=stk("b1"), w2=stk("w2"), b2=stk("b2"),
        nf=params["final_norm"], wh=wh_pad,
        cos=cos_t, sin=sin_t, attn_bias=attn_bias,
        head_mask=jnp.asarray(hm), seg2chan=jnp.asarray(s2c), vpad=VPAD)


def qwen_forward(params, fused, input_ids, cfg):
    B, T = input_ids.shape
    D = cfg["hidden_size"]
    V = cfg["vocab_size"]
    H = cfg["num_attention_heads"]
    hd = D // H
    L = cfg["num_hidden_layers"]
    eps = cfg["rms_norm_eps"]
    VPAD = fused["vpad"]

    # TODO(synk): embedding gathers stay in plain JAX glue — a dynamic row
    # gather at these tiny sizes has no benefit as a Pallas kernel.
    tok = params["token_emb"][input_ids]                        # (B, T, D)
    pos = params["pos_emb"][jnp.arange(T)][None, :, :]          # (1, T, D)
    x = (tok + pos).astype(jnp.float32).reshape(B * T, D)

    kernel = functools.partial(qwen_fused_kernel, num_layers=L,
                               num_heads=H, head_dim=hd, eps=eps)

    def whole(a):
        zeros = (0,) * a.ndim
        return pl.BlockSpec(a.shape, lambda b: zeros)

    operands = [x, fused["n1"], fused["wqkv"], fused["bqkv"], fused["wo"],
                fused["bo"], fused["n2"], fused["w1"], fused["b1"],
                fused["w2"], fused["b2"], fused["nf"], fused["wh"],
                fused["cos"], fused["sin"], fused["attn_bias"],
                fused["head_mask"], fused["seg2chan"]]

    in_specs = [pl.BlockSpec((T, D), lambda b: (b, 0))] + \
               [whole(a) for a in operands[1:]]

    out = pl.pallas_call(
        kernel,
        grid=(B,),
        in_specs=in_specs,
        out_specs=pl.BlockSpec((T, VPAD), lambda b: (b, 0)),
        out_shape=jax.ShapeDtypeStruct((B * T, VPAD), jnp.float32),
        compiler_params=pltpu.CompilerParams(
            dimension_semantics=("parallel",)),
    )(*operands)
    return out[:, :V].reshape(B, T, V)


# ---------------------------------------------------------------------------
# deterministic parameter init + RoPE tables
# ---------------------------------------------------------------------------
def init_params(cfg, key):
    D = cfg["hidden_size"]
    V = cfg["vocab_size"]
    F = cfg["intermediate_size"]
    keys = iter(jax.random.split(key, 64))

    def lin(fan_in, fan_out):
        bound = 1.0 / math.sqrt(fan_in)
        W = jax.random.uniform(next(keys), (fan_in, fan_out), jnp.float32,
                               -bound, bound)
        b = jax.random.uniform(next(keys), (1, fan_out), jnp.float32,
                               -bound, bound)
        return W, b

    params = {
        "token_emb": jax.random.normal(next(keys), (V, D), jnp.float32) * 0.05,
        "pos_emb": jax.random.normal(
            next(keys), (cfg["max_position_embeddings"], D), jnp.float32) * 0.05,
        "final_norm": jnp.ones((1, D), jnp.float32),
        "layers": [],
    }
    w_head, _ = lin(D, V)          # head has no bias
    params["w_head"] = w_head

    for _ in range(cfg["num_hidden_layers"]):
        wq, bq = lin(D, D)
        wk, bk = lin(D, D)
        wv, bv = lin(D, D)
        wo, bo = lin(D, D)
        w1, b1 = lin(D, F)
        w2, b2 = lin(F, D)
        params["layers"].append(dict(
            n1=jnp.ones((1, D), jnp.float32), n2=jnp.ones((1, D), jnp.float32),
            wq=wq, bq=bq, wk=wk, bk=bk, wv=wv, bv=bv, wo=wo, bo=bo,
            w1=w1, b1=b1, w2=w2, b2=b2))
    return params


def make_rope_tables(T, num_heads, head_dim, rope_dim, base):
    D = num_heads * head_dim
    half = rope_dim // 2
    inv_freq = 1.0 / (base ** (np.arange(0, rope_dim, 2, dtype=np.float32)
                               / float(rope_dim)))
    t = np.arange(T, dtype=np.float32)
    freqs = np.outer(t, inv_freq)                       # (T, half)

    cos_h = np.ones((T, head_dim), np.float32)
    sin_h = np.zeros((T, head_dim), np.float32)
    cos_h[:, 0:rope_dim:2] = np.cos(freqs)
    cos_h[:, 1:rope_dim:2] = np.cos(freqs)
    sin_h[:, 0:rope_dim:2] = np.sin(freqs)
    sin_h[:, 1:rope_dim:2] = np.sin(freqs)
    cos = np.tile(cos_h, (1, num_heads))                # (T, D)
    sin = np.tile(sin_h, (1, num_heads))                # (T, D)

    # signed pair-swap matrix (folded into the weights host-side)
    P_h = np.zeros((head_dim, head_dim), np.float32)
    for j in range(half):
        P_h[2 * j + 1, 2 * j] = -1.0                    # even out gets -x_odd
        P_h[2 * j, 2 * j + 1] = 1.0                     # odd  out gets +x_even
    P = np.zeros((D, D), np.float32)
    for h in range(num_heads):
        P[h * head_dim:(h + 1) * head_dim,
          h * head_dim:(h + 1) * head_dim] = P_h

    return (jnp.asarray(cos), jnp.asarray(sin), jnp.asarray(P),
            jnp.asarray(inv_freq))


# ---------------------------------------------------------------------------
# pure-JAX reference (faithful to the PyTorch forward) for validation
# ---------------------------------------------------------------------------
def _rmsnorm_ref(x, scale, eps):
    nrm = jnp.sqrt(jnp.sum(x * x, axis=-1, keepdims=True))
    return x * (scale / (nrm + eps))


def _rotary_ref(x, inv_freq):
    T = x.shape[-2]
    t = jnp.arange(T, dtype=jnp.float32)
    freqs = jnp.einsum("i,j->ij", t, inv_freq)
    cos = jnp.cos(freqs)[None, :, :]
    sin = jnp.sin(freqs)[None, :, :]
    x_even = x[..., ::2]
    x_odd = x[..., 1::2]
    re = x_even * cos - x_odd * sin
    ro = x_even * sin + x_odd * cos
    out = jnp.zeros_like(x)
    out = out.at[..., ::2].set(re)
    out = out.at[..., 1::2].set(ro)
    return out


def ref_forward(params, input_ids, cfg, inv_freq, rope_dim):
    D = cfg["hidden_size"]
    H = cfg["num_attention_heads"]
    hd = D // H
    eps = cfg["rms_norm_eps"]
    B, T = input_ids.shape

    x = params["token_emb"][input_ids] + params["pos_emb"][jnp.arange(T)][None]
    for layer in params["layers"]:
        xn = _rmsnorm_ref(x, layer["n1"], eps)
        q = xn @ layer["wq"] + layer["bq"]
        k = xn @ layer["wk"] + layer["bk"]
        v = xn @ layer["wv"] + layer["bv"]
        q = q.reshape(B, T, H, hd).transpose(0, 2, 1, 3)
        k = k.reshape(B, T, H, hd).transpose(0, 2, 1, 3)
        v = v.reshape(B, T, H, hd).transpose(0, 2, 1, 3)
        qf = _rotary_ref(q[..., :rope_dim], inv_freq)
        kf = _rotary_ref(k[..., :rope_dim], inv_freq)
        q = jnp.concatenate([qf, q[..., rope_dim:]], axis=-1)
        k = jnp.concatenate([kf, k[..., rope_dim:]], axis=-1)
        s = jnp.einsum("bhtd,bhsd->bhts", q, k) / math.sqrt(hd)
        mask = jnp.tril(jnp.ones((T, T), jnp.float32))[None, None]
        s = jnp.where(mask == 0, -jnp.inf, s)
        attn = jax.nn.softmax(s, axis=-1)
        o = jnp.einsum("bhts,bhsd->bhtd", attn, v)
        o = o.transpose(0, 2, 1, 3).reshape(B, T, D)
        x = x + (o @ layer["wo"] + layer["bo"])
        xn2 = _rmsnorm_ref(x, layer["n2"], eps)
        hmid = xn2 @ layer["w1"] + layer["b1"]
        hmid = hmid * jax.nn.sigmoid(hmid)
        x = x + (hmid @ layer["w2"] + layer["b2"])
    x = _rmsnorm_ref(x, params["final_norm"], eps)
    return x @ params["w_head"]


# ---------------------------------------------------------------------------
if __name__ == "__main__":
    cfg = CONFIG
    B, T = 2, 8
    D = cfg["hidden_size"]
    H = cfg["num_attention_heads"]
    hd = D // H
    rope_dim = int(hd * cfg["rotary_pct"])

    key = jax.random.PRNGKey(0)
    kp, ki = jax.random.split(key)
    params = init_params(cfg, kp)
    input_ids = jax.random.randint(ki, (B, T), 0, cfg["vocab_size"],
                                   dtype=jnp.int32)

    cos, sin, pmat, inv_freq = make_rope_tables(T, H, hd, rope_dim,
                                                cfg["rotary_base"])
    fused = prepare_fused(params, cfg, T, cos, sin, pmat)

    logits = qwen_forward(params, fused, input_ids, cfg)
    logits = jax.block_until_ready(logits)

    assert logits.shape == (B, T, cfg["vocab_size"])
    ref = ref_forward(params, input_ids, cfg, inv_freq, rope_dim)
    err = float(jnp.max(jnp.abs(logits - ref)))
    assert err < 1e-2, f"kernel/reference mismatch: max abs err = {err}"
    print("KERNEL_OK")
</pallas_src>

<mosaic_0001>
module attributes {stable_mosaic.version = 11 : i64} {
  func.func @qwen_fused_kernel(%arg0: i32, %arg1: memref<8x32xf32, #tpu.memory_space<vmem>>, %arg2: memref<2x1x32xf32, #tpu.memory_space<vmem>>, %arg3: memref<2x32x640xf32, #tpu.memory_space<vmem>>, %arg4: memref<2x1x640xf32, #tpu.memory_space<vmem>>, %arg5: memref<2x32x32xf32, #tpu.memory_space<vmem>>, %arg6: memref<2x1x32xf32, #tpu.memory_space<vmem>>, %arg7: memref<2x1x32xf32, #tpu.memory_space<vmem>>, %arg8: memref<2x32x64xf32, #tpu.memory_space<vmem>>, %arg9: memref<2x1x64xf32, #tpu.memory_space<vmem>>, %arg10: memref<2x64x32xf32, #tpu.memory_space<vmem>>, %arg11: memref<2x1x32xf32, #tpu.memory_space<vmem>>, %arg12: memref<1x32xf32, #tpu.memory_space<vmem>>, %arg13: memref<32x128xf32, #tpu.memory_space<vmem>>, %arg14: memref<8x32xf32, #tpu.memory_space<vmem>>, %arg15: memref<8x32xf32, #tpu.memory_space<vmem>>, %arg16: memref<8x32xf32, #tpu.memory_space<vmem>>, %arg17: memref<4x1x32xf32, #tpu.memory_space<vmem>>, %arg18: memref<32x32xf32, #tpu.memory_space<vmem>>, %arg19: memref<8x128xf32, #tpu.memory_space<vmem>>) attributes {dimension_semantics = [#tpu.dimension_semantics<parallel>], iteration_bounds = array<i64: 2>, scalar_prefetch = 0 : i64, scratch_operands = 0 : i64, tpu.core_type = #tpu.core_type<tc>, window_params = [{transform_indices = @transform_0, window_bounds = array<i64: 8, 32>}, {pipeline_mode = #tpu.pipeline_mode<synchronous>, transform_indices = @transform_1, window_bounds = array<i64: 2, 1, 32>}, {pipeline_mode = #tpu.pipeline_mode<synchronous>, transform_indices = @transform_2, window_bounds = array<i64: 2, 32, 640>}, {pipeline_mode = #tpu.pipeline_mode<synchronous>, transform_indices = @transform_3, window_bounds = array<i64: 2, 1, 640>}, {pipeline_mode = #tpu.pipeline_mode<synchronous>, transform_indices = @transform_4, window_bounds = array<i64: 2, 32, 32>}, {pipeline_mode = #tpu.pipeline_mode<synchronous>, transform_indices = @transform_5, window_bounds = array<i64: 2, 1, 32>}, {pipeline_mode = #tpu.pipeline_mode<synchronous>, transform_indices = @transform_6, window_bounds = array<i64: 2, 1, 32>}, {pipeline_mode = #tpu.pipeline_mode<synchronous>, transform_indices = @transform_7, window_bounds = array<i64: 2, 32, 64>}, {pipeline_mode = #tpu.pipeline_mode<synchronous>, transform_indices = @transform_8, window_bounds = array<i64: 2, 1, 64>}, {pipeline_mode = #tpu.pipeline_mode<synchronous>, transform_indices = @transform_9, window_bounds = array<i64: 2, 64, 32>}, {pipeline_mode = #tpu.pipeline_mode<synchronous>, transform_indices = @transform_10, window_bounds = array<i64: 2, 1, 32>}, {pipeline_mode = #tpu.pipeline_mode<synchronous>, transform_indices = @transform_11, window_bounds = array<i64: 1, 32>}, {pipeline_mode = #tpu.pipeline_mode<synchronous>, transform_indices = @transform_12, window_bounds = array<i64: 32, 128>}, {pipeline_mode = #tpu.pipeline_mode<synchronous>, transform_indices = @transform_13, window_bounds = array<i64: 8, 32>}, {pipeline_mode = #tpu.pipeline_mode<synchronous>, transform_indices = @transform_14, window_bounds = array<i64: 8, 32>}, {pipeline_mode = #tpu.pipeline_mode<synchronous>, transform_indices = @transform_15, window_bounds = array<i64: 8, 32>}, {pipeline_mode = #tpu.pipeline_mode<synchronous>, transform_indices = @transform_16, window_bounds = array<i64: 4, 1, 32>}, {pipeline_mode = #tpu.pipeline_mode<synchronous>, transform_indices = @transform_17, window_bounds = array<i64: 32, 32>}, {transform_indices = @transform_18, window_bounds = array<i64: 8, 128>}]} {
    %c0 = arith.constant 0 : index
    %c0_0 = arith.constant 0 : index
    %0 = vector.load %arg1[%c0, %c0_0] : memref<8x32xf32, #tpu.memory_space<vmem>>, vector<8x32xf32>
    %c0_1 = arith.constant 0 : index
    %c0_2 = arith.constant 0 : index
    %1 = vector.load %arg14[%c0_1, %c0_2] : memref<8x32xf32, #tpu.memory_space<vmem>>, vector<8x32xf32>
    %c0_3 = arith.constant 0 : index
    %c0_4 = arith.constant 0 : index
    %2 = vector.load %arg15[%c0_3, %c0_4] : memref<8x32xf32, #tpu.memory_space<vmem>>, vector<8x32xf32>
    %c0_5 = arith.constant 0 : index
    %c0_6 = arith.constant 0 : index
    %3 = vector.load %arg16[%c0_5, %c0_6] : memref<8x32xf32, #tpu.memory_space<vmem>>, vector<8x32xf32>
    %c0_7 = arith.constant 0 : index
    %c0_8 = arith.constant 0 : index
    %4 = vector.load %arg18[%c0_7, %c0_8] : memref<32x32xf32, #tpu.memory_space<vmem>>, vector<32x32xf32>
    %c0_9 = arith.constant 0 : index
    %c0_10 = arith.constant 0 : index
    %c0_11 = arith.constant 0 : index
    %5 = vector.load %arg2[%c0_9, %c0_10, %c0_11] : memref<2x1x32xf32, #tpu.memory_space<vmem>>, vector<1x1x32xf32>
    %6 = vector.shape_cast %5 : vector<1x1x32xf32> to vector<1x32xf32>
    %7 = arith.mulf %0, %0 : vector<8x32xf32>
    %cst = arith.constant dense<0.000000e+00> : vector<8xf32>
    %8 = vector.multi_reduction <add>, %7, %cst [1] : vector<8x32xf32> to vector<8xf32>
    %9 = vector.shape_cast %8 : vector<8xf32> to vector<8x1xf32>
    %10 = math.sqrt %9 : vector<8x1xf32>
    %cst_12 = arith.constant 9.99999997E-7 : f32
    %11 = vector.broadcast %cst_12 : f32 to vector<8x1xf32>
    %12 = arith.addf %10, %11 : vector<8x1xf32>
    %13 = tpu.reciprocal %12 {approx = true} : vector<8x1xf32> -> vector<8x1xf32>
    %14 = vector.broadcast %6 : vector<1x32xf32> to vector<8x32xf32>
    %15 = vector.broadcast %13 : vector<8x1xf32> to vector<8x32xf32>
    %16 = arith.mulf %14, %15 : vector<8x32xf32>
    %17 = arith.mulf %0, %16 : vector<8x32xf32>
    %c0_13 = arith.constant 0 : index
    %c0_14 = arith.constant 0 : index
    %c0_15 = arith.constant 0 : index
    %18 = vector.load %arg3[%c0_13, %c0_14, %c0_15] : memref<2x32x640xf32, #tpu.memory_space<vmem>>, vector<1x32x640xf32>
    %19 = vector.shape_cast %18 : vector<1x32x640xf32> to vector<32x640xf32>
    %cst_16 = arith.constant dense<0.000000e+00> : vector<8x640xf32>
    %20 = tpu.matmul %17, %19, %cst_16 {dimension_numbers = #tpu.dot_dimension_numbers<[1], [0], [0], [1], [0, 0, 1, 1], [], []>} : vector<8x32xf32>, vector<32x640xf32>, vector<8x640xf32> -> vector<8x640xf32>
    %c0_17 = arith.constant 0 : index
    %c0_18 = arith.constant 0 : index
    %c0_19 = arith.constant 0 : index
    %21 = vector.load %arg4[%c0_17, %c0_18, %c0_19] : memref<2x1x640xf32, #tpu.memory_space<vmem>>, vector<1x1x640xf32>
    %22 = vector.shape_cast %21 : vector<1x1x640xf32> to vector<1x640xf32>
    %23 = vector.broadcast %22 : vector<1x640xf32> to vector<8x640xf32>
    %24 = arith.addf %20, %23 : vector<8x640xf32>
    %25 = vector.extract_strided_slice %24 {offsets = [0, 0], sizes = [8, 32], strides = [1, 1]} : vector<8x640xf32> to vector<8x32xf32>
    %26 = arith.mulf %25, %1 : vector<8x32xf32>
    %27 = vector.extract_strided_slice %24 {offsets = [0, 384], sizes = [8, 32], strides = [1, 1]} : vector<8x640xf32> to vector<8x32xf32>
    %28 = arith.mulf %27, %2 : vector<8x32xf32>
    %29 = arith.addf %26, %28 : vector<8x32xf32>
    %30 = vector.extract_strided_slice %24 {offsets = [0, 128], sizes = [8, 32], strides = [1, 1]} : vector<8x640xf32> to vector<8x32xf32>
    %31 = arith.mulf %30, %1 : vector<8x32xf32>
    %32 = vector.extract_strided_slice %24 {offsets = [0, 512], sizes = [8, 32], strides = [1, 1]} : vector<8x640xf32> to vector<8x32xf32>
    %33 = arith.mulf %32, %2 : vector<8x32xf32>
    %34 = arith.addf %31, %33 : vector<8x32xf32>
    %35 = vector.extract_strided_slice %24 {offsets = [0, 256], sizes = [8, 32], strides = [1, 1]} : vector<8x640xf32> to vector<8x32xf32>
    %c0_20 = arith.constant 0 : index
    %c0_21 = arith.constant 0 : index
    %c0_22 = arith.constant 0 : index
    %36 = vector.load %arg17[%c0_20, %c0_21, %c0_22] : memref<4x1x32xf32, #tpu.memory_space<vmem>>, vector<1x1x32xf32>
    %37 = vector.shape_cast %36 : vector<1x1x32xf32> to vector<1x32xf32>
    %38 = vector.broadcast %37 : vector<1x32xf32> to vector<8x32xf32>
    %39 = arith.mulf %34, %38 : vector<8x32xf32>
    %c1 = arith.constant 1 : index
    %c0_23 = arith.constant 0 : index
    %c0_24 = arith.constant 0 : index
    %40 = vector.load %arg17[%c1, %c0_23, %c0_24] : memref<4x1x32xf32, #tpu.memory_space<vmem>>, vector<1x1x32xf32>
    %41 = vector.shape_cast %40 : vector<1x1x32xf32> to vector<1x32xf32>
    %42 = vector.broadcast %41 : vector<1x32xf32> to vector<8x32xf32>
    %43 = arith.mulf %34, %42 : vector<8x32xf32>
    %c2 = arith.constant 2 : index
    %c0_25 = arith.constant 0 : index
    %c0_26 = arith.constant 0 : index
    %44 = vector.load %arg17[%c2, %c0_25, %c0_26] : memref<4x1x32xf32, #tpu.memory_space<vmem>>, vector<1x1x32xf32>
    %45 = vector.shape_cast %44 : vector<1x1x32xf32> to vector<1x32xf32>
    %46 = vector.broadcast %45 : vector<1x32xf32> to vector<8x32xf32>
    %47 = arith.mulf %34, %46 : vector<8x32xf32>
    %c3 = arith.constant 3 : index
    %c0_27 = arith.constant 0 : index
    %c0_28 = arith.constant 0 : index
    %48 = vector.load %arg17[%c3, %c0_27, %c0_28] : memref<4x1x32xf32, #tpu.memory_space<vmem>>, vector<1x1x32xf32>
    %49 = vector.shape_cast %48 : vector<1x1x32xf32> to vector<1x32xf32>
    %50 = vector.broadcast %49 : vector<1x32xf32> to vector<8x32xf32>
    %51 = arith.mulf %34, %50 : vector<8x32xf32>
    %52 = tpu.concatenate %39, %43, %47, %51 in 0 : vector<8x32xf32>, vector<8x32xf32>, vector<8x32xf32>, vector<8x32xf32> -> vector<32x32xf32>
    %c0_29 = arith.constant 0 : index
    %c0_30 = arith.constant 0 : index
    %c0_31 = arith.constant 0 : index
    %53 = vector.load %arg17[%c0_29, %c0_30, %c0_31] : memref<4x1x32xf32, #tpu.memory_space<vmem>>, vector<1x1x32xf32>
    %54 = vector.shape_cast %53 : vector<1x1x32xf32> to vector<1x32xf32>
    %55 = vector.broadcast %54 : vector<1x32xf32> to vector<8x32xf32>
    %56 = arith.mulf %35, %55 : vector<8x32xf32>
    %c1_32 = arith.constant 1 : index
    %c0_33 = arith.constant 0 : index
    %c0_34 = arith.constant 0 : index
    %57 = vector.load %arg17[%c1_32, %c0_33, %c0_34] : memref<4x1x32xf32, #tpu.memory_space<vmem>>, vector<1x1x32xf32>
    %58 = vector.shape_cast %57 : vector<1x1x32xf32> to vector<1x32xf32>
    %59 = vector.broadcast %58 : vector<1x32xf32> to vector<8x32xf32>
    %60 = arith.mulf %35, %59 : vector<8x32xf32>
    %c2_35 = arith.constant 2 : index
    %c0_36 = arith.constant 0 : index
    %c0_37 = arith.constant 0 : index
    %61 = vector.load %arg17[%c2_35, %c0_36, %c0_37] : memref<4x1x32xf32, #tpu.memory_space<vmem>>, vector<1x1x32xf32>
    %62 = vector.shape_cast %61 : vector<1x1x32xf32> to vector<1x32xf32>
    %63 = vector.broadcast %62 : vector<1x32xf32> to vector<8x32xf32>
    %64 = arith.mulf %35, %63 : vector<8x32xf32>
    %c3_38 = arith.constant 3 : index
    %c0_39 = arith.constant 0 : index
    %c0_40 = arith.constant 0 : index
    %65 = vector.load %arg17[%c3_38, %c0_39, %c0_40] : memref<4x1x32xf32, #tpu.memory_space<vmem>>, vector<1x1x32xf32>
    %66 = vector.shape_cast %65 : vector<1x1x32xf32> to vector<1x32xf32>
    %67 = vector.broadcast %66 : vector<1x32xf32> to vector<8x32xf32>
    %68 = arith.mulf %35, %67 : vector<8x32xf32>
    %69 = tpu.concatenate %56, %60, %64, %68 in 0 : vector<8x32xf32>, vector<8x32xf32>, vector<8x32xf32>, vector<8x32xf32> -> vector<32x32xf32>
    %cst_41 = arith.constant dense<0.000000e+00> : vector<8x32xf32>
    %70 = tpu.matmul %29, %52, %cst_41 {dimension_numbers = #tpu.dot_dimension_numbers<[1], [1], [0], [0], [0, 0, 1, 0], [], []>} : vector<8x32xf32>, vector<32x32xf32>, vector<8x32xf32> -> vector<8x32xf32>
    %71 = arith.addf %70, %3 : vector<8x32xf32>
    %cst_42 = arith.constant dense<0xFF800000> : vector<8xf32>
    %72 = vector.multi_reduction <maximumf>, %71, %cst_42 [1] : vector<8x32xf32> to vector<8xf32>
    %73 = vector.shape_cast %72 : vector<8xf32> to vector<8x1xf32>
    %74 = vector.broadcast %73 : vector<8x1xf32> to vector<8x32xf32>
    %75 = arith.subf %71, %74 : vector<8x32xf32>
    %76 = math.exp %75 : vector<8x32xf32>
    %cst_43 = arith.constant dense<0.000000e+00> : vector<8x32xf32>
    %77 = tpu.matmul %76, %4, %cst_43 {dimension_numbers = #tpu.dot_dimension_numbers<[1], [0], [0], [1], [0, 0, 1, 1], [], []>} : vector<8x32xf32>, vector<32x32xf32>, vector<8x32xf32> -> vector<8x32xf32>
    %cst_44 = arith.constant dense<0.000000e+00> : vector<8x32xf32>
    %78 = tpu.matmul %76, %69, %cst_44 {dimension_numbers = #tpu.dot_dimension_numbers<[1], [0], [0], [1], [0, 0, 1, 1], [], []>} : vector<8x32xf32>, vector<32x32xf32>, vector<8x32xf32> -> vector<8x32xf32>
    %79 = tpu.reciprocal %77 {approx = true} : vector<8x32xf32> -> vector<8x32xf32>
    %80 = arith.mulf %78, %79 : vector<8x32xf32>
    %c0_45 = arith.constant 0 : index
    %c0_46 = arith.constant 0 : index
    %c0_47 = arith.constant 0 : index
    %81 = vector.load %arg5[%c0_45, %c0_46, %c0_47] : memref<2x32x32xf32, #tpu.memory_space<vmem>>, vector<1x32x32xf32>
    %82 = vector.shape_cast %81 : vector<1x32x32xf32> to vector<32x32xf32>
    %cst_48 = arith.constant dense<0.000000e+00> : vector<8x32xf32>
    %83 = tpu.matmul %80, %82, %cst_48 {dimension_numbers = #tpu.dot_dimension_numbers<[1], [0], [0], [1], [0, 0, 1, 1], [], []>} : vector<8x32xf32>, vector<32x32xf32>, vector<8x32xf32> -> vector<8x32xf32>
    %84 = arith.addf %0, %83 : vector<8x32xf32>
    %c0_49 = arith.constant 0 : index
    %c0_50 = arith.constant 0 : index
    %c0_51 = arith.constant 0 : index
    %85 = vector.load %arg6[%c0_49, %c0_50, %c0_51] : memref<2x1x32xf32, #tpu.memory_space<vmem>>, vector<1x1x32xf32>
    %86 = vector.shape_cast %85 : vector<1x1x32xf32> to vector<1x32xf32>
    %87 = vector.broadcast %86 : vector<1x32xf32> to vector<8x32xf32>
    %88 = arith.addf %84, %87 : vector<8x32xf32>
    %c0_52 = arith.constant 0 : index
    %c0_53 = arith.constant 0 : index
    %c0_54 = arith.constant 0 : index
    %89 = vector.load %arg7[%c0_52, %c0_53, %c0_54] : memref<2x1x32xf32, #tpu.memory_space<vmem>>, vector<1x1x32xf32>
    %90 = vector.shape_cast %89 : vector<1x1x32xf32> to vector<1x32xf32>
    %91 = arith.mulf %88, %88 : vector<8x32xf32>
    %cst_55 = arith.constant dense<0.000000e+00> : vector<8xf32>
    %92 = vector.multi_reduction <add>, %91, %cst_55 [1] : vector<8x32xf32> to vector<8xf32>
    %93 = vector.shape_cast %92 : vector<8xf32> to vector<8x1xf32>
    %94 = math.sqrt %93 : vector<8x1xf32>
    %cst_56 = arith.constant 9.99999997E-7 : f32
    %95 = vector.broadcast %cst_56 : f32 to vector<8x1xf32>
    %96 = arith.addf %94, %95 : vector<8x1xf32>
    %97 = tpu.reciprocal %96 {approx = true} : vector<8x1xf32> -> vector<8x1xf32>
    %98 = vector.broadcast %90 : vector<1x32xf32> to vector<8x32xf32>
    %99 = vector.broadcast %97 : vector<8x1xf32> to vector<8x32xf32>
    %100 = arith.mulf %98, %99 : vector<8x32xf32>
    %101 = arith.mulf %88, %100 : vector<8x32xf32>
    %c0_57 = arith.constant 0 : index
    %c0_58 = arith.constant 0 : index
    %c0_59 = arith.constant 0 : index
    %102 = vector.load %arg8[%c0_57, %c0_58, %c0_59] : memref<2x32x64xf32, #tpu.memory_space<vmem>>, vector<1x32x64xf32>
    %103 = vector.shape_cast %102 : vector<1x32x64xf32> to vector<32x64xf32>
    %cst_60 = arith.constant dense<0.000000e+00> : vector<8x64xf32>
    %104 = tpu.matmul %101, %103, %cst_60 {dimension_numbers = #tpu.dot_dimension_numbers<[1], [0], [0], [1], [0, 0, 1, 1], [], []>} : vector<8x32xf32>, vector<32x64xf32>, vector<8x64xf32> -> vector<8x64xf32>
    %c0_61 = arith.constant 0 : index
    %c0_62 = arith.constant 0 : index
    %c0_63 = arith.constant 0 : index
    %105 = vector.load %arg9[%c0_61, %c0_62, %c0_63] : memref<2x1x64xf32, #tpu.memory_space<vmem>>, vector<1x1x64xf32>
    %106 = vector.shape_cast %105 : vector<1x1x64xf32> to vector<1x64xf32>
    %107 = vector.broadcast %106 : vector<1x64xf32> to vector<8x64xf32>
    %108 = arith.addf %104, %107 : vector<8x64xf32>
    %109 = arith.negf %108 : vector<8x64xf32>
    %110 = math.exp %109 : vector<8x64xf32>
    %cst_64 = arith.constant 1.000000e+00 : f32
    %111 = vector.broadcast %cst_64 : f32 to vector<8x64xf32>
    %112 = arith.addf %111, %110 : vector<8x64xf32>
    %113 = arith.divf %111, %112 : vector<8x64xf32>
    %114 = arith.mulf %108, %113 : vector<8x64xf32>
    %c0_65 = arith.constant 0 : index
    %c0_66 = arith.constant 0 : index
    %c0_67 = arith.constant 0 : index
    %115 = vector.load %arg10[%c0_65, %c0_66, %c0_67] : memref<2x64x32xf32, #tpu.memory_space<vmem>>, vector<1x64x32xf32>
    %116 = vector.shape_cast %115 : vector<1x64x32xf32> to vector<64x32xf32>
    %cst_68 = arith.constant dense<0.000000e+00> : vector<8x32xf32>
    %117 = tpu.matmul %114, %116, %cst_68 {dimension_numbers = #tpu.dot_dimension_numbers<[1], [0], [0], [1], [0, 0, 1, 1], [], []>} : vector<8x64xf32>, vector<64x32xf32>, vector<8x32xf32> -> vector<8x32xf32>
    %118 = arith.addf %88, %117 : vector<8x32xf32>
    %c0_69 = arith.constant 0 : index
    %c0_70 = arith.constant 0 : index
    %c0_71 = arith.constant 0 : index
    %119 = vector.load %arg11[%c0_69, %c0_70, %c0_71] : memref<2x1x32xf32, #tpu.memory_space<vmem>>, vector<1x1x32xf32>
    %120 = vector.shape_cast %119 : vector<1x1x32xf32> to vector<1x32xf32>
    %121 = vector.broadcast %120 : vector<1x32xf32> to vector<8x32xf32>
    %122 = arith.addf %118, %121 : vector<8x32xf32>
    %c1_72 = arith.constant 1 : index
    %c0_73 = arith.constant 0 : index
    %c0_74 = arith.constant 0 : index
    %123 = vector.load %arg2[%c1_72, %c0_73, %c0_74] : memref<2x1x32xf32, #tpu.memory_space<vmem>>, vector<1x1x32xf32>
    %124 = vector.shape_cast %123 : vector<1x1x32xf32> to vector<1x32xf32>
    %125 = arith.mulf %122, %122 : vector<8x32xf32>
    %cst_75 = arith.constant dense<0.000000e+00> : vector<8xf32>
    %126 = vector.multi_reduction <add>, %125, %cst_75 [1] : vector<8x32xf32> to vector<8xf32>
    %127 = vector.shape_cast %126 : vector<8xf32> to vector<8x1xf32>
    %128 = math.sqrt %127 : vector<8x1xf32>
    %cst_76 = arith.constant 9.99999997E-7 : f32
    %129 = vector.broadcast %cst_76 : f32 to vector<8x1xf32>
    %130 = arith.addf %128, %129 : vector<8x1xf32>
    %131 = tpu.reciprocal %130 {approx = true} : vector<8x1xf32> -> vector<8x1xf32>
    %132 = vector.broadcast %124 : vector<1x32xf32> to vector<8x32xf32>
    %133 = vector.broadcast %131 : vector<8x1xf32> to vector<8x32xf32>
    %134 = arith.mulf %132, %133 : vector<8x32xf32>
    %135 = arith.mulf %122, %134 : vector<8x32xf32>
    %c1_77 = arith.constant 1 : index
    %c0_78 = arith.constant 0 : index
    %c0_79 = arith.constant 0 : index
    %136 = vector.load %arg3[%c1_77, %c0_78, %c0_79] : memref<2x32x640xf32, #tpu.memory_space<vmem>>, vector<1x32x640xf32>
    %137 = vector.shape_cast %136 : vector<1x32x640xf32> to vector<32x640xf32>
    %cst_80 = arith.constant dense<0.000000e+00> : vector<8x640xf32>
    %138 = tpu.matmul %135, %137, %cst_80 {dimension_numbers = #tpu.dot_dimension_numbers<[1], [0], [0], [1], [0, 0, 1, 1], [], []>} : vector<8x32xf32>, vector<32x640xf32>, vector<8x640xf32> -> vector<8x640xf32>
    %c1_81 = arith.constant 1 : index
    %c0_82 = arith.constant 0 : index
    %c0_83 = arith.constant 0 : index
    %139 = vector.load %arg4[%c1_81, %c0_82, %c0_83] : memref<2x1x640xf32, #tpu.memory_space<vmem>>, vector<1x1x640xf32>
    %140 = vector.shape_cast %139 : vector<1x1x640xf32> to vector<1x640xf32>
    %141 = vector.broadcast %140 : vector<1x640xf32> to vector<8x640xf32>
    %142 = arith.addf %138, %141 : vector<8x640xf32>
    %143 = vector.extract_strided_slice %142 {offsets = [0, 0], sizes = [8, 32], strides = [1, 1]} : vector<8x640xf32> to vector<8x32xf32>
    %144 = arith.mulf %143, %1 : vector<8x32xf32>
    %145 = vector.extract_strided_slice %142 {offsets = [0, 384], sizes = [8, 32], strides = [1, 1]} : vector<8x640xf32> to vector<8x32xf32>
    %146 = arith.mulf %145, %2 : vector<8x32xf32>
    %147 = arith.addf %144, %146 : vector<8x32xf32>
    %148 = vector.extract_strided_slice %142 {offsets = [0, 128], sizes = [8, 32], strides = [1, 1]} : vector<8x640xf32> to vector<8x32xf32>
    %149 = arith.mulf %148, %1 : vector<8x32xf32>
    %150 = vector.extract_strided_slice %142 {offsets = [0, 512], sizes = [8, 32], strides = [1, 1]} : vector<8x640xf32> to vector<8x32xf32>
    %151 = arith.mulf %150, %2 : vector<8x32xf32>
    %152 = arith.addf %149, %151 : vector<8x32xf32>
    %153 = vector.extract_strided_slice %142 {offsets = [0, 256], sizes = [8, 32], strides = [1, 1]} : vector<8x640xf32> to vector<8x32xf32>
    %c0_84 = arith.constant 0 : index
    %c0_85 = arith.constant 0 : index
    %c0_86 = arith.constant 0 : index
    %154 = vector.load %arg17[%c0_84, %c0_85, %c0_86] : memref<4x1x32xf32, #tpu.memory_space<vmem>>, vector<1x1x32xf32>
    %155 = vector.shape_cast %154 : vector<1x1x32xf32> to vector<1x32xf32>
    %156 = vector.broadcast %155 : vector<1x32xf32> to vector<8x32xf32>
    %157 = arith.mulf %152, %156 : vector<8x32xf32>
    %c1_87 = arith.constant 1 : index
    %c0_88 = arith.constant 0 : index
    %c0_89 = arith.constant 0 : index
    %158 = vector.load %arg17[%c1_87, %c0_88, %c0_89] : memref<4x1x32xf32, #tpu.memory_space<vmem>>, vector<1x1x32xf32>
    %159 = vector.shape_cast %158 : vector<1x1x32xf32> to vector<1x32xf32>
    %160 = vector.broadcast %159 : vector<1x32xf32> to vector<8x32xf32>
    %161 = arith.mulf %152, %160 : vector<8x32xf32>
    %c2_90 = arith.constant 2 : index
    %c0_91 = arith.constant 0 : index
    %c0_92 = arith.constant 0 : index
    %162 = vector.load %arg17[%c2_90, %c0_91, %c0_92] : memref<4x1x32xf32, #tpu.memory_space<vmem>>, vector<1x1x32xf32>
    %163 = vector.shape_cast %162 : vector<1x1x32xf32> to vector<1x32xf32>
    %164 = vector.broadcast %163 : vector<1x32xf32> to vector<8x32xf32>
    %165 = arith.mulf %152, %164 : vector<8x32xf32>
    %c3_93 = arith.constant 3 : index
    %c0_94 = arith.constant 0 : index
    %c0_95 = arith.constant 0 : index
    %166 = vector.load %arg17[%c3_93, %c0_94, %c0_95] : memref<4x1x32xf32, #tpu.memory_space<vmem>>, vector<1x1x32xf32>
    %167 = vector.shape_cast %166 : vector<1x1x32xf32> to vector<1x32xf32>
    %168 = vector.broadcast %167 : vector<1x32xf32> to vector<8x32xf32>
    %169 = arith.mulf %152, %168 : vector<8x32xf32>
    %170 = tpu.concatenate %157, %161, %165, %169 in 0 : vector<8x32xf32>, vector<8x32xf32>, vector<8x32xf32>, vector<8x32xf32> -> vector<32x32xf32>
    %c0_96 = arith.constant 0 : index
    %c0_97 = arith.constant 0 : index
    %c0_98 = arith.constant 0 : index
    %171 = vector.load %arg17[%c0_96, %c0_97, %c0_98] : memref<4x1x32xf32, #tpu.memory_space<vmem>>, vector<1x1x32xf32>
    %172 = vector.shape_cast %171 : vector<1x1x32xf32> to vector<1x32xf32>
    %173 = vector.broadcast %172 : vector<1x32xf32> to vector<8x32xf32>
    %174 = arith.mulf %153, %173 : vector<8x32xf32>
    %c1_99 = arith.constant 1 : index
    %c0_100 = arith.constant 0 : index
    %c0_101 = arith.constant 0 : index
    %175 = vector.load %arg17[%c1_99, %c0_100, %c0_101] : memref<4x1x32xf32, #tpu.memory_space<vmem>>, vector<1x1x32xf32>
    %176 = vector.shape_cast %175 : vector<1x1x32xf32> to vector<1x32xf32>
    %177 = vector.broadcast %176 : vector<1x32xf32> to vector<8x32xf32>
    %178 = arith.mulf %153, %177 : vector<8x32xf32>
    %c2_102 = arith.constant 2 : index
    %c0_103 = arith.constant 0 : index
    %c0_104 = arith.constant 0 : index
    %179 = vector.load %arg17[%c2_102, %c0_103, %c0_104] : memref<4x1x32xf32, #tpu.memory_space<vmem>>, vector<1x1x32xf32>
    %180 = vector.shape_cast %179 : vector<1x1x32xf32> to vector<1x32xf32>
    %181 = vector.broadcast %180 : vector<1x32xf32> to vector<8x32xf32>
    %182 = arith.mulf %153, %181 : vector<8x32xf32>
    %c3_105 = arith.constant 3 : index
    %c0_106 = arith.constant 0 : index
    %c0_107 = arith.constant 0 : index
    %183 = vector.load %arg17[%c3_105, %c0_106, %c0_107] : memref<4x1x32xf32, #tpu.memory_space<vmem>>, vector<1x1x32xf32>
    %184 = vector.shape_cast %183 : vector<1x1x32xf32> to vector<1x32xf32>
    %185 = vector.broadcast %184 : vector<1x32xf32> to vector<8x32xf32>
    %186 = arith.mulf %153, %185 : vector<8x32xf32>
    %187 = tpu.concatenate %174, %178, %182, %186 in 0 : vector<8x32xf32>, vector<8x32xf32>, vector<8x32xf32>, vector<8x32xf32> -> vector<32x32xf32>
    %cst_108 = arith.constant dense<0.000000e+00> : vector<8x32xf32>
    %188 = tpu.matmul %147, %170, %cst_108 {dimension_numbers = #tpu.dot_dimension_numbers<[1], [1], [0], [0], [0, 0, 1, 0], [], []>} : vector<8x32xf32>, vector<32x32xf32>, vector<8x32xf32> -> vector<8x32xf32>
    %189 = arith.addf %188, %3 : vector<8x32xf32>
    %cst_109 = arith.constant dense<0xFF800000> : vector<8xf32>
    %190 = vector.multi_reduction <maximumf>, %189, %cst_109 [1] : vector<8x32xf32> to vector<8xf32>
    %191 = vector.shape_cast %190 : vector<8xf32> to vector<8x1xf32>
    %192 = vector.broadcast %191 : vector<8x1xf32> to vector<8x32xf32>
    %193 = arith.subf %189, %192 : vector<8x32xf32>
    %194 = math.exp %193 : vector<8x32xf32>
    %cst_110 = arith.constant dense<0.000000e+00> : vector<8x32xf32>
    %195 = tpu.matmul %194, %4, %cst_110 {dimension_numbers = #tpu.dot_dimension_numbers<[1], [0], [0], [1], [0, 0, 1, 1], [], []>} : vector<8x32xf32>, vector<32x32xf32>, vector<8x32xf32> -> vector<8x32xf32>
    %cst_111 = arith.constant dense<0.000000e+00> : vector<8x32xf32>
    %196 = tpu.matmul %194, %187, %cst_111 {dimension_numbers = #tpu.dot_dimension_numbers<[1], [0], [0], [1], [0, 0, 1, 1], [], []>} : vector<8x32xf32>, vector<32x32xf32>, vector<8x32xf32> -> vector<8x32xf32>
    %197 = tpu.reciprocal %195 {approx = true} : vector<8x32xf32> -> vector<8x32xf32>
    %198 = arith.mulf %196, %197 : vector<8x32xf32>
    %c1_112 = arith.constant 1 : index
    %c0_113 = arith.constant 0 : index
    %c0_114 = arith.constant 0 : index
    %199 = vector.load %arg5[%c1_112, %c0_113, %c0_114] : memref<2x32x32xf32, #tpu.memory_space<vmem>>, vector<1x32x32xf32>
    %200 = vector.shape_cast %199 : vector<1x32x32xf32> to vector<32x32xf32>
    %cst_115 = arith.constant dense<0.000000e+00> : vector<8x32xf32>
    %201 = tpu.matmul %198, %200, %cst_115 {dimension_numbers = #tpu.dot_dimension_numbers<[1], [0], [0], [1], [0, 0, 1, 1], [], []>} : vector<8x32xf32>, vector<32x32xf32>, vector<8x32xf32> -> vector<8x32xf32>
    %202 = arith.addf %122, %201 : vector<8x32xf32>
    %c1_116 = arith.constant 1 : index
    %c0_117 = arith.constant 0 : index
    %c0_118 = arith.constant 0 : index
    %203 = vector.load %arg6[%c1_116, %c0_117, %c0_118] : memref<2x1x32xf32, #tpu.memory_space<vmem>>, vector<1x1x32xf32>
    %204 = vector.shape_cast %203 : vector<1x1x32xf32> to vector<1x32xf32>
    %205 = vector.broadcast %204 : vector<1x32xf32> to vector<8x32xf32>
    %206 = arith.addf %202, %205 : vector<8x32xf32>
    %c1_119 = arith.constant 1 : index
    %c0_120 = arith.constant 0 : index
    %c0_121 = arith.constant 0 : index
    %207 = vector.load %arg7[%c1_119, %c0_120, %c0_121] : memref<2x1x32xf32, #tpu.memory_space<vmem>>, vector<1x1x32xf32>
    %208 = vector.shape_cast %207 : vector<1x1x32xf32> to vector<1x32xf32>
    %209 = arith.mulf %206, %206 : vector<8x32xf32>
    %cst_122 = arith.constant dense<0.000000e+00> : vector<8xf32>
    %210 = vector.multi_reduction <add>, %209, %cst_122 [1] : vector<8x32xf32> to vector<8xf32>
    %211 = vector.shape_cast %210 : vector<8xf32> to vector<8x1xf32>
    %212 = math.sqrt %211 : vector<8x1xf32>
    %cst_123 = arith.constant 9.99999997E-7 : f32
    %213 = vector.broadcast %cst_123 : f32 to vector<8x1xf32>
    %214 = arith.addf %212, %213 : vector<8x1xf32>
    %215 = tpu.reciprocal %214 {approx = true} : vector<8x1xf32> -> vector<8x1xf32>
    %216 = vector.broadcast %208 : vector<1x32xf32> to vector<8x32xf32>
    %217 = vector.broadcast %215 : vector<8x1xf32> to vector<8x32xf32>
    %218 = arith.mulf %216, %217 : vector<8x32xf32>
    %219 = arith.mulf %206, %218 : vector<8x32xf32>
    %c1_124 = arith.constant 1 : index
    %c0_125 = arith.constant 0 : index
    %c0_126 = arith.constant 0 : index
    %220 = vector.load %arg8[%c1_124, %c0_125, %c0_126] : memref<2x32x64xf32, #tpu.memory_space<vmem>>, vector<1x32x64xf32>
    %221 = vector.shape_cast %220 : vector<1x32x64xf32> to vector<32x64xf32>
    %cst_127 = arith.constant dense<0.000000e+00> : vector<8x64xf32>
    %222 = tpu.matmul %219, %221, %cst_127 {dimension_numbers = #tpu.dot_dimension_numbers<[1], [0], [0], [1], [0, 0, 1, 1], [], []>} : vector<8x32xf32>, vector<32x64xf32>, vector<8x64xf32> -> vector<8x64xf32>
    %c1_128 = arith.constant 1 : index
    %c0_129 = arith.constant 0 : index
    %c0_130 = arith.constant 0 : index
    %223 = vector.load %arg9[%c1_128, %c0_129, %c0_130] : memref<2x1x64xf32, #tpu.memory_space<vmem>>, vector<1x1x64xf32>
    %224 = vector.shape_cast %223 : vector<1x1x64xf32> to vector<1x64xf32>
    %225 = vector.broadcast %224 : vector<1x64xf32> to vector<8x64xf32>
    %226 = arith.addf %222, %225 : vector<8x64xf32>
    %227 = arith.negf %226 : vector<8x64xf32>
    %228 = math.exp %227 : vector<8x64xf32>
    %cst_131 = arith.constant 1.000000e+00 : f32
    %229 = vector.broadcast %cst_131 : f32 to vector<8x64xf32>
    %230 = arith.addf %229, %228 : vector<8x64xf32>
    %231 = arith.divf %229, %230 : vector<8x64xf32>
    %232 = arith.mulf %226, %231 : vector<8x64xf32>
    %c1_132 = arith.constant 1 : index
    %c0_133 = arith.constant 0 : index
    %c0_134 = arith.constant 0 : index
    %233 = vector.load %arg10[%c1_132, %c0_133, %c0_134] : memref<2x64x32xf32, #tpu.memory_space<vmem>>, vector<1x64x32xf32>
    %234 = vector.shape_cast %233 : vector<1x64x32xf32> to vector<64x32xf32>
    %cst_135 = arith.constant dense<0.000000e+00> : vector<8x32xf32>
    %235 = tpu.matmul %232, %234, %cst_135 {dimension_numbers = #tpu.dot_dimension_numbers<[1], [0], [0], [1], [0, 0, 1, 1], [], []>} : vector<8x64xf32>, vector<64x32xf32>, vector<8x32xf32> -> vector<8x32xf32>
    %236 = arith.addf %206, %235 : vector<8x32xf32>
    %c1_136 = arith.constant 1 : index
    %c0_137 = arith.constant 0 : index
    %c0_138 = arith.constant 0 : index
    %237 = vector.load %arg11[%c1_136, %c0_137, %c0_138] : memref<2x1x32xf32, #tpu.memory_space<vmem>>, vector<1x1x32xf32>
    %238 = vector.shape_cast %237 : vector<1x1x32xf32> to vector<1x32xf32>
    %239 = vector.broadcast %238 : vector<1x32xf32> to vector<8x32xf32>
    %240 = arith.addf %236, %239 : vector<8x32xf32>
    %c0_139 = arith.constant 0 : index
    %c0_140 = arith.constant 0 : index
    %241 = vector.load %arg12[%c0_139, %c0_140] : memref<1x32xf32, #tpu.memory_space<vmem>>, vector<1x32xf32>
    %242 = arith.mulf %240, %240 : vector<8x32xf32>
    %cst_141 = arith.constant dense<0.000000e+00> : vector<8xf32>
    %243 = vector.multi_reduction <add>, %242, %cst_141 [1] : vector<8x32xf32> to vector<8xf32>
    %244 = vector.shape_cast %243 : vector<8xf32> to vector<8x1xf32>
    %245 = math.sqrt %244 : vector<8x1xf32>
    %cst_142 = arith.constant 9.99999997E-7 : f32
    %246 = vector.broadcast %cst_142 : f32 to vector<8x1xf32>
    %247 = arith.addf %245, %246 : vector<8x1xf32>
    %248 = tpu.reciprocal %247 {approx = true} : vector<8x1xf32> -> vector<8x1xf32>
    %249 = vector.broadcast %241 : vector<1x32xf32> to vector<8x32xf32>
    %250 = vector.broadcast %248 : vector<8x1xf32> to vector<8x32xf32>
    %251 = arith.mulf %249, %250 : vector<8x32xf32>
    %252 = arith.mulf %240, %251 : vector<8x32xf32>
    %c0_143 = arith.constant 0 : index
    %c0_144 = arith.constant 0 : index
    %253 = vector.load %arg13[%c0_143, %c0_144] : memref<32x128xf32, #tpu.memory_space<vmem>>, vector<32x128xf32>
    %cst_145 = arith.constant dense<0.000000e+00> : vector<8x128xf32>
    %254 = tpu.matmul %252, %253, %cst_145 {dimension_numbers = #tpu.dot_dimension_numbers<[1], [0], [0], [1], [0, 0, 1, 1], [], []>} : vector<8x32xf32>, vector<32x128xf32>, vector<8x128xf32> -> vector<8x128xf32>
    %c0_146 = arith.constant 0 : index
    %c0_147 = arith.constant 0 : index
    %255 = vector.load %arg19[%c0_146, %c0_147] : memref<8x128xf32, #tpu.memory_space<vmem>>, vector<8x128xf32>
    tpu.vector_store %arg19[%c0_146, %c0_147], %254 {strides = array<i32>} : memref<8x128xf32, #tpu.memory_space<vmem>>, vector<8x128xf32>,
    return
  }
  func.func @transform_0(%arg0: i32) -> (i32, i32) {
    %c0_i32 = arith.constant 0 : i32
    %c0_i32_0 = arith.constant 0 : i32
    return %arg0, %c0_i32 : i32, i32
  }
  func.func @transform_1(%arg0: i32) -> (i32, i32, i32) {
    %c0_i32 = arith.constant 0 : i32
    %c0_i32_0 = arith.constant 0 : i32
    %c0_i32_1 = arith.constant 0 : i32
    %c0_i32_2 = arith.constant 0 : i32
    return %c0_i32, %c0_i32_0, %c0_i32_1 : i32, i32, i32
  }
  func.func @transform_2(%arg0: i32) -> (i32, i32, i32) {
    %c0_i32 = arith.constant 0 : i32
    %c0_i32_0 = arith.constant 0 : i32
    %c0_i32_1 = arith.constant 0 : i32
    %c0_i32_2 = arith.constant 0 : i32
    return %c0_i32, %c0_i32_0, %c0_i32_1 : i32, i32, i32
  }
  func.func @transform_3(%arg0: i32) -> (i32, i32, i32) {
    %c0_i32 = arith.constant 0 : i32
    %c0_i32_0 = arith.constant 0 : i32
    %c0_i32_1 = arith.constant 0 : i32
    %c0_i32_2 = arith.constant 0 : i32
    return %c0_i32, %c0_i32_0, %c0_i32_1 : i32, i32, i32
  }
  func.func @transform_4(%arg0: i32) -> (i32, i32, i32) {
    %c0_i32 = arith.constant 0 : i32
    %c0_i32_0 = arith.constant 0 : i32
    %c0_i32_1 = arith.constant 0 : i32
    %c0_i32_2 = arith.constant 0 : i32
    return %c0_i32, %c0_i32_0, %c0_i32_1 : i32, i32, i32
  }
  func.func @transform_5(%arg0: i32) -> (i32, i32, i32) {
    %c0_i32 = arith.constant 0 : i32
    %c0_i32_0 = arith.constant 0 : i32
    %c0_i32_1 = arith.constant 0 : i32
    %c0_i32_2 = arith.constant 0 : i32
    return %c0_i32, %c0_i32_0, %c0_i32_1 : i32, i32, i32
  }
  func.func @transform_6(%arg0: i32) -> (i32, i32, i32) {
    %c0_i32 = arith.constant 0 : i32
    %c0_i32_0 = arith.constant 0 : i32
    %c0_i32_1 = arith.constant 0 : i32
    %c0_i32_2 = arith.constant 0 : i32
    return %c0_i32, %c0_i32_0, %c0_i32_1 : i32, i32, i32
  }
  func.func @transform_7(%arg0: i32) -> (i32, i32, i32) {
    %c0_i32 = arith.constant 0 : i32
    %c0_i32_0 = arith.constant 0 : i32
    %c0_i32_1 = arith.constant 0 : i32
    %c0_i32_2 = arith.constant 0 : i32
    return %c0_i32, %c0_i32_0, %c0_i32_1 : i32, i32, i32
  }
  func.func @transform_8(%arg0: i32) -> (i32, i32, i32) {
    %c0_i32 = arith.constant 0 : i32
    %c0_i32_0 = arith.constant 0 : i32
    %c0_i32_1 = arith.constant 0 : i32
    %c0_i32_2 = arith.constant 0 : i32
    return %c0_i32, %c0_i32_0, %c0_i32_1 : i32, i32, i32
  }
  func.func @transform_9(%arg0: i32) -> (i32, i32, i32) {
    %c0_i32 = arith.constant 0 : i32
    %c0_i32_0 = arith.constant 0 : i32
    %c0_i32_1 = arith.constant 0 : i32
    %c0_i32_2 = arith.constant 0 : i32
    return %c0_i32, %c0_i32_0, %c0_i32_1 : i32, i32, i32
  }
  func.func @transform_10(%arg0: i32) -> (i32, i32, i32) {
    %c0_i32 = arith.constant 0 : i32
    %c0_i32_0 = arith.constant 0 : i32
    %c0_i32_1 = arith.constant 0 : i32
    %c0_i32_2 = arith.constant 0 : i32
    return %c0_i32, %c0_i32_0, %c0_i32_1 : i32, i32, i32
  }
  func.func @transform_11(%arg0: i32) -> (i32, i32) {
    %c0_i32 = arith.constant 0 : i32
    %c0_i32_0 = arith.constant 0 : i32
    %c0_i32_1 = arith.constant 0 : i32
    return %c0_i32, %c0_i32_0 : i32, i32
  }
  func.func @transform_12(%arg0: i32) -> (i32, i32) {
    %c0_i32 = arith.constant 0 : i32
    %c0_i32_0 = arith.constant 0 : i32
    %c0_i32_1 = arith.constant 0 : i32
    return %c0_i32, %c0_i32_0 : i32, i32
  }
  func.func @transform_13(%arg0: i32) -> (i32, i32) {
    %c0_i32 = arith.constant 0 : i32
    %c0_i32_0 = arith.constant 0 : i32
    %c0_i32_1 = arith.constant 0 : i32
    return %c0_i32, %c0_i32_0 : i32, i32
  }
  func.func @transform_14(%arg0: i32) -> (i32, i32) {
    %c0_i32 = arith.constant 0 : i32
    %c0_i32_0 = arith.constant 0 : i32
    %c0_i32_1 = arith.constant 0 : i32
    return %c0_i32, %c0_i32_0 : i32, i32
  }
  func.func @transform_15(%arg0: i32) -> (i32, i32) {
    %c0_i32 = arith.constant 0 : i32
    %c0_i32_0 = arith.constant 0 : i32
    %c0_i32_1 = arith.constant 0 : i32
    return %c0_i32, %c0_i32_0 : i32, i32
  }
  func.func @transform_16(%arg0: i32) -> (i32, i32, i32) {
    %c0_i32 = arith.constant 0 : i32
    %c0_i32_0 = arith.constant 0 : i32
    %c0_i32_1 = arith.constant 0 : i32
    %c0_i32_2 = arith.constant 0 : i32
    return %c0_i32, %c0_i32_0, %c0_i32_1 : i32, i32, i32
  }
  func.func @transform_17(%arg0: i32) -> (i32, i32) {
    %c0_i32 = arith.constant 0 : i32
    %c0_i32_0 = arith.constant 0 : i32
    %c0_i32_1 = arith.constant 0 : i32
    return %c0_i32, %c0_i32_0 : i32, i32
  }
  func.func @transform_18(%arg0: i32) -> (i32, i32) {
    %c0_i32 = arith.constant 0 : i32
    %c0_i32_0 = arith.constant 0 : i32
    return %arg0, %c0_i32 : i32, i32
  }
}

</mosaic_0001>

<llo_original>
// kernel: tpu_custom_call.1
$region0: #{tpu_custom_call.1}
  #allocation0 [shape = 'u32[]', space=smem, size = 0x4, offset = 0x4, fixed_abs, tag = 'smem constant byte address 0x4 - core index']
  #allocation1 [shape = 'u32[144,128]{1,0:T(1,128)}', space=vmem, size = 0x12000, scoped, tag = 'internal scratch']
  %s0 = inlined_call_operand.hbm [shape: f32[16,32], index: 0, kind: input, shape index: {}]
  %s1 = inlined_call_operand.hbm [shape: f32[2,1,32], index: 1, kind: input, shape index: {}]
  %s2 = inlined_call_operand.hbm [shape: f32[2,32,640], index: 2, kind: input, shape index: {}]
  %s3 = inlined_call_operand.hbm [shape: f32[2,1,640], index: 3, kind: input, shape index: {}]
  %s4 = inlined_call_operand.vmem [shape: f32[2,32,32], index: 4, kind: input, shape index: {}]
  %s5 = inlined_call_operand.hbm [shape: f32[2,1,32], index: 5, kind: input, shape index: {}]
  %s6 = inlined_call_operand.hbm [shape: f32[2,1,32], index: 6, kind: input, shape index: {}]
  %s7 = inlined_call_operand.vmem [shape: f32[2,32,64], index: 7, kind: input, shape index: {}]
  %s8 = inlined_call_operand.hbm [shape: f32[2,1,64], index: 8, kind: input, shape index: {}]
  %s9 = inlined_call_operand.vmem [shape: f32[2,64,32], index: 9, kind: input, shape index: {}]
  %s10 = inlined_call_operand.hbm [shape: f32[2,1,32], index: 10, kind: input, shape index: {}]
  %s11 = inlined_call_operand.vmem [shape: f32[1,32], index: 11, kind: input, shape index: {}]
  %s12 = inlined_call_operand.vmem [shape: f32[32,128], index: 12, kind: input, shape index: {}]
  %s13 = inlined_call_operand.vmem [shape: f32[8,32], index: 13, kind: input, shape index: {}]
  %s14 = inlined_call_operand.vmem [shape: f32[8,32], index: 14, kind: input, shape index: {}]
  %s15 = inlined_call_operand.vmem [shape: f32[8,32], index: 15, kind: input, shape index: {}]
  %s16 = inlined_call_operand.vmem [shape: f32[4,1,32], index: 16, kind: input, shape index: {}]
  %s17 = inlined_call_operand.vmem [shape: f32[32,32], index: 17, kind: input, shape index: {}]
  %s18 = inlined_call_operand.hbm [shape: f32[16,128], index: 18, kind: output, shape index: {}]
  %s19 = sld [smem:[#allocation0]]
  $region137: #{tpu_custom_call.1} parent=0
    _
  %s21 = ssub.s32 1, %s19
  %s22 = scalar_select 0, %s21, %s19
  $region1: #{tpu_custom_call.1} parent=0
    #allocation2 [shape = 'u8[8192]{0}', space=vmem, size = 0x2000, scoped, tag = 'input window, operand 0']
    #allocation3 [shape = 's32[2]{0}', space=sflag, size = 0x8, scoped, tag = 'scoped memory for tpu_custom_call.1']
    #allocation4 [shape = 's32[2]{0}', space=sflag, size = 0x8, scoped, tag = 'scoped memory for tpu_custom_call.1']
    #allocation5 [shape = 'u8[1024]{0}', space=vmem, size = 0x400, scoped, tag = 'input window, operand 1, single buffered']
    #allocation6 [shape = 's32[1]{0}', space=sflag, size = 0x4, scoped, tag = 'scoped memory for tpu_custom_call.1']
    #allocation7 [shape = 'u8[163840]{0}', space=vmem, size = 0x28000, scoped, tag = 'input window, operand 2, single buffered']
    #allocation8 [shape = 'u8[5120]{0}', space=vmem, size = 0x1400, scoped, tag = 'input window, operand 3, single buffered']
    #allocation9 [shape = 's32[1]{0}', space=sflag, size = 0x4, scoped, tag = 'scoped memory for tpu_custom_call.1']
    #allocation10 [shape = 'u8[1024]{0}', space=vmem, size = 0x400, scoped, tag = 'input window, operand 5, single buffered']
    #allocation11 [shape = 'u8[1024]{0}', space=vmem, size = 0x400, scoped, tag = 'input window, operand 6, single buffered']
    #allocation12 [shape = 's32[1]{0}', space=sflag, size = 0x4, scoped, tag = 'scoped memory for tpu_custom_call.1']
    #allocation13 [shape = 'u8[1024]{0}', space=vmem, size = 0x400, scoped, tag = 'input window, operand 8, single buffered']
    #allocation14 [shape = 'u8[1024]{0}', space=vmem, size = 0x400, scoped, tag = 'input window, operand 10, single buffered']
    #allocation15 [shape = 's32[1]{0}', space=sflag, size = 0x4, scoped, tag = 'scoped memory for tpu_custom_call.1']
    #allocation16 [shape = 'u8[8192]{0}', space=vmem, size = 0x2000, scoped, tag = 'output window, operand 0']
    %23 = vsyncpa [#allocation3], 0
    %s24 = scalar_lea.sflag [#allocation3], 1
    %25 = vsyncpa %s24, 0
    %26 = vsyncpa [#allocation6], 0
    %27 = vsyncpa [#allocation9], 0
    %28 = vsyncpa [#allocation12], 0
    %29 = vsyncpa [#allocation15], 0
    %30 = vsyncpa [#allocation4], 0
    %s31 = scalar_lea.sflag [#allocation4], 1
    %32 = vsyncpa %s31, 0
    loop: start=0, step=1, limit=4
    $region2: #{tpu_custom_call.1} parent=1 // loop_pre_header
      _
    $region3: #{tpu_custom_call.1} parent=1 // loop_header
      %s34 = sphi 0, %s38
      %p35 = scmp.ge.s32.totalorder %s34, 4
      %s44 = sphi 0, %s46
      %s47 = sphi 0, %s44
      %s48 = sphi 0, %s47
      %s64 = sphi 0, %s48
      %s68 = sphi 0, %s68
      %s70 = sphi 0, %s68
      %s71 = sphi 0, %s70
      %s85 = sphi 0, %s71
      %s89 = sphi 0, %s89
      %s91 = sphi 0, %s89
      %s92 = sphi 0, %s91
      %s106 = sphi 0, %s92
      %s110 = sphi 0, %s110
      %s112 = sphi 0, %s110
      %s113 = sphi 0, %s112
      %s127 = sphi 0, %s113
      %s131 = sphi 0, %s131
      %s133 = sphi 0, %s131
      %s134 = sphi 0, %s133
      %s148 = sphi 0, %s134
      %s152 = sphi 0, %s152
      %s154 = sphi 0, %s152
      %s155 = sphi 0, %s154
      %s169 = sphi 0, %s155
      %s173 = sphi 0, %s173
      %s175 = sphi 0, %s173
      %s176 = sphi 0, %s175
      %s190 = sphi 0, %s176
      %s194 = sphi 0, %s194
      %s196 = sphi 0, %s194
      %s197 = sphi 0, %s196
      %s211 = sphi 0, %s197
      %s215 = sphi 0, %s215
      %s217 = sphi 0, %s215
      %s218 = sphi 0, %s217
      %s232 = sphi 0, %s218
      %s236 = sphi 0, %s236
      %s238 = sphi 0, %s236
      %s239 = sphi 0, %s238
      %s253 = sphi 0, %s239
      %s257 = sphi 0, %s257
      %s259 = sphi 0, %s257
      %s260 = sphi 0, %s259
      %s274 = sphi 0, %s260
      %s278 = sphi 0, %s278
      %s280 = sphi 0, %s278
      %s281 = sphi 0, %s280
      %s295 = sphi 0, %s281
      %s299 = sphi 0, %s299
      %s301 = sphi 0, %s299
      %s302 = sphi 0, %s301
      %s316 = sphi 0, %s302
      %s320 = sphi 0, %s320
      %s322 = sphi 0, %s320
      %s323 = sphi 0, %s322
      %s337 = sphi 0, %s323
      %s341 = sphi 0, %s341
      %s343 = sphi 0, %s341
      %s344 = sphi 0, %s343
      %s358 = sphi 0, %s344
      %s362 = sphi 0, %s362
      %s364 = sphi 0, %s362
      %s365 = sphi 0, %s364
      %s379 = sphi 0, %s365
      %s383 = sphi 0, %s383
      %s385 = sphi 0, %s383
      %s386 = sphi 0, %s385
      %s400 = sphi 0, %s386
      %s404 = sphi 0, %s404
      %s406 = sphi 0, %s404
      %s407 = sphi 0, %s406
      %s421 = sphi 0, %s407
      %s427 = sphi 0, %s429
      %s430 = sphi 0, %s427
      %s431 = sphi 0, %s430
      %s447 = sphi 0, %s431
    $region4: #{tpu_custom_call.1} parent=1 // loop_header_branch
      %37 = sbr.rel (%p35) target = $region8
    $region5: #{tpu_custom_call.1} parent=1 // loop_body
      %s39 = ssub.s32 %s34, 1
      %s40 = ssub.s32 %s34, 2
      %s41 = sadd.s32 %s34, 1
      %s42 = ssub.s32 %s34, %s41
      %p43 = scmp.eq.s32.totalorder %s42, 0
      %s45 = sadd.s32 %s44, 1
      %s46 = scalar_select %p43, %s44, %s45
      %p49 = pneg %p43
      %p50 = scmp.eq.s32.totalorder %s34, 1
      %p51 = por %p49, %p50
      %p52 = scmp.ne.s32.totalorder %s44, %s47
      %p53 = scmp.eq.s32.totalorder %s34, 0
      %p54 = por %p52, %p53
      %p55 = scmp.ne.s32.totalorder %s44, %s47
      %p56 = scmp.eq.s32.totalorder %s39, 1
      %p57 = por %p55, %p56
      %p58 = scmp.ne.s32.totalorder %s47, %s48
      %p59 = scmp.eq.s32.totalorder %s39, 0
      %p60 = por %p58, %p59
      %p61 = scmp.ne.s32.totalorder %s47, %s48
      %p62 = scmp.eq.s32.totalorder %s40, 1
      %p63 = por %p61, %p62
      %p65 = scmp.ne.s32.totalorder %s48, %s64
      %p66 = scmp.eq.s32.totalorder %s40, 0
      %p67 = por %p65, %p66
      %s69 = sadd.s32 %s68, 1
      %p72 = scmp.eq.s32.totalorder %s34, 1
      %p73 = scmp.ne.s32.totalorder %s68, %s70
      %p74 = scmp.eq.s32.totalorder %s34, 0
      %p75 = por %p73, %p74
      %p76 = scmp.ne.s32.totalorder %s68, %s70
      %p77 = scmp.eq.s32.totalorder %s39, 1
      %p78 = por %p76, %p77
      %p79 = scmp.ne.s32.totalorder %s70, %s71
      %p80 = scmp.eq.s32.totalorder %s39, 0
      %p81 = por %p79, %p80
      %p82 = scmp.ne.s32.totalorder %s70, %s71
      %p83 = scmp.eq.s32.totalorder %s40, 1
      %p84 = por %p82, %p83
      %p86 = scmp.ne.s32.totalorder %s71, %s85
      %p87 = scmp.eq.s32.totalorder %s40, 0
      %p88 = por %p86, %p87
      %s90 = sadd.s32 %s89, 1
      %p93 = scmp.eq.s32.totalorder %s34, 1
      %p94 = scmp.ne.s32.totalorder %s89, %s91
      %p95 = scmp.eq.s32.totalorder %s34, 0
      %p96 = por %p94, %p95
      %p97 = scmp.ne.s32.totalorder %s89, %s91
      %p98 = scmp.eq.s32.totalorder %s39, 1
      %p99 = por %p97, %p98
      %p100 = scmp.ne.s32.totalorder %s91, %s92
      %p101 = scmp.eq.s32.totalorder %s39, 0
      %p102 = por %p100, %p101
      %p103 = scmp.ne.s32.totalorder %s91, %s92
      %p104 = scmp.eq.s32.totalorder %s40, 1
      %p105 = por %p103, %p104
      %p107 = scmp.ne.s32.totalorder %s92, %s106
      %p108 = scmp.eq.s32.totalorder %s40, 0
      %p109 = por %p107, %p108
      %s111 = sadd.s32 %s110, 1
      %p114 = scmp.eq.s32.totalorder %s34, 1
      %p115 = scmp.ne.s32.totalorder %s110, %s112
      %p116 = scmp.eq.s32.totalorder %s34, 0
      %p117 = por %p115, %p116
      %p118 = scmp.ne.s32.totalorder %s110, %s112
      %p119 = scmp.eq.s32.totalorder %s39, 1
      %p120 = por %p118, %p119
      %p121 = scmp.ne.s32.totalorder %s112, %s113
      %p122 = scmp.eq.s32.totalorder %s39, 0
      %p123 = por %p121, %p122
      %p124 = scmp.ne.s32.totalorder %s112, %s113
      %p125 = scmp.eq.s32.totalorder %s40, 1
      %p126 = por %p124, %p125
      %p128 = scmp.ne.s32.totalorder %s113, %s127
      %p129 = scmp.eq.s32.totalorder %s40, 0
      %p130 = por %p128, %p129
      %s132 = sadd.s32 %s131, 1
      %p135 = scmp.eq.s32.totalorder %s34, 1
      %p136 = scmp.ne.s32.totalorder %s131, %s133
      %p137 = scmp.eq.s32.totalorder %s34, 0
      %p138 = por %p136, %p137
      %p139 = scmp.ne.s32.totalorder %s131, %s133
      %p140 = scmp.eq.s32.totalorder %s39, 1
      %p141 = por %p139, %p140
      %p142 = scmp.ne.s32.totalorder %s133, %s134
      %p143 = scmp.eq.s32.totalorder %s39, 0
      %p144 = por %p142, %p143
      %p145 = scmp.ne.s32.totalorder %s133, %s134
      %p146 = scmp.eq.s32.totalorder %s40, 1
      %p147 = por %p145, %p146
      %p149 = scmp.ne.s32.totalorder %s134, %s148
      %p150 = scmp.eq.s32.totalorder %s40, 0
      %p151 = por %p149, %p150
      %s153 = sadd.s32 %s152, 1
      %p156 = scmp.eq.s32.totalorder %s34, 1
      %p157 = scmp.ne.s32.totalorder %s152, %s154
      %p158 = scmp.eq.s32.totalorder %s34, 0
      %p159 = por %p157, %p158
      %p160 = scmp.ne.s32.totalorder %s152, %s154
      %p161 = scmp.eq.s32.totalorder %s39, 1
      %p162 = por %p160, %p161
      %p163 = scmp.ne.s32.totalorder %s154, %s155
      %p164 = scmp.eq.s32.totalorder %s39, 0
      %p165 = por %p163, %p164
      %p166 = scmp.ne.s32.totalorder %s154, %s155
      %p167 = scmp.eq.s32.totalorder %s40, 1
      %p168 = por %p166, %p167
      %p170 = scmp.ne.s32.totalorder %s155, %s169
      %p171 = scmp.eq.s32.totalorder %s40, 0
      %p172 = por %p170, %p171
      %s174 = sadd.s32 %s173, 1
      %p177 = scmp.eq.s32.totalorder %s34, 1
      %p178 = scmp.ne.s32.totalorder %s173, %s175
      %p179 = scmp.eq.s32.totalorder %s34, 0
      %p180 = por %p178, %p179
      %p181 = scmp.ne.s32.totalorder %s173, %s175
      %p182 = scmp.eq.s32.totalorder %s39, 1
      %p183 = por %p181, %p182
      %p184 = scmp.ne.s32.totalorder %s175, %s176
      %p185 = scmp.eq.s32.totalorder %s39, 0
      %p186 = por %p184, %p185
      %p187 = scmp.ne.s32.totalorder %s175, %s176
      %p188 = scmp.eq.s32.totalorder %s40, 1
      %p189 = por %p187, %p188
      %p191 = scmp.ne.s32.totalorder %s176, %s190
      %p192 = scmp.eq.s32.totalorder %s40, 0
      %p193 = por %p191, %p192
      %s195 = sadd.s32 %s194, 1
      %p198 = scmp.eq.s32.totalorder %s34, 1
      %p199 = scmp.ne.s32.totalorder %s194, %s196
      %p200 = scmp.eq.s32.totalorder %s34, 0
      %p201 = por %p199, %p200
      %p202 = scmp.ne.s32.totalorder %s194, %s196
      %p203 = scmp.eq.s32.totalorder %s39, 1
      %p204 = por %p202, %p203
      %p205 = scmp.ne.s32.totalorder %s196, %s197
      %p206 = scmp.eq.s32.totalorder %s39, 0
      %p207 = por %p205, %p206
      %p208 = scmp.ne.s32.totalorder %s196, %s197
      %p209 = scmp.eq.s32.totalorder %s40, 1
      %p210 = por %p208, %p209
      %p212 = scmp.ne.s32.totalorder %s197, %s211
      %p213 = scmp.eq.s32.totalorder %s40, 0
      %p214 = por %p212, %p213
      %s216 = sadd.s32 %s215, 1
      %p219 = scmp.eq.s32.totalorder %s34, 1
      %p220 = scmp.ne.s32.totalorder %s215, %s217
      %p221 = scmp.eq.s32.totalorder %s34, 0
      %p222 = por %p220, %p221
      %p223 = scmp.ne.s32.totalorder %s215, %s217
      %p224 = scmp.eq.s32.totalorder %s39, 1
      %p225 = por %p223, %p224
      %p226 = scmp.ne.s32.totalorder %s217, %s218
      %p227 = scmp.eq.s32.totalorder %s39, 0
      %p228 = por %p226, %p227
      %p229 = scmp.ne.s32.totalorder %s217, %s218
      %p230 = scmp.eq.s32.totalorder %s40, 1
      %p231 = por %p229, %p230
      %p233 = scmp.ne.s32.totalorder %s218, %s232
      %p234 = scmp.eq.s32.totalorder %s40, 0
      %p235 = por %p233, %p234
      %s237 = sadd.s32 %s236, 1
      %p240 = scmp.eq.s32.totalorder %s34, 1
      %p241 = scmp.ne.s32.totalorder %s236, %s238
      %p242 = scmp.eq.s32.totalorder %s34, 0
      %p243 = por %p241, %p242
      %p244 = scmp.ne.s32.totalorder %s236, %s238
      %p245 = scmp.eq.s32.totalorder %s39, 1
      %p246 = por %p244, %p245
      %p247 = scmp.ne.s32.totalorder %s238, %s239
      %p248 = scmp.eq.s32.totalorder %s39, 0
      %p249 = por %p247, %p248
      %p250 = scmp.ne.s32.totalorder %s238, %s239
      %p251 = scmp.eq.s32.totalorder %s40, 1
      %p252 = por %p250, %p251
      %p254 = scmp.ne.s32.totalorder %s239, %s253
      %p255 = scmp.eq.s32.totalorder %s40, 0
      %p256 = por %p254, %p255
      %s258 = sadd.s32 %s257, 1
      %p261 = scmp.eq.s32.totalorder %s34, 1
      %p262 = scmp.ne.s32.totalorder %s257, %s259
      %p263 = scmp.eq.s32.totalorder %s34, 0
      %p264 = por %p262, %p263
      %p265 = scmp.ne.s32.totalorder %s257, %s259
      %p266 = scmp.eq.s32.totalorder %s39, 1
      %p267 = por %p265, %p266
      %p268 = scmp.ne.s32.totalorder %s259, %s260
      %p269 = scmp.eq.s32.totalorder %s39, 0
      %p270 = por %p268, %p269
      %p271 = scmp.ne.s32.totalorder %s259, %s260
      %p272 = scmp.eq.s32.totalorder %s40, 1
      %p273 = por %p271, %p272
      %p275 = scmp.ne.s32.totalorder %s260, %s274
      %p276 = scmp.eq.s32.totalorder %s40, 0
      %p277 = por %p275, %p276
      %s279 = sadd.s32 %s278, 1
      %p282 = scmp.eq.s32.totalorder %s34, 1
      %p283 = scmp.ne.s32.totalorder %s278, %s280
      %p284 = scmp.eq.s32.totalorder %s34, 0
      %p285 = por %p283, %p284
      %p286 = scmp.ne.s32.totalorder %s278, %s280
      %p287 = scmp.eq.s32.totalorder %s39, 1
      %p288 = por %p286, %p287
      %p289 = scmp.ne.s32.totalorder %s280, %s281
      %p290 = scmp.eq.s32.totalorder %s39, 0
      %p291 = por %p289, %p290
      %p292 = scmp.ne.s32.totalorder %s280, %s281
      %p293 = scmp.eq.s32.totalorder %s40, 1
      %p294 = por %p292, %p293
      %p296 = scmp.ne.s32.totalorder %s281, %s295
      %p297 = scmp.eq.s32.totalorder %s40, 0
      %p298 = por %p296, %p297
      %s300 = sadd.s32 %s299, 1
      %p303 = scmp.eq.s32.totalorder %s34, 1
      %p304 = scmp.ne.s32.totalorder %s299, %s301
      %p305 = scmp.eq.s32.totalorder %s34, 0
      %p306 = por %p304, %p305
      %p307 = scmp.ne.s32.totalorder %s299, %s301
      %p308 = scmp.eq.s32.totalorder %s39, 1
      %p309 = por %p307, %p308
      %p310 = scmp.ne.s32.totalorder %s301, %s302
      %p311 = scmp.eq.s32.totalorder %s39, 0
      %p312 = por %p310, %p311
      %p313 = scmp.ne.s32.totalorder %s301, %s302
      %p314 = scmp.eq.s32.totalorder %s40, 1
      %p315 = por %p313, %p314
      %p317 = scmp.ne.s32.totalorder %s302, %s316
      %p318 = scmp.eq.s32.totalorder %s40, 0
      %p319 = por %p317, %p318
      %s321 = sadd.s32 %s320, 1
      %p324 = scmp.eq.s32.totalorder %s34, 1
      %p325 = scmp.ne.s32.totalorder %s320, %s322
      %p326 = scmp.eq.s32.totalorder %s34, 0
      %p327 = por %p325, %p326
      %p328 = scmp.ne.s32.totalorder %s320, %s322
      %p329 = scmp.eq.s32.totalorder %s39, 1
      %p330 = por %p328, %p329
      %p331 = scmp.ne.s32.totalorder %s322, %s323
      %p332 = scmp.eq.s32.totalorder %s39, 0
      %p333 = por %p331, %p332
      %p334 = scmp.ne.s32.totalorder %s322, %s323
      %p335 = scmp.eq.s32.totalorder %s40, 1
      %p336 = por %p334, %p335
      %p338 = scmp.ne.s32.totalorder %s323, %s337
      %p339 = scmp.eq.s32.totalorder %s40, 0
      %p340 = por %p338, %p339
      %s342 = sadd.s32 %s341, 1
      %p345 = scmp.eq.s32.totalorder %s34, 1
      %p346 = scmp.ne.s32.totalorder %s341, %s343
      %p347 = scmp.eq.s32.totalorder %s34, 0
      %p348 = por %p346, %p347
      %p349 = scmp.ne.s32.totalorder %s341, %s343
      %p350 = scmp.eq.s32.totalorder %s39, 1
      %p351 = por %p349, %p350
      %p352 = scmp.ne.s32.totalorder %s343, %s344
      %p353 = scmp.eq.s32.totalorder %s39, 0
      %p354 = por %p352, %p353
      %p355 = scmp.ne.s32.totalorder %s343, %s344
      %p356 = scmp.eq.s32.totalorder %s40, 1
      %p357 = por %p355, %p356
      %p359 = scmp.ne.s32.totalorder %s344, %s358
      %p360 = scmp.eq.s32.totalorder %s40, 0
      %p361 = por %p359, %p360
      %s363 = sadd.s32 %s362, 1
      %p366 = scmp.eq.s32.totalorder %s34, 1
      %p367 = scmp.ne.s32.totalorder %s362, %s364
      %p368 = scmp.eq.s32.totalorder %s34, 0
      %p369 = por %p367, %p368
      %p370 = scmp.ne.s32.totalorder %s362, %s364
      %p371 = scmp.eq.s32.totalorder %s39, 1
      %p372 = por %p370, %p371
      %p373 = scmp.ne.s32.totalorder %s364, %s365
      %p374 = scmp.eq.s32.totalorder %s39, 0
      %p375 = por %p373, %p374
      %p376 = scmp.ne.s32.totalorder %s364, %s365
      %p377 = scmp.eq.s32.totalorder %s40, 1
      %p378 = por %p376, %p377
      %p380 = scmp.ne.s32.totalorder %s365, %s379
      %p381 = scmp.eq.s32.totalorder %s40, 0
      %p382 = por %p380, %p381
      %s384 = sadd.s32 %s383, 1
      %p387 = scmp.eq.s32.totalorder %s34, 1
      %p388 = scmp.ne.s32.totalorder %s383, %s385
      %p389 = scmp.eq.s32.totalorder %s34, 0
      %p390 = por %p388, %p389
      %p391 = scmp.ne.s32.totalorder %s383, %s385
      %p392 = scmp.eq.s32.totalorder %s39, 1
      %p393 = por %p391, %p392
      %p394 = scmp.ne.s32.totalorder %s385, %s386
      %p395 = scmp.eq.s32.totalorder %s39, 0
      %p396 = por %p394, %p395
      %p397 = scmp.ne.s32.totalorder %s385, %s386
      %p398 = scmp.eq.s32.totalorder %s40, 1
      %p399 = por %p397, %p398
      %p401 = scmp.ne.s32.totalorder %s386, %s400
      %p402 = scmp.eq.s32.totalorder %s40, 0
      %p403 = por %p401, %p402
      %s405 = sadd.s32 %s404, 1
      %p408 = scmp.eq.s32.totalorder %s34, 1
      %p409 = scmp.ne.s32.totalorder %s404, %s406
      %p410 = scmp.eq.s32.totalorder %s34, 0
      %p411 = por %p409, %p410
      %p412 = scmp.ne.s32.totalorder %s404, %s406
      %p413 = scmp.eq.s32.totalorder %s39, 1
      %p414 = por %p412, %p413
      %p415 = scmp.ne.s32.totalorder %s406, %s407
      %p416 = scmp.eq.s32.totalorder %s39, 0
      %p417 = por %p415, %p416
      %p418 = scmp.ne.s32.totalorder %s406, %s407
      %p419 = scmp.eq.s32.totalorder %s40, 1
      %p420 = por %p418, %p419
      %p422 = scmp.ne.s32.totalorder %s407, %s421
      %p423 = scmp.eq.s32.totalorder %s40, 0
      %p424 = por %p422, %p423
      %s425 = ssub.s32 %s34, %s41
      %p426 = scmp.eq.s32.totalorder %s425, 0
      %s428 = sadd.s32 %s427, 1
      %s429 = scalar_select %p426, %s427, %s428
      %p432 = pneg %p426
      %p433 = scmp.eq.s32.totalorder %s34, 1
      %p434 = por %p432, %p433
      %p435 = scmp.ne.s32.totalorder %s427, %s430
      %p436 = scmp.eq.s32.totalorder %s34, 0
      %p437 = por %p435, %p436
      %p438 = scmp.ne.s32.totalorder %s427, %s430
      %p439 = scmp.eq.s32.totalorder %s39, 1
      %p440 = por %p438, %p439
      %p441 = scmp.ne.s32.totalorder %s430, %s431
      %p442 = scmp.eq.s32.totalorder %s39, 0
      %p443 = por %p441, %p442
      %p444 = scmp.ne.s32.totalorder %s430, %s431
      %p445 = scmp.eq.s32.totalorder %s40, 1
      %p446 = por %p444, %p445
      %p448 = scmp.ne.s32.totalorder %s431, %s447
      %p449 = scmp.eq.s32.totalorder %s40, 0
      %p450 = por %p448, %p449
      %p451 = scmp.le.s32.totalorder 1, %s34
      %p452 = scmp.lt.s32.totalorder %s34, 3
      %p453 = pnand %p451, %p452
      %p454 = pneg %p453
      // Predicated region
      $region9: #{tpu_custom_call.1} parent=5 // pred_check
        _
      $region10: #{tpu_custom_call.1} parent=5 // pred_check_branch
        %456 = sbr.rel (%p453) target = $region12
      $region11: #{tpu_custom_call.1} parent=5 // pred_region
        %s457 = ssub.s32 %s34, 1
        // Predicated region
        $region13: #{tpu_custom_call.1} parent=11 // pred_check
          %p458 = pneg %p81
        $region14: #{tpu_custom_call.1} parent=11 // pred_check_branch
          %460 = sbr.rel (%p458) target = $region16
        $region15: #{tpu_custom_call.1} parent=11 // pred_region
          %s462 = ssub.s32 32, 32
          %463 = vsyncadd [#allocation6], %s462
          %s464 = sshll.u32 [#allocation5], 4
          %s465 = int_to_ptr.vmem [resolvable:$true] %s464
          %470 = dma.hbm_to_vmem [thread:$0]  %s1, 32, %s465, [#allocation6], 16, 16, 1
        $region16: #{tpu_custom_call.1} parent=11 // pred_fallthru
          _
        // Predicated region
        $region17: #{tpu_custom_call.1} parent=11 // pred_check
          %p471 = pneg %p102
        $region18: #{tpu_custom_call.1} parent=11 // pred_check_branch
          %473 = sbr.rel (%p471) target = $region20
        $region19: #{tpu_custom_call.1} parent=11 // pred_region
          %s475 = ssub.s32 5120, 5120
          %476 = vsyncadd [#allocation6], %s475
          %s477 = sshll.u32 [#allocation7], 4
          %s478 = int_to_ptr.vmem [resolvable:$true] %s477
          %483 = dma.hbm_to_vmem [thread:$0]  %s2, 5120, %s478, [#allocation6], 640, 640, 40
        $region20: #{tpu_custom_call.1} parent=11 // pred_fallthru
          _
        // Predicated region
        $region21: #{tpu_custom_call.1} parent=11 // pred_check
          %p484 = pneg %p123
        $region22: #{tpu_custom_call.1} parent=11 // pred_check_branch
          %486 = sbr.rel (%p484) target = $region24
        $region23: #{tpu_custom_call.1} parent=11 // pred_region
          %s488 = ssub.s32 160, 160
          %489 = vsyncadd [#allocation9], %s488
          %s490 = sshll.u32 [#allocation8], 4
          %s491 = int_to_ptr.vmem [resolvable:$true] %s490
          %496 = dma.hbm_to_vmem [thread:$0]  %s3, 160, %s491, [#allocation9], 80, 80, 5
        $region24: #{tpu_custom_call.1} parent=11 // pred_fallthru
          _
        // Predicated region
        $region25: #{tpu_custom_call.1} parent=11 // pred_check
          %p497 = pneg %p144
        $region26: #{tpu_custom_call.1} parent=11 // pred_check_branch
          %499 = sbr.rel (%p497) target = $region28
        $region27: #{tpu_custom_call.1} parent=11 // pred_region
          _
        $region28: #{tpu_custom_call.1} parent=11 // pred_fallthru
          _
        // Predicated region
        $region29: #{tpu_custom_call.1} parent=11 // pred_check
          %p500 = pneg %p165
        $region30: #{tpu_custom_call.1} parent=11 // pred_check_branch
          %502 = sbr.rel (%p500) target = $region32
        $region31: #{tpu_custom_call.1} parent=11 // pred_region
          %s504 = ssub.s32 32, 32
          %505 = vsyncadd [#allocation9], %s504
          %s506 = sshll.u32 [#allocation10], 4
          %s507 = int_to_ptr.vmem [resolvable:$true] %s506
          %512 = dma.hbm_to_vmem [thread:$0]  %s5, 32, %s507, [#allocation9], 16, 16, 1
        $region32: #{tpu_custom_call.1} parent=11 // pred_fallthru
          _
        // Predicated region
        $region33: #{tpu_custom_call.1} parent=11 // pred_check
          %p513 = pneg %p186
        $region34: #{tpu_custom_call.1} parent=11 // pred_check_branch
          %515 = sbr.rel (%p513) target = $region36
        $region35: #{tpu_custom_call.1} parent=11 // pred_region
          %s517 = ssub.s32 32, 32
          %518 = vsyncadd [#allocation12], %s517
          %s519 = sshll.u32 [#allocation11], 4
          %s520 = int_to_ptr.vmem [resolvable:$true] %s519
          %525 = dma.hbm_to_vmem [thread:$0]  %s6, 32, %s520, [#allocation12], 16, 16, 1
        $region36: #{tpu_custom_call.1} parent=11 // pred_fallthru
          _
        // Predicated region
        $region37: #{tpu_custom_call.1} parent=11 // pred_check
          %p526 = pneg %p207
        $region38: #{tpu_custom_call.1} parent=11 // pred_check_branch
          %528 = sbr.rel (%p526) target = $region40
        $region39: #{tpu_custom_call.1} parent=11 // pred_region
          _
        $region40: #{tpu_custom_call.1} parent=11 // pred_fallthru
          _
        // Predicated region
        $region41: #{tpu_custom_call.1} parent=11 // pred_check
          %p529 = pneg %p228
        $region42: #{tpu_custom_call.1} parent=11 // pred_check_branch
          %531 = sbr.rel (%p529) target = $region44
        $region43: #{tpu_custom_call.1} parent=11 // pred_region
          %s533 = ssub.s32 32, 32
          %534 = vsyncadd [#allocation12], %s533
          %s535 = sshll.u32 [#allocation13], 4
          %s536 = int_to_ptr.vmem [resolvable:$true] %s535
          %541 = dma.hbm_to_vmem [thread:$0]  %s8, 32, %s536, [#allocation12], 16, 16, 1
        $region44: #{tpu_custom_call.1} parent=11 // pred_fallthru
          _
        // Predicated region
        $region45: #{tpu_custom_call.1} parent=11 // pred_check
          %p542 = pneg %p249
        $region46: #{tpu_custom_call.1} parent=11 // pred_check_branch
          %544 = sbr.rel (%p542) target = $region48
        $region47: #{tpu_custom_call.1} parent=11 // pred_region
          _
        $region48: #{tpu_custom_call.1} parent=11 // pred_fallthru
          _
        // Predicated region
        $region49: #{tpu_custom_call.1} parent=11 // pred_check
          %p545 = pneg %p270
        $region50: #{tpu_custom_call.1} parent=11 // pred_check_branch
          %547 = sbr.rel (%p545) target = $region52
        $region51: #{tpu_custom_call.1} parent=11 // pred_region
          %s549 = ssub.s32 32, 32
          %550 = vsyncadd [#allocation15], %s549
          %s551 = sshll.u32 [#allocation14], 4
          %s552 = int_to_ptr.vmem [resolvable:$true] %s551
          %557 = dma.hbm_to_vmem [thread:$0]  %s10, 32, %s552, [#allocation15], 16, 16, 1
        $region52: #{tpu_custom_call.1} parent=11 // pred_fallthru
          _
        // Predicated region
        $region53: #{tpu_custom_call.1} parent=11 // pred_check
          %p558 = pneg %p291
        $region54: #{tpu_custom_call.1} parent=11 // pred_check_branch
          %560 = sbr.rel (%p558) target = $region56
        $region55: #{tpu_custom_call.1} parent=11 // pred_region
          _
        $region56: #{tpu_custom_call.1} parent=11 // pred_fallthru
          _
        // Predicated region
        $region57: #{tpu_custom_call.1} parent=11 // pred_check
          %p561 = pneg %p312
        $region58: #{tpu_custom_call.1} parent=11 // pred_check_branch
          %563 = sbr.rel (%p561) target = $region60
        $region59: #{tpu_custom_call.1} parent=11 // pred_region
          _
        $region60: #{tpu_custom_call.1} parent=11 // pred_fallthru
          _
        // Predicated region
        $region61: #{tpu_custom_call.1} parent=11 // pred_check
          %p564 = pneg %p333
        $region62: #{tpu_custom_call.1} parent=11 // pred_check_branch
          %566 = sbr.rel (%p564) target = $region64
        $region63: #{tpu_custom_call.1} parent=11 // pred_region
          _
        $region64: #{tpu_custom_call.1} parent=11 // pred_fallthru
          _
        // Predicated region
        $region65: #{tpu_custom_call.1} parent=11 // pred_check
          %p567 = pneg %p354
        $region66: #{tpu_custom_call.1} parent=11 // pred_check_branch
          %569 = sbr.rel (%p567) target = $region68
        $region67: #{tpu_custom_call.1} parent=11 // pred_region
          _
        $region68: #{tpu_custom_call.1} parent=11 // pred_fallthru
          _
        // Predicated region
        $region69: #{tpu_custom_call.1} parent=11 // pred_check
          %p570 = pneg %p375
        $region70: #{tpu_custom_call.1} parent=11 // pred_check_branch
          %572 = sbr.rel (%p570) target = $region72
        $region71: #{tpu_custom_call.1} parent=11 // pred_region
          _
        $region72: #{tpu_custom_call.1} parent=11 // pred_fallthru
          _
        // Predicated region
        $region73: #{tpu_custom_call.1} parent=11 // pred_check
          %p573 = pneg %p396
        $region74: #{tpu_custom_call.1} parent=11 // pred_check_branch
          %575 = sbr.rel (%p573) target = $region76
        $region75: #{tpu_custom_call.1} parent=11 // pred_region
          _
        $region76: #{tpu_custom_call.1} parent=11 // pred_fallthru
          _
        // Predicated region
        $region77: #{tpu_custom_call.1} parent=11 // pred_check
          %p576 = pneg %p417
        $region78: #{tpu_custom_call.1} parent=11 // pred_check_branch
          %578 = sbr.rel (%p576) target = $region80
        $region79: #{tpu_custom_call.1} parent=11 // pred_region
          _
        $region80: #{tpu_custom_call.1} parent=11 // pred_fallthru
          _
      $region12: #{tpu_custom_call.1} parent=5 // pred_fallthru
        _
      %p579 = scmp.lt.s32.totalorder %s34, 2
      // Predicated region
      $region81: #{tpu_custom_call.1} parent=5 // pred_check
        %p580 = pneg %p579
      $region82: #{tpu_custom_call.1} parent=5 // pred_check_branch
        %582 = sbr.rel (%p580) target = $region84
      $region83: #{tpu_custom_call.1} parent=5 // pred_region
        // Predicated region
        $region85: #{tpu_custom_call.1} parent=83 // pred_check
          %p583 = pneg %p54
        $region86: #{tpu_custom_call.1} parent=83 // pred_check_branch
          %585 = sbr.rel (%p583) target = $region88
        $region87: #{tpu_custom_call.1} parent=83 // pred_region
          %s586 = sand.u32 %s44, 1
          %s587 = scalar_lea.sflag [#allocation3], %s586
          %s588 = sand.u32 %s44, 1
          %s589 = smul.addr %s588, 8
          %s590 = scalar_lea.vmem [#allocation2], %s589
          %s592 = ssub.s32 128, 128
          %593 = vsyncadd %s587, %s592
          %s594 = smul.addr %s34, 128
          %s595 = scalar_lea.hbm %s0, %s594
          %s597 = sshll.u32 %s590, 4
          %s598 = int_to_ptr.vmem [resolvable:$true] %s597
          %600 = dma.hbm_to_vmem [thread:$0]  %s595, 128, %s598, %s587
        $region88: #{tpu_custom_call.1} parent=83 // pred_fallthru
          _
      $region84: #{tpu_custom_call.1} parent=5 // pred_fallthru
        _
      %p601 = scmp.le.s32.totalorder 1, %s34
      %p602 = scmp.lt.s32.totalorder %s34, 3
      %p603 = pnand %p601, %p602
      %p604 = pneg %p603
      // Predicated region
      $region89: #{tpu_custom_call.1} parent=5 // pred_check
        _
      $region90: #{tpu_custom_call.1} parent=5 // pred_check_branch
        %606 = sbr.rel (%p603) target = $region92
      $region91: #{tpu_custom_call.1} parent=5 // pred_region
        %s607 = ssub.s32 %s34, 1
        %s608 = sand.u32 %s47, 1
        %s609 = scalar_lea.sflag [#allocation3], %s608
        %s610 = sand.u32 %s47, 1
        %s611 = smul.addr %s610, 8
        %s612 = scalar_lea.vmem [#allocation2], %s611
        // Predicated region
        $region93: #{tpu_custom_call.1} parent=91 // pred_check
          %p613 = pneg %p60
        $region94: #{tpu_custom_call.1} parent=91 // pred_check_branch
          %615 = sbr.rel (%p613) target = $region96
        $region95: #{tpu_custom_call.1} parent=91 // pred_region
          %616 = dma.done %s609, 128
        $region96: #{tpu_custom_call.1} parent=91 // pred_fallthru
          _
        // Predicated region
        $region97: #{tpu_custom_call.1} parent=91 // pred_check
          %p617 = pneg %p81
        $region98: #{tpu_custom_call.1} parent=91 // pred_check_branch
          %619 = sbr.rel (%p617) target = $region100
        $region99: #{tpu_custom_call.1} parent=91 // pred_region
          %620 = dma.done [#allocation6], 32
        $region100: #{tpu_custom_call.1} parent=91 // pred_fallthru
          _
        // Predicated region
        $region101: #{tpu_custom_call.1} parent=91 // pred_check
          %p621 = pneg %p102
        $region102: #{tpu_custom_call.1} parent=91 // pred_check_branch
          %623 = sbr.rel (%p621) target = $region104
        $region103: #{tpu_custom_call.1} parent=91 // pred_region
          %624 = dma.done [#allocation6], 5120
        $region104: #{tpu_custom_call.1} parent=91 // pred_fallthru
          _
        // Predicated region
        $region105: #{tpu_custom_call.1} parent=91 // pred_check
          %p625 = pneg %p123
        $region106: #{tpu_custom_call.1} parent=91 // pred_check_branch
          %627 = sbr.rel (%p625) target = $region108
        $region107: #{tpu_custom_call.1} parent=91 // pred_region
          %628 = dma.done [#allocation9], 160
        $region108: #{tpu_custom_call.1} parent=91 // pred_fallthru
          _
        // Predicated region
        $region109: #{tpu_custom_call.1} parent=91 // pred_check
          %p629 = pneg %p165
        $region110: #{tpu_custom_call.1} parent=91 // pred_check_branch
          %631 = sbr.rel (%p629) target = $region112
        $region111: #{tpu_custom_call.1} parent=91 // pred_region
          %632 = dma.done [#allocation9], 32
        $region112: #{tpu_custom_call.1} parent=91 // pred_fallthru
          _
        // Predicated region
        $region113: #{tpu_custom_call.1} parent=91 // pred_check
          %p633 = pneg %p186
        $region114: #{tpu_custom_call.1} parent=91 // pred_check_branch
          %635 = sbr.rel (%p633) target = $region116
        $region115: #{tpu_custom_call.1} parent=91 // pred_region
          %636 = dma.done [#allocation12], 32
        $region116: #{tpu_custom_call.1} parent=91 // pred_fallthru
          _
        // Predicated region
        $region117: #{tpu_custom_call.1} parent=91 // pred_check
          %p637 = pneg %p228
        $region118: #{tpu_custom_call.1} parent=91 // pred_check_branch
          %639 = sbr.rel (%p637) target = $region120
        $region119: #{tpu_custom_call.1} parent=91 // pred_region
          %640 = dma.done [#allocation12], 32
        $region120: #{tpu_custom_call.1} parent=91 // pred_fallthru
          _
        // Predicated region
        $region121: #{tpu_custom_call.1} parent=91 // pred_check
          %p641 = pneg %p270
        $region122: #{tpu_custom_call.1} parent=91 // pred_check_branch
          %643 = sbr.rel (%p641) target = $region124
        $region123: #{tpu_custom_call.1} parent=91 // pred_region
          %644 = dma.done [#allocation15], 32
        $region124: #{tpu_custom_call.1} parent=91 // pred_fallthru
          _
        %s645 = sand.u32 %s47, 1
        %s646 = scalar_lea.sflag [#allocation3], %s645
        %s647 = sand.u32 %s47, 1
        %s648 = smul.addr %s647, 8
        %s649 = scalar_lea.vmem [#allocation2], %s648
        %p650 = pneg %p60
        %p651 = pneg %p57
        %p652 = pneg %p81
        %p653 = pneg %p78
        %p654 = pneg %p102
        %p655 = pneg %p99
        %p656 = pneg %p123
        %p657 = pneg %p120
        %p658 = pneg %p144
        %p659 = pneg %p141
        %p660 = pneg %p165
        %p661 = pneg %p162
        %p662 = pneg %p186
        %p663 = pneg %p183
        %p664 = pneg %p207
        %p665 = pneg %p204
        %p666 = pneg %p228
        %p667 = pneg %p225
        %p668 = pneg %p249
        %p669 = pneg %p246
        %p670 = pneg %p270
        %p671 = pneg %p267
        %p672 = pneg %p291
        %p673 = pneg %p288
        %p674 = pneg %p312
        %p675 = pneg %p309
        %p676 = pneg %p333
        %p677 = pneg %p330
        %p678 = pneg %p354
        %p679 = pneg %p351
        %p680 = pneg %p375
        %p681 = pneg %p372
        %p682 = pneg %p396
        %p683 = pneg %p393
        %p684 = pneg %p417
        %p685 = pneg %p414
        %p686 = pneg %p443
        %p687 = pneg %p440
        %s688 = sand.u32 %s430, 1
        %s689 = scalar_lea.sflag [#allocation4], %s688
        %s690 = sand.u32 %s430, 1
        %s691 = smul.addr %s690, 8
        %s692 = scalar_lea.vmem [#allocation16], %s691
        %v693 = vld [vmem:[%s612] sm:$0xff]
        %v694 = vld [vmem:[%s13] sm:$0xff]
        %v695 = vld [vmem:[%s14] sm:$0xff]
        %v696 = vld [vmem:[%s15] sm:$0xff]
        %v697 = vld [vmem:[%s17] sm:$0xff]
        %v698 = vld [vmem:[%s17 + $0x8] sm:$0xff]
        %v699 = vld [vmem:[%s17 + $0x10] sm:$0xff]
        %v700 = vld [vmem:[%s17 + $0x18] sm:$0xff]
        %v701 = vld [vmem:[#allocation5] sm:$0x1]
        %v702 = vmul.f32 %v693, %v693
        %vm703 = vcmask 261120
        %v704 = vsel %vm703, %v702, 0.0
        %705 = vadd.xlane.f32.xlu0 %v704
        %v706 = vpop.xlane.xlu0 %705
        %v707 = vrsqrt.pop %v706
        %v708 = vmul.f32 %v706, %v707
        %vm709 = vcmp.eq.f32.partialorder %v706, inf
        %v710 = vsel %vm709, %v706, %v708
        %vm711 = vcmp.eq.f32.partialorder %v706, 0.0
        %v712 = vand.u32 %v706, 2147483648
        %v713 = vsel %vm711, %v712, %v710
        %v714 = vadd.f32 %v713, 1e-06
        %v715 = vrcp.pop %v714
        %v717 = vlaneseq
        %v718 = vshrl.u32 %v717, 7
        %v719 = vsub.s32 0, %v718
        %v720 = vrot.slane %v701, %v719
        %v722 = vmul.f32 %v720, %v715
        %v723 = vmul.f32 %v693, %v722
        %v724 = vld [vmem:[#allocation7] sm:$0xff]
        %v725 = vld [vmem:[#allocation7 + $0x8] sm:$0xff]
        %v726 = vld [vmem:[#allocation7 + $0x10] sm:$0xff]
        %v727 = vld [vmem:[#allocation7 + $0x18] sm:$0xff]
        %v728 = vld [vmem:[#allocation7 + $0x20] sm:$0xff]
        %v729 = vld [vmem:[#allocation7 + $0x28] sm:$0xff]
        %v730 = vld [vmem:[#allocation7 + $0x30] sm:$0xff]
        %v731 = vld [vmem:[#allocation7 + $0x38] sm:$0xff]
        %v732 = vld [vmem:[#allocation7 + $0x40] sm:$0xff]
        %v733 = vld [vmem:[#allocation7 + $0x48] sm:$0xff]
        %v734 = vld [vmem:[#allocation7 + $0x50] sm:$0xff]
        %v735 = vld [vmem:[#allocation7 + $0x58] sm:$0xff]
        %v736 = vld [vmem:[#allocation7 + $0x60] sm:$0xff]
        %v737 = vld [vmem:[#allocation7 + $0x68] sm:$0xff]
        %v738 = vld [vmem:[#allocation7 + $0x70] sm:$0xff]
        %v739 = vld [vmem:[#allocation7 + $0x78] sm:$0xff]
        %v740 = vld [vmem:[#allocation7 + $0x80] sm:$0xff]
        %v741 = vld [vmem:[#allocation7 + $0x88] sm:$0xff]
        %v742 = vld [vmem:[#allocation7 + $0x90] sm:$0xff]
        %v743 = vld [vmem:[#allocation7 + $0x98] sm:$0xff]
        %v744 = vld [vmem:[#allocation8] sm:$0x1f]
        %v746 = vlaneseq
        %v747 = vshrl.u32 %v746, 7
        %v748 = vsub.s32 0, %v747
        %v749 = vrot.slane %v744, %v748
        %v750 = vlaneseq
        %v751 = vshrl.u32 %v750, 7
        %v752 = vsub.s32 1, %v751
        %v753 = vrot.slane %v744, %v752
        %v754 = vlaneseq
        %v755 = vshrl.u32 %v754, 7
        %v756 = vsub.s32 2, %v755
        %v757 = vrot.slane %v744, %v756
        %v758 = vlaneseq
        %v759 = vshrl.u32 %v758, 7
        %v760 = vsub.s32 3, %v759
        %v761 = vrot.slane %v744, %v760
        %v762 = vlaneseq
        %v763 = vshrl.u32 %v762, 7
        %v764 = vsub.s32 4, %v763
        %v765 = vrot.slane %v744, %v764
        %v772 = vsel %vm703, %v723, 0
        %774 = vmatprep.subr.mxu0 0.0
        %775 = vmatpush1.msra.mxu0 0.0
        %776 = vmatprep.subr.mxu0 0.0
        %777 = vmatpush1.msra.mxu0 0.0
        %778 = vmatprep.subr.mxu0 0.0
        %779 = vmatpush1.msra.mxu0 0.0
        %780 = vmatprep.subr.mxu0 0.0
        %781 = vmatpush1.msra.mxu0 0.0
        %782 = vmatprep.subr.mxu0 0.0
        %783 = vmatpush1.msra.mxu0 0.0
        %784 = vmatprep.subr.mxu0 0.0
        %785 = vmatpush1.msra.mxu0 0.0
        %786 = vmatprep.subr.mxu0 0.0
        %787 = vmatpush1.msra.mxu0 0.0
        %788 = vmatprep.subr.mxu0 0.0
        %789 = vmatpush1.msra.mxu0 0.0
        %790 = vmatprep.subr.mxu0 0.0
        %791 = vmatpush1.msra.mxu0 0.0
        %792 = vmatprep.subr.mxu0 0.0
        %793 = vmatpush1.msra.mxu0 0.0
        %794 = vmatprep.subr.mxu0 0.0
        %795 = vmatpush1.msra.mxu0 0.0
        %796 = vmatprep.subr.mxu0 0.0
        %797 = vmatpush1.msra.mxu0 0.0
        %798 = vmatprep.subr.mxu0 %v740
        %799 = vmatpush1.msra.mxu0 %v739
        %800 = vmatprep.subr.mxu0 %v735
        %801 = vmatpush1.msra.mxu0 %v734
        %802 = vmatprep.subr.mxu0 %v730
        %803 = vmatpush1.msra.mxu0 %v729
        %804 = vmatprep.subr.mxu0 %v725
        %805 = vmatpush1.msra.mxu0 %v724
        %806 = vmatprep.subr.mxu0 0.0
        %807 = vmatpush2.msra.mxu0 0.0
        %808 = vmatprep.subr.mxu0 0.0
        %809 = vmatpush2.msra.mxu0 0.0
        %810 = vmatprep.subr.mxu0 0.0
        %811 = vmatpush2.msra.mxu0 0.0
        %812 = vmatprep.subr.mxu0 0.0
        %813 = vmatpush2.msra.mxu0 0.0
        %814 = vmatprep.subr.mxu0 0.0
        %815 = vmatpush2.msra.mxu0 0.0
        %816 = vmatprep.subr.mxu0 0.0
        %817 = vmatpush2.msra.mxu0 0.0
        %818 = vmatprep.subr.mxu0 0.0
        %819 = vmatpush2.msra.mxu0 0.0
        %820 = vmatprep.subr.mxu0 0.0
        %821 = vmatpush2.msra.mxu0 0.0
        %822 = vmatprep.subr.mxu0 0.0
        %823 = vmatpush2.msra.mxu0 0.0
        %824 = vmatprep.subr.mxu0 0.0
        %825 = vmatpush2.msra.mxu0 0.0
        %826 = vmatprep.subr.mxu0 0.0
        %827 = vmatpush2.msra.mxu0 0.0
        %828 = vmatprep.subr.mxu0 0.0
        %829 = vmatpush2.msra.mxu0 0.0
        %830 = vmatprep.subr.mxu0 0.0
        %831 = vmatpush2.msra.mxu0 0.0
        %832 = vmatprep.subr.mxu0 0.0
        %833 = vmatpush2.msra.mxu0 0.0
        %834 = vmatprep.subr.mxu0 0.0
        %835 = vmatpush2.msra.mxu0 0.0
        %836 = vmatprep.subr.mxu0 0.0
        %837 = vmatpush2.msra.mxu0 0.0
        %838 = vmatprep.mubr.f32.mxu0 0.0
        %839 = vmatmul.mubr.f32.gmra.mxu0 %v772
        %v840 = vpop.f32.mrf.mxu0
        %v841 = vadd.f32 %v749, %v840
        %v842 = vpop.f32.mrf.mxu0
        %v843 = vadd.f32 %v753, %v842
        %844 = vdwg.mxu0
        %845 = vmatprep.subr.mxu0 0.0
        %846 = vmatpush1.msra.mxu0 0.0
        %847 = vmatprep.subr.mxu0 0.0
        %848 = vmatpush1.msra.mxu0 0.0
        %849 = vmatprep.subr.mxu0 0.0
        %850 = vmatpush1.msra.mxu0 0.0
        %851 = vmatprep.subr.mxu0 0.0
        %852 = vmatpush1.msra.mxu0 0.0
        %853 = vmatprep.subr.mxu0 0.0
        %854 = vmatpush1.msra.mxu0 0.0
        %855 = vmatprep.subr.mxu0 0.0
        %856 = vmatpush1.msra.mxu0 0.0
        %857 = vmatprep.subr.mxu0 0.0
        %858 = vmatpush1.msra.mxu0 0.0
        %859 = vmatprep.subr.mxu0 0.0
        %860 = vmatpush1.msra.mxu0 0.0
        %861 = vmatprep.subr.mxu0 0.0
        %862 = vmatpush1.msra.mxu0 0.0
        %863 = vmatprep.subr.mxu0 0.0
        %864 = vmatpush1.msra.mxu0 0.0
        %865 = vmatprep.subr.mxu0 0.0
        %866 = vmatpush1.msra.mxu0 0.0
        %867 = vmatprep.subr.mxu0 0.0
        %868 = vmatpush1.msra.mxu0 0.0
        %869 = vmatprep.subr.mxu0 %v742
        %870 = vmatpush1.msra.mxu0 %v741
        %871 = vmatprep.subr.mxu0 %v737
        %872 = vmatpush1.msra.mxu0 %v736
        %873 = vmatprep.subr.mxu0 %v732
        %874 = vmatpush1.msra.mxu0 %v731
        %875 = vmatprep.subr.mxu0 %v727
        %876 = vmatpush1.msra.mxu0 %v726
        %877 = vmatprep.subr.mxu0 0.0
        %878 = vmatpush2.msra.mxu0 0.0
        %879 = vmatprep.subr.mxu0 0.0
        %880 = vmatpush2.msra.mxu0 0.0
        %881 = vmatprep.subr.mxu0 0.0
        %882 = vmatpush2.msra.mxu0 0.0
        %883 = vmatprep.subr.mxu0 0.0
        %884 = vmatpush2.msra.mxu0 0.0
        %885 = vmatprep.subr.mxu0 0.0
        %886 = vmatpush2.msra.mxu0 0.0
        %887 = vmatprep.subr.mxu0 0.0
        %888 = vmatpush2.msra.mxu0 0.0
        %889 = vmatprep.subr.mxu0 0.0
        %890 = vmatpush2.msra.mxu0 0.0
        %891 = vmatprep.subr.mxu0 0.0
        %892 = vmatpush2.msra.mxu0 0.0
        %893 = vmatprep.subr.mxu0 0.0
        %894 = vmatpush2.msra.mxu0 0.0
        %895 = vmatprep.subr.mxu0 0.0
        %896 = vmatpush2.msra.mxu0 0.0
        %897 = vmatprep.subr.mxu0 0.0
        %898 = vmatpush2.msra.mxu0 0.0
        %899 = vmatprep.subr.mxu0 0.0
        %900 = vmatpush2.msra.mxu0 0.0
        %901 = vmatprep.subr.mxu0 0.0
        %902 = vmatpush2.msra.mxu0 0.0
        %903 = vmatprep.subr.mxu0 0.0
        %904 = vmatpush2.msra.mxu0 0.0
        %905 = vmatprep.subr.mxu0 0.0
        %906 = vmatpush2.msra.mxu0 0.0
        %907 = vmatprep.subr.mxu0 0.0
        %908 = vmatpush2.msra.mxu0 0.0
        %909 = vmatprep.mubr.f32.mxu0 0.0
        %910 = vmatmul.mubr.f32.gmra.mxu0 %v772
        %v911 = vpop.f32.mrf.mxu0
        %v912 = vadd.f32 %v757, %v911
        %v913 = vpop.f32.mrf.mxu0
        %v914 = vadd.f32 %v761, %v913
        %915 = vdwg.mxu0
        %916 = vmatprep.subr.mxu0 0.0
        %917 = vmatpush1.msra.mxu0 0.0
        %918 = vmatprep.subr.mxu0 0.0
        %919 = vmatpush1.msra.mxu0 0.0
        %920 = vmatprep.subr.mxu0 0.0
        %921 = vmatpush1.msra.mxu0 0.0
        %922 = vmatprep.subr.mxu0 0.0
        %923 = vmatpush1.msra.mxu0 0.0
        %924 = vmatprep.subr.mxu0 0.0
        %925 = vmatpush1.msra.mxu0 0.0
        %926 = vmatprep.subr.mxu0 0.0
        %927 = vmatpush1.msra.mxu0 0.0
        %928 = vmatprep.subr.mxu0 0.0
        %929 = vmatpush1.msra.mxu0 0.0
        %930 = vmatprep.subr.mxu0 0.0
        %931 = vmatpush1.msra.mxu0 0.0
        %932 = vmatprep.subr.mxu0 0.0
        %933 = vmatpush1.msra.mxu0 0.0
        %934 = vmatprep.subr.mxu0 0.0
        %935 = vmatpush1.msra.mxu0 0.0
        %936 = vmatprep.subr.mxu0 0.0
        %937 = vmatpush1.msra.mxu0 0.0
        %938 = vmatprep.subr.mxu0 0.0
        %939 = vmatpush1.msra.mxu0 0.0
        %940 = vmatprep.subr.mxu0 0.0
        %941 = vmatpush1.msra.mxu0 %v743
        %942 = vmatprep.subr.mxu0 0.0
        %943 = vmatpush1.msra.mxu0 %v738
        %944 = vmatprep.subr.mxu0 0.0
        %945 = vmatpush1.msra.mxu0 %v733
        %946 = vmatprep.subr.mxu0 0.0
        %947 = vmatpush1.msra.mxu0 %v728
        %948 = vmatprep.subr.mxu0 0.0
        %949 = vmatpush2.msra.mxu0 0.0
        %950 = vmatprep.subr.mxu0 0.0
        %951 = vmatpush2.msra.mxu0 0.0
        %952 = vmatprep.subr.mxu0 0.0
        %953 = vmatpush2.msra.mxu0 0.0
        %954 = vmatprep.subr.mxu0 0.0
        %955 = vmatpush2.msra.mxu0 0.0
        %956 = vmatprep.subr.mxu0 0.0
        %957 = vmatpush2.msra.mxu0 0.0
        %958 = vmatprep.subr.mxu0 0.0
        %959 = vmatpush2.msra.mxu0 0.0
        %960 = vmatprep.subr.mxu0 0.0
        %961 = vmatpush2.msra.mxu0 0.0
        %962 = vmatprep.subr.mxu0 0.0
        %963 = vmatpush2.msra.mxu0 0.0
        %964 = vmatprep.subr.mxu0 0.0
        %965 = vmatpush2.msra.mxu0 0.0
        %966 = vmatprep.subr.mxu0 0.0
        %967 = vmatpush2.msra.mxu0 0.0
        %968 = vmatprep.subr.mxu0 0.0
        %969 = vmatpush2.msra.mxu0 0.0
        %970 = vmatprep.subr.mxu0 0.0
        %971 = vmatpush2.msra.mxu0 0.0
        %972 = vmatprep.subr.mxu0 0.0
        %973 = vmatpush2.msra.mxu0 0.0
        %974 = vmatprep.subr.mxu0 0.0
        %975 = vmatpush2.msra.mxu0 0.0
        %976 = vmatprep.subr.mxu0 0.0
        %977 = vmatpush2.msra.mxu0 0.0
        %978 = vmatprep.subr.mxu0 0.0
        %979 = vmatpush2.msra.mxu0 0.0
        %980 = vmatprep.mubr.f32.mxu0 0.0
        %981 = vmatmul.mubr.f32.gmra.mxu0 %v772
        %v982 = vpop.f32.mrf.mxu0
        %v983 = vadd.f32 %v765, %v982
        %v984 = vpop.f32.mrf.mxu0
        %985 = vdwg.mxu0
        %v986 = vmul.f32 %v841, %v694
        %v987 = vmul.f32 %v914, %v695
        %v988 = vadd.f32 %v986, %v987
        %v989 = vmul.f32 %v843, %v694
        %v990 = vmul.f32 %v983, %v695
        %v991 = vadd.f32 %v989, %v990
        %v992 = vld [vmem:[%s16] sm:$0x1]
        %v994 = vlaneseq
        %v995 = vshrl.u32 %v994, 7
        %v996 = vsub.s32 0, %v995
        %v997 = vrot.slane %v992, %v996
        %v999 = vmul.f32 %v991, %v997
        %s1000 = scalar_lea.vmem %s16, 1
        %v1001 = vld [vmem:[%s1000] sm:$0x1]
        %v1003 = vlaneseq
        %v1004 = vshrl.u32 %v1003, 7
        %v1005 = vsub.s32 0, %v1004
        %v1006 = vrot.slane %v1001, %v1005
        %v1008 = vmul.f32 %v991, %v1006
        %s1009 = scalar_lea.vmem %s16, 2
        %v1010 = vld [vmem:[%s1009] sm:$0x1]
        %v1012 = vlaneseq
        %v1013 = vshrl.u32 %v1012, 7
        %v1014 = vsub.s32 0, %v1013
        %v1015 = vrot.slane %v1010, %v1014
        %v1017 = vmul.f32 %v991, %v1015
        %s1018 = scalar_lea.vmem %s16, 3
        %v1019 = vld [vmem:[%s1018] sm:$0x1]
        %v1021 = vlaneseq
        %v1022 = vshrl.u32 %v1021, 7
        %v1023 = vsub.s32 0, %v1022
        %v1024 = vrot.slane %v1019, %v1023
        %v1026 = vmul.f32 %v991, %v1024
        %v1027 = vmul.f32 %v912, %v997
        %v1028 = vmul.f32 %v912, %v1006
        %v1029 = vmul.f32 %v912, %v1015
        %v1030 = vmul.f32 %v912, %v1024
        %v1032 = vsel %vm703, %v988, 0
        %v1035 = vsel %vm703, %v999, 0
        %v1038 = vsel %vm703, %v1008, 0
        %v1041 = vsel %vm703, %v1017, 0
        %v1044 = vsel %vm703, %v1026, 0
        %1046 = vmatprep.subr.mxu0 0.0
        %1047 = vmatpush1.xpose.msra.mxu0 0.0
        %1048 = vmatprep.subr.mxu0 0.0
        %1049 = vmatpush1.xpose.msra.mxu0 0.0
        %1050 = vmatprep.subr.mxu0 0.0
        %1051 = vmatpush1.xpose.msra.mxu0 0.0
        %1052 = vmatprep.subr.mxu0 0.0
        %1053 = vmatpush1.xpose.msra.mxu0 0.0
        %1054 = vmatprep.subr.mxu0 0.0
        %1055 = vmatpush1.xpose.msra.mxu0 0.0
        %1056 = vmatprep.subr.mxu0 0.0
        %1057 = vmatpush1.xpose.msra.mxu0 0.0
        %1058 = vmatprep.subr.mxu0 0.0
        %1059 = vmatpush1.xpose.msra.mxu0 0.0
        %1060 = vmatprep.subr.mxu0 0.0
        %1061 = vmatpush1.xpose.msra.mxu0 0.0
        %1062 = vmatprep.subr.mxu0 0.0
        %1063 = vmatpush1.xpose.msra.mxu0 0.0
        %1064 = vmatprep.subr.mxu0 0.0
        %1065 = vmatpush1.xpose.msra.mxu0 0.0
        %1066 = vmatprep.subr.mxu0 0.0
        %1067 = vmatpush1.xpose.msra.mxu0 0.0
        %1068 = vmatprep.subr.mxu0 0.0
        %1069 = vmatpush1.xpose.msra.mxu0 0.0
        %1070 = vmatprep.subr.mxu0 0.0
        %1071 = vmatpush1.xpose.msra.mxu0 %v1044
        %1072 = vmatprep.subr.mxu0 0.0
        %1073 = vmatpush1.xpose.msra.mxu0 %v1041
        %1074 = vmatprep.subr.mxu0 0.0
        %1075 = vmatpush1.xpose.msra.mxu0 %v1038
        %1076 = vmatprep.subr.mxu0 0.0
        %1077 = vmatpush1.xpose.msra.mxu0 %v1035
        %1078 = vmatprep.subr.mxu0 0.0
        %1079 = vmatpush2.xpose.msra.mxu0 0.0
        %1080 = vmatprep.subr.mxu0 0.0
        %1081 = vmatpush2.xpose.msra.mxu0 0.0
        %1082 = vmatprep.subr.mxu0 0.0
        %1083 = vmatpush2.xpose.msra.mxu0 0.0
        %1084 = vmatprep.subr.mxu0 0.0
        %1085 = vmatpush2.xpose.msra.mxu0 0.0
        %1086 = vmatprep.subr.mxu0 0.0
        %1087 = vmatpush2.xpose.msra.mxu0 0.0
        %1088 = vmatprep.subr.mxu0 0.0
        %1089 = vmatpush2.xpose.msra.mxu0 0.0
        %1090 = vmatprep.subr.mxu0 0.0
        %1091 = vmatpush2.xpose.msra.mxu0 0.0
        %1092 = vmatprep.subr.mxu0 0.0
        %1093 = vmatpush2.xpose.msra.mxu0 0.0
        %1094 = vmatprep.subr.mxu0 0.0
        %1095 = vmatpush2.xpose.msra.mxu0 0.0
        %1096 = vmatprep.subr.mxu0 0.0
        %1097 = vmatpush2.xpose.msra.mxu0 0.0
        %1098 = vmatprep.subr.mxu0 0.0
        %1099 = vmatpush2.xpose.msra.mxu0 0.0
        %1100 = vmatprep.subr.mxu0 0.0
        %1101 = vmatpush2.xpose.msra.mxu0 0.0
        %1102 = vmatprep.subr.mxu0 0.0
        %1103 = vmatpush2.xpose.msra.mxu0 0.0
        %1104 = vmatprep.subr.mxu0 0.0
        %1105 = vmatpush2.xpose.msra.mxu0 0.0
        %1106 = vmatprep.subr.mxu0 0.0
        %1107 = vmatpush2.xpose.msra.mxu0 0.0
        %1108 = vmatprep.subr.mxu0 0.0
        %1109 = vmatpush2.xpose.msra.mxu0 0.0
        %1110 = vmatprep.mubr.f32.mxu0 0.0
        %1111 = vmatmul.mubr.f32.gmra.mxu0 %v1032
        %v1112 = vpop.f32.mrf.mxu0
        %v1113 = vadd.f32 %v696, %v1112
        %v1114 = vpop.f32.mrf.mxu0
        %1115 = vdwg.mxu0
        %v1116 = vsel %vm703, %v1113, -inf
        %1117 = vmax.xlane.f32.xlu0 %v1116
        %v1118 = vpop.xlane.xlu0 %1117
        %v1119 = vsub.f32 %v1113, %v1118
        %v1120 = vmul.f32 %v1119, 1.442695
        %v1121 = vpow.pop %v1120
        %v1123 = vsel %vm703, %v1121, 0
        %1125 = vmatprep.subr.mxu0 0.0
        %1126 = vmatpush1.msra.mxu0 0.0
        %1127 = vmatprep.subr.mxu0 0.0
        %1128 = vmatpush1.msra.mxu0 0.0
        %1129 = vmatprep.subr.mxu0 0.0
        %1130 = vmatpush1.msra.mxu0 0.0
        %1131 = vmatprep.subr.mxu0 0.0
        %1132 = vmatpush1.msra.mxu0 0.0
        %1133 = vmatprep.subr.mxu0 0.0
        %1134 = vmatpush1.msra.mxu0 0.0
        %1135 = vmatprep.subr.mxu0 0.0
        %1136 = vmatpush1.msra.mxu0 0.0
        %1137 = vmatprep.subr.mxu0 0.0
        %1138 = vmatpush1.msra.mxu0 0.0
        %1139 = vmatprep.subr.mxu0 0.0
        %1140 = vmatpush1.msra.mxu0 0.0
        %1141 = vmatprep.subr.mxu0 0.0
        %1142 = vmatpush1.msra.mxu0 0.0
        %1143 = vmatprep.subr.mxu0 0.0
        %1144 = vmatpush1.msra.mxu0 0.0
        %1145 = vmatprep.subr.mxu0 0.0
        %1146 = vmatpush1.msra.mxu0 0.0
        %1147 = vmatprep.subr.mxu0 0.0
        %1148 = vmatpush1.msra.mxu0 0.0
        %1149 = vmatprep.subr.mxu0 0.0
        %1150 = vmatpush1.msra.mxu0 %v700
        %1151 = vmatprep.subr.mxu0 0.0
        %1152 = vmatpush1.msra.mxu0 %v699
        %1153 = vmatprep.subr.mxu0 0.0
        %1154 = vmatpush1.msra.mxu0 %v698
        %1155 = vmatprep.subr.mxu0 0.0
        %1156 = vmatpush1.msra.mxu0 %v697
        %1157 = vmatprep.subr.mxu0 0.0
        %1158 = vmatpush2.msra.mxu0 0.0
        %1159 = vmatprep.subr.mxu0 0.0
        %1160 = vmatpush2.msra.mxu0 0.0
        %1161 = vmatprep.subr.mxu0 0.0
        %1162 = vmatpush2.msra.mxu0 0.0
        %1163 = vmatprep.subr.mxu0 0.0
        %1164 = vmatpush2.msra.mxu0 0.0
        %1165 = vmatprep.subr.mxu0 0.0
        %1166 = vmatpush2.msra.mxu0 0.0
        %1167 = vmatprep.subr.mxu0 0.0
        %1168 = vmatpush2.msra.mxu0 0.0
        %1169 = vmatprep.subr.mxu0 0.0
        %1170 = vmatpush2.msra.mxu0 0.0
        %1171 = vmatprep.subr.mxu0 0.0
        %1172 = vmatpush2.msra.mxu0 0.0
        %1173 = vmatprep.subr.mxu0 0.0
        %1174 = vmatpush2.msra.mxu0 0.0
        %1175 = vmatprep.subr.mxu0 0.0
        %1176 = vmatpush2.msra.mxu0 0.0
        %1177 = vmatprep.subr.mxu0 0.0
        %1178 = vmatpush2.msra.mxu0 0.0
        %1179 = vmatprep.subr.mxu0 0.0
        %1180 = vmatpush2.msra.mxu0 0.0
        %1181 = vmatprep.subr.mxu0 0.0
        %1182 = vmatpush2.msra.mxu0 0.0
        %1183 = vmatprep.subr.mxu0 0.0
        %1184 = vmatpush2.msra.mxu0 0.0
        %1185 = vmatprep.subr.mxu0 0.0
        %1186 = vmatpush2.msra.mxu0 0.0
        %1187 = vmatprep.subr.mxu0 0.0
        %1188 = vmatpush2.msra.mxu0 0.0
        %1189 = vmatprep.mubr.f32.mxu0 0.0
        %1190 = vmatmul.mubr.f32.gmra.mxu0 %v1123
        %v1191 = vpop.f32.mrf.mxu0
        %v1192 = vadd.f32 0.0, %v1191
        %v1193 = vpop.f32.mrf.mxu0
        %1194 = vdwg.mxu0
        %1195 = vmatprep.subr.mxu0 0.0
        %1196 = vmatpush1.msra.mxu0 0.0
        %1197 = vmatprep.subr.mxu0 0.0
        %1198 = vmatpush1.msra.mxu0 0.0
        %1199 = vmatprep.subr.mxu0 0.0
        %1200 = vmatpush1.msra.mxu0 0.0
        %1201 = vmatprep.subr.mxu0 0.0
        %1202 = vmatpush1.msra.mxu0 0.0
        %1203 = vmatprep.subr.mxu0 0.0
        %1204 = vmatpush1.msra.mxu0 0.0
        %1205 = vmatprep.subr.mxu0 0.0
        %1206 = vmatpush1.msra.mxu0 0.0
        %1207 = vmatprep.subr.mxu0 0.0
        %1208 = vmatpush1.msra.mxu0 0.0
        %1209 = vmatprep.subr.mxu0 0.0
        %1210 = vmatpush1.msra.mxu0 0.0
        %1211 = vmatprep.subr.mxu0 0.0
        %1212 = vmatpush1.msra.mxu0 0.0
        %1213 = vmatprep.subr.mxu0 0.0
        %1214 = vmatpush1.msra.mxu0 0.0
        %1215 = vmatprep.subr.mxu0 0.0
        %1216 = vmatpush1.msra.mxu0 0.0
        %1217 = vmatprep.subr.mxu0 0.0
        %1218 = vmatpush1.msra.mxu0 0.0
        %1219 = vmatprep.subr.mxu0 0.0
        %1220 = vmatpush1.msra.mxu0 %v1030
        %1221 = vmatprep.subr.mxu0 0.0
        %1222 = vmatpush1.msra.mxu0 %v1029
        %1223 = vmatprep.subr.mxu0 0.0
        %1224 = vmatpush1.msra.mxu0 %v1028
        %1225 = vmatprep.subr.mxu0 0.0
        %1226 = vmatpush1.msra.mxu0 %v1027
        %1227 = vmatprep.subr.mxu0 0.0
        %1228 = vmatpush2.msra.mxu0 0.0
        %1229 = vmatprep.subr.mxu0 0.0
        %1230 = vmatpush2.msra.mxu0 0.0
        %1231 = vmatprep.subr.mxu0 0.0
        %1232 = vmatpush2.msra.mxu0 0.0
        %1233 = vmatprep.subr.mxu0 0.0
        %1234 = vmatpush2.msra.mxu0 0.0
        %1235 = vmatprep.subr.mxu0 0.0
        %1236 = vmatpush2.msra.mxu0 0.0
        %1237 = vmatprep.subr.mxu0 0.0
        %1238 = vmatpush2.msra.mxu0 0.0
        %1239 = vmatprep.subr.mxu0 0.0
        %1240 = vmatpush2.msra.mxu0 0.0
        %1241 = vmatprep.subr.mxu0 0.0
        %1242 = vmatpush2.msra.mxu0 0.0
        %1243 = vmatprep.subr.mxu0 0.0
        %1244 = vmatpush2.msra.mxu0 0.0
        %1245 = vmatprep.subr.mxu0 0.0
        %1246 = vmatpush2.msra.mxu0 0.0
        %1247 = vmatprep.subr.mxu0 0.0
        %1248 = vmatpush2.msra.mxu0 0.0
        %1249 = vmatprep.subr.mxu0 0.0
        %1250 = vmatpush2.msra.mxu0 0.0
        %1251 = vmatprep.subr.mxu0 0.0
        %1252 = vmatpush2.msra.mxu0 0.0
        %1253 = vmatprep.subr.mxu0 0.0
        %1254 = vmatpush2.msra.mxu0 0.0
        %1255 = vmatprep.subr.mxu0 0.0
        %1256 = vmatpush2.msra.mxu0 0.0
        %1257 = vmatprep.subr.mxu0 0.0
        %1258 = vmatpush2.msra.mxu0 0.0
        %1259 = vmatprep.mubr.f32.mxu0 0.0
        %1260 = vmatmul.mubr.f32.gmra.mxu0 %v1123
        %v1261 = vpop.f32.mrf.mxu0
        %v1262 = vadd.f32 0.0, %v1261
        %v1263 = vpop.f32.mrf.mxu0
        %1264 = vdwg.mxu0
        %v1265 = vrcp.pop %v1192
        %v1266 = vmul.f32 %v1262, %v1265
        %v1267 = vld [vmem:[%s4] sm:$0xff]
        %v1268 = vld [vmem:[%s4 + $0x8] sm:$0xff]
        %v1269 = vld [vmem:[%s4 + $0x10] sm:$0xff]
        %v1270 = vld [vmem:[%s4 + $0x18] sm:$0xff]
        %v1272 = vsel %vm703, %v1266, 0
        %1274 = vmatprep.subr.mxu0 0.0
        %1275 = vmatpush1.msra.mxu0 0.0
        %1276 = vmatprep.subr.mxu0 0.0
        %1277 = vmatpush1.msra.mxu0 0.0
        %1278 = vmatprep.subr.mxu0 0.0
        %1279 = vmatpush1.msra.mxu0 0.0
        %1280 = vmatprep.subr.mxu0 0.0
        %1281 = vmatpush1.msra.mxu0 0.0
        %1282 = vmatprep.subr.mxu0 0.0
        %1283 = vmatpush1.msra.mxu0 0.0
        %1284 = vmatprep.subr.mxu0 0.0
        %1285 = vmatpush1.msra.mxu0 0.0
        %1286 = vmatprep.subr.mxu0 0.0
        %1287 = vmatpush1.msra.mxu0 0.0
        %1288 = vmatprep.subr.mxu0 0.0
        %1289 = vmatpush1.msra.mxu0 0.0
        %1290 = vmatprep.subr.mxu0 0.0
        %1291 = vmatpush1.msra.mxu0 0.0
        %1292 = vmatprep.subr.mxu0 0.0
        %1293 = vmatpush1.msra.mxu0 0.0
        %1294 = vmatprep.subr.mxu0 0.0
        %1295 = vmatpush1.msra.mxu0 0.0
        %1296 = vmatprep.subr.mxu0 0.0
        %1297 = vmatpush1.msra.mxu0 0.0
        %1298 = vmatprep.subr.mxu0 0.0
        %1299 = vmatpush1.msra.mxu0 %v1270
        %1300 = vmatprep.subr.mxu0 0.0
        %1301 = vmatpush1.msra.mxu0 %v1269
        %1302 = vmatprep.subr.mxu0 0.0
        %1303 = vmatpush1.msra.mxu0 %v1268
        %1304 = vmatprep.subr.mxu0 0.0
        %1305 = vmatpush1.msra.mxu0 %v1267
        %1306 = vmatprep.subr.mxu0 0.0
        %1307 = vmatpush2.msra.mxu0 0.0
        %1308 = vmatprep.subr.mxu0 0.0
        %1309 = vmatpush2.msra.mxu0 0.0
        %1310 = vmatprep.subr.mxu0 0.0
        %1311 = vmatpush2.msra.mxu0 0.0
        %1312 = vmatprep.subr.mxu0 0.0
        %1313 = vmatpush2.msra.mxu0 0.0
        %1314 = vmatprep.subr.mxu0 0.0
        %1315 = vmatpush2.msra.mxu0 0.0
        %1316 = vmatprep.subr.mxu0 0.0
        %1317 = vmatpush2.msra.mxu0 0.0
        %1318 = vmatprep.subr.mxu0 0.0
        %1319 = vmatpush2.msra.mxu0 0.0
        %1320 = vmatprep.subr.mxu0 0.0
        %1321 = vmatpush2.msra.mxu0 0.0
        %1322 = vmatprep.subr.mxu0 0.0
        %1323 = vmatpush2.msra.mxu0 0.0
        %1324 = vmatprep.subr.mxu0 0.0
        %1325 = vmatpush2.msra.mxu0 0.0
        %1326 = vmatprep.subr.mxu0 0.0
        %1327 = vmatpush2.msra.mxu0 0.0
        %1328 = vmatprep.subr.mxu0 0.0
        %1329 = vmatpush2.msra.mxu0 0.0
        %1330 = vmatprep.subr.mxu0 0.0
        %1331 = vmatpush2.msra.mxu0 0.0
        %1332 = vmatprep.subr.mxu0 0.0
        %1333 = vmatpush2.msra.mxu0 0.0
        %1334 = vmatprep.subr.mxu0 0.0
        %1335 = vmatpush2.msra.mxu0 0.0
        %1336 = vmatprep.subr.mxu0 0.0
        %1337 = vmatpush2.msra.mxu0 0.0
        %1338 = vmatprep.mubr.f32.mxu0 0.0
        %1339 = vmatmul.mubr.f32.gmra.mxu0 %v1272
        %v1340 = vpop.f32.mrf.mxu0
        %v1341 = vadd.f32 0.0, %v1340
        %v1342 = vpop.f32.mrf.mxu0
        %1343 = vdwg.mxu0
        %v1344 = vadd.f32 %v693, %v1341
        %v1345 = vld [vmem:[#allocation10] sm:$0x1]
        %v1347 = vlaneseq
        %v1348 = vshrl.u32 %v1347, 7
        %v1349 = vsub.s32 0, %v1348
        %v1350 = vrot.slane %v1345, %v1349
        %v1352 = vadd.f32 %v1344, %v1350
        %v1353 = vld [vmem:[#allocation11] sm:$0x1]
        %v1354 = vmul.f32 %v1352, %v1352
        %v1355 = vsel %vm703, %v1354, 0.0
        %1356 = vadd.xlane.f32.xlu0 %v1355
        %v1357 = vpop.xlane.xlu0 %1356
        %v1358 = vrsqrt.pop %v1357
        %v1359 = vmul.f32 %v1357, %v1358
        %vm1360 = vcmp.eq.f32.partialorder %v1357, inf
        %v1361 = vsel %vm1360, %v1357, %v1359
        %vm1362 = vcmp.eq.f32.partialorder %v1357, 0.0
        %v1363 = vand.u32 %v1357, 2147483648
        %v1364 = vsel %vm1362, %v1363, %v1361
        %v1365 = vadd.f32 %v1364, 1e-06
        %v1366 = vrcp.pop %v1365
        %v1368 = vlaneseq
        %v1369 = vshrl.u32 %v1368, 7
        %v1370 = vsub.s32 0, %v1369
        %v1371 = vrot.slane %v1353, %v1370
        %v1373 = vmul.f32 %v1371, %v1366
        %v1374 = vmul.f32 %v1352, %v1373
        %v1375 = vld [vmem:[%s7] sm:$0xff]
        %v1376 = vld [vmem:[%s7 + $0x8] sm:$0xff]
        %v1377 = vld [vmem:[%s7 + $0x10] sm:$0xff]
        %v1378 = vld [vmem:[%s7 + $0x18] sm:$0xff]
        %v1379 = vld [vmem:[#allocation13] sm:$0x1]
        %v1381 = vlaneseq
        %v1382 = vshrl.u32 %v1381, 7
        %v1383 = vsub.s32 0, %v1382
        %v1384 = vrot.slane %v1379, %v1383
        %v1387 = vsel %vm703, %v1374, 0
        %1389 = vmatprep.subr.mxu0 0.0
        %1390 = vmatpush1.msra.mxu0 0.0
        %1391 = vmatprep.subr.mxu0 0.0
        %1392 = vmatpush1.msra.mxu0 0.0
        %1393 = vmatprep.subr.mxu0 0.0
        %1394 = vmatpush1.msra.mxu0 0.0
        %1395 = vmatprep.subr.mxu0 0.0
        %1396 = vmatpush1.msra.mxu0 0.0
        %1397 = vmatprep.subr.mxu0 0.0
        %1398 = vmatpush1.msra.mxu0 0.0
        %1399 = vmatprep.subr.mxu0 0.0
        %1400 = vmatpush1.msra.mxu0 0.0
        %1401 = vmatprep.subr.mxu0 0.0
        %1402 = vmatpush1.msra.mxu0 0.0
        %1403 = vmatprep.subr.mxu0 0.0
        %1404 = vmatpush1.msra.mxu0 0.0
        %1405 = vmatprep.subr.mxu0 0.0
        %1406 = vmatpush1.msra.mxu0 0.0
        %1407 = vmatprep.subr.mxu0 0.0
        %1408 = vmatpush1.msra.mxu0 0.0
        %1409 = vmatprep.subr.mxu0 0.0
        %1410 = vmatpush1.msra.mxu0 0.0
        %1411 = vmatprep.subr.mxu0 0.0
        %1412 = vmatpush1.msra.mxu0 0.0
        %1413 = vmatprep.subr.mxu0 0.0
        %1414 = vmatpush1.msra.mxu0 %v1378
        %1415 = vmatprep.subr.mxu0 0.0
        %1416 = vmatpush1.msra.mxu0 %v1377
        %1417 = vmatprep.subr.mxu0 0.0
        %1418 = vmatpush1.msra.mxu0 %v1376
        %1419 = vmatprep.subr.mxu0 0.0
        %1420 = vmatpush1.msra.mxu0 %v1375
        %1421 = vmatprep.subr.mxu0 0.0
        %1422 = vmatpush2.msra.mxu0 0.0
        %1423 = vmatprep.subr.mxu0 0.0
        %1424 = vmatpush2.msra.mxu0 0.0
        %1425 = vmatprep.subr.mxu0 0.0
        %1426 = vmatpush2.msra.mxu0 0.0
        %1427 = vmatprep.subr.mxu0 0.0
        %1428 = vmatpush2.msra.mxu0 0.0
        %1429 = vmatprep.subr.mxu0 0.0
        %1430 = vmatpush2.msra.mxu0 0.0
        %1431 = vmatprep.subr.mxu0 0.0
        %1432 = vmatpush2.msra.mxu0 0.0
        %1433 = vmatprep.subr.mxu0 0.0
        %1434 = vmatpush2.msra.mxu0 0.0
        %1435 = vmatprep.subr.mxu0 0.0
        %1436 = vmatpush2.msra.mxu0 0.0
        %1437 = vmatprep.subr.mxu0 0.0
        %1438 = vmatpush2.msra.mxu0 0.0
        %1439 = vmatprep.subr.mxu0 0.0
        %1440 = vmatpush2.msra.mxu0 0.0
        %1441 = vmatprep.subr.mxu0 0.0
        %1442 = vmatpush2.msra.mxu0 0.0
        %1443 = vmatprep.subr.mxu0 0.0
        %1444 = vmatpush2.msra.mxu0 0.0
        %1445 = vmatprep.subr.mxu0 0.0
        %1446 = vmatpush2.msra.mxu0 0.0
        %1447 = vmatprep.subr.mxu0 0.0
        %1448 = vmatpush2.msra.mxu0 0.0
        %1449 = vmatprep.subr.mxu0 0.0
        %1450 = vmatpush2.msra.mxu0 0.0
        %1451 = vmatprep.subr.mxu0 0.0
        %1452 = vmatpush2.msra.mxu0 0.0
        %1453 = vmatprep.mubr.f32.mxu0 0.0
        %1454 = vmatmul.mubr.f32.gmra.mxu0 %v1387
        %v1455 = vpop.f32.mrf.mxu0
        %v1456 = vadd.f32 %v1384, %v1455
        %v1457 = vpop.f32.mrf.mxu0
        %1458 = vdwg.mxu0
        %v1459 = vxor.u32 %v1456, 2147483648
        %v1460 = vmul.f32 %v1459, 1.442695
        %v1461 = vpow.pop %v1460
        %v1462 = vadd.f32 %v1461, 1.0
        %v1463 = vrcp.pop %v1462
        %v1464 = vmul.f32 1.0, %v1463
        %v1465 = vmul.f32 %v1456, %v1464
        %v1466 = vld [vmem:[%s9] sm:$0xff]
        %v1467 = vld [vmem:[%s9 + $0x8] sm:$0xff]
        %v1468 = vld [vmem:[%s9 + $0x10] sm:$0xff]
        %v1469 = vld [vmem:[%s9 + $0x18] sm:$0xff]
        %v1470 = vld [vmem:[%s9 + $0x20] sm:$0xff]
        %v1471 = vld [vmem:[%s9 + $0x28] sm:$0xff]
        %v1472 = vld [vmem:[%s9 + $0x30] sm:$0xff]
        %v1473 = vld [vmem:[%s9 + $0x38] sm:$0xff]
        %vm1474 = vcmask 523264
        %v1476 = vsel %vm1474, %v1465, 0
        %1478 = vmatprep.subr.mxu0 0.0
        %1479 = vmatpush1.msra.mxu0 0.0
        %1480 = vmatprep.subr.mxu0 0.0
        %1481 = vmatpush1.msra.mxu0 0.0
        %1482 = vmatprep.subr.mxu0 0.0
        %1483 = vmatpush1.msra.mxu0 0.0
        %1484 = vmatprep.subr.mxu0 0.0
        %1485 = vmatpush1.msra.mxu0 0.0
        %1486 = vmatprep.subr.mxu0 0.0
        %1487 = vmatpush1.msra.mxu0 0.0
        %1488 = vmatprep.subr.mxu0 0.0
        %1489 = vmatpush1.msra.mxu0 0.0
        %1490 = vmatprep.subr.mxu0 0.0
        %1491 = vmatpush1.msra.mxu0 0.0
        %1492 = vmatprep.subr.mxu0 0.0
        %1493 = vmatpush1.msra.mxu0 0.0
        %1494 = vmatprep.subr.mxu0 0.0
        %1495 = vmatpush1.msra.mxu0 %v1473
        %1496 = vmatprep.subr.mxu0 0.0
        %1497 = vmatpush1.msra.mxu0 %v1472
        %1498 = vmatprep.subr.mxu0 0.0
        %1499 = vmatpush1.msra.mxu0 %v1471
        %1500 = vmatprep.subr.mxu0 0.0
        %1501 = vmatpush1.msra.mxu0 %v1470
        %1502 = vmatprep.subr.mxu0 0.0
        %1503 = vmatpush1.msra.mxu0 %v1469
        %1504 = vmatprep.subr.mxu0 0.0
        %1505 = vmatpush1.msra.mxu0 %v1468
        %1506 = vmatprep.subr.mxu0 0.0
        %1507 = vmatpush1.msra.mxu0 %v1467
        %1508 = vmatprep.subr.mxu0 0.0
        %1509 = vmatpush1.msra.mxu0 %v1466
        %1510 = vmatprep.subr.mxu0 0.0
        %1511 = vmatpush2.msra.mxu0 0.0
        %1512 = vmatprep.subr.mxu0 0.0
        %1513 = vmatpush2.msra.mxu0 0.0
        %1514 = vmatprep.subr.mxu0 0.0
        %1515 = vmatpush2.msra.mxu0 0.0
        %1516 = vmatprep.subr.mxu0 0.0
        %1517 = vmatpush2.msra.mxu0 0.0
        %1518 = vmatprep.subr.mxu0 0.0
        %1519 = vmatpush2.msra.mxu0 0.0
        %1520 = vmatprep.subr.mxu0 0.0
        %1521 = vmatpush2.msra.mxu0 0.0
        %1522 = vmatprep.subr.mxu0 0.0
        %1523 = vmatpush2.msra.mxu0 0.0
        %1524 = vmatprep.subr.mxu0 0.0
        %1525 = vmatpush2.msra.mxu0 0.0
        %1526 = vmatprep.subr.mxu0 0.0
        %1527 = vmatpush2.msra.mxu0 0.0
        %1528 = vmatprep.subr.mxu0 0.0
        %1529 = vmatpush2.msra.mxu0 0.0
        %1530 = vmatprep.subr.mxu0 0.0
        %1531 = vmatpush2.msra.mxu0 0.0
        %1532 = vmatprep.subr.mxu0 0.0
        %1533 = vmatpush2.msra.mxu0 0.0
        %1534 = vmatprep.subr.mxu0 0.0
        %1535 = vmatpush2.msra.mxu0 0.0
        %1536 = vmatprep.subr.mxu0 0.0
        %1537 = vmatpush2.msra.mxu0 0.0
        %1538 = vmatprep.subr.mxu0 0.0
        %1539 = vmatpush2.msra.mxu0 0.0
        %1540 = vmatprep.subr.mxu0 0.0
        %1541 = vmatpush2.msra.mxu0 0.0
        %1542 = vmatprep.mubr.f32.mxu0 0.0
        %1543 = vmatmul.mubr.f32.gmra.mxu0 %v1476
        %v1544 = vpop.f32.mrf.mxu0
        %v1545 = vadd.f32 0.0, %v1544
        %v1546 = vpop.f32.mrf.mxu0
        %1547 = vdwg.mxu0
        %v1548 = vadd.f32 %v1352, %v1545
        %v1549 = vld [vmem:[#allocation14] sm:$0x1]
        %v1551 = vlaneseq
        %v1552 = vshrl.u32 %v1551, 7
        %v1553 = vsub.s32 0, %v1552
        %v1554 = vrot.slane %v1549, %v1553
        %v1556 = vadd.f32 %v1548, %v1554
        %s1557 = scalar_lea.vmem [#allocation5], 1
        %v1558 = vld [vmem:[%s1557] sm:$0x1]
        %v1559 = vmul.f32 %v1556, %v1556
        %v1560 = vsel %vm703, %v1559, 0.0
        %1561 = vadd.xlane.f32.xlu0 %v1560
        %v1562 = vpop.xlane.xlu0 %1561
        %v1563 = vrsqrt.pop %v1562
        %v1564 = vmul.f32 %v1562, %v1563
        %vm1565 = vcmp.eq.f32.partialorder %v1562, inf
        %v1566 = vsel %vm1565, %v1562, %v1564
        %vm1567 = vcmp.eq.f32.partialorder %v1562, 0.0
        %v1568 = vand.u32 %v1562, 2147483648
        %v1569 = vsel %vm1567, %v1568, %v1566
        %v1570 = vadd.f32 %v1569, 1e-06
        %v1571 = vrcp.pop %v1570
        %v1573 = vlaneseq
        %v1574 = vshrl.u32 %v1573, 7
        %v1575 = vsub.s32 0, %v1574
        %v1576 = vrot.slane %v1558, %v1575
        %v1578 = vmul.f32 %v1576, %v1571
        %v1579 = vmul.f32 %v1556, %v1578
        %s1580 = scalar_lea.vmem [#allocation7], 160
        %v1581 = vld [vmem:[%s1580] sm:$0xff]
        %v1582 = vld [vmem:[%s1580 + $0x8] sm:$0xff]
        %v1583 = vld [vmem:[%s1580 + $0x10] sm:$0xff]
        %v1584 = vld [vmem:[%s1580 + $0x18] sm:$0xff]
        %v1585 = vld [vmem:[%s1580 + $0x20] sm:$0xff]
        %v1586 = vld [vmem:[%s1580 + $0x28] sm:$0xff]
        %v1587 = vld [vmem:[%s1580 + $0x30] sm:$0xff]
        %v1588 = vld [vmem:[%s1580 + $0x38] sm:$0xff]
        %v1589 = vld [vmem:[%s1580 + $0x40] sm:$0xff]
        %v1590 = vld [vmem:[%s1580 + $0x48] sm:$0xff]
        %v1591 = vld [vmem:[%s1580 + $0x50] sm:$0xff]
        %v1592 = vld [vmem:[%s1580 + $0x58] sm:$0xff]
        %v1593 = vld [vmem:[%s1580 + $0x60] sm:$0xff]
        %v1594 = vld [vmem:[%s1580 + $0x68] sm:$0xff]
        %v1595 = vld [vmem:[%s1580 + $0x70] sm:$0xff]
        %v1596 = vld [vmem:[%s1580 + $0x78] sm:$0xff]
        %v1597 = vld [vmem:[%s1580 + $0x80] sm:$0xff]
        %v1598 = vld [vmem:[%s1580 + $0x88] sm:$0xff]
        %v1599 = vld [vmem:[%s1580 + $0x90] sm:$0xff]
        %v1600 = vld [vmem:[%s1580 + $0x98] sm:$0xff]
        %s1601 = scalar_lea.vmem [#allocation8], 5
        %v1602 = vld [vmem:[%s1601] sm:$0x1f]
        %v1604 = vlaneseq
        %v1605 = vshrl.u32 %v1604, 7
        %v1606 = vsub.s32 0, %v1605
        %v1607 = vrot.slane %v1602, %v1606
        %v1608 = vlaneseq
        %v1609 = vshrl.u32 %v1608, 7
        %v1610 = vsub.s32 1, %v1609
        %v1611 = vrot.slane %v1602, %v1610
        %v1612 = vlaneseq
        %v1613 = vshrl.u32 %v1612, 7
        %v1614 = vsub.s32 2, %v1613
        %v1615 = vrot.slane %v1602, %v1614
        %v1616 = vlaneseq
        %v1617 = vshrl.u32 %v1616, 7
        %v1618 = vsub.s32 3, %v1617
        %v1619 = vrot.slane %v1602, %v1618
        %v1620 = vlaneseq
        %v1621 = vshrl.u32 %v1620, 7
        %v1622 = vsub.s32 4, %v1621
        %v1623 = vrot.slane %v1602, %v1622
        %v1630 = vsel %vm703, %v1579, 0
        %1632 = vmatprep.subr.mxu0 0.0
        %1633 = vmatpush1.msra.mxu0 0.0
        %1634 = vmatprep.subr.mxu0 0.0
        %1635 = vmatpush1.msra.mxu0 0.0
        %1636 = vmatprep.subr.mxu0 0.0
        %1637 = vmatpush1.msra.mxu0 0.0
        %1638 = vmatprep.subr.mxu0 0.0
        %1639 = vmatpush1.msra.mxu0 0.0
        %1640 = vmatprep.subr.mxu0 0.0
        %1641 = vmatpush1.msra.mxu0 0.0
        %1642 = vmatprep.subr.mxu0 0.0
        %1643 = vmatpush1.msra.mxu0 0.0
        %1644 = vmatprep.subr.mxu0 0.0
        %1645 = vmatpush1.msra.mxu0 0.0
        %1646 = vmatprep.subr.mxu0 0.0
        %1647 = vmatpush1.msra.mxu0 0.0
        %1648 = vmatprep.subr.mxu0 0.0
        %1649 = vmatpush1.msra.mxu0 0.0
        %1650 = vmatprep.subr.mxu0 0.0
        %1651 = vmatpush1.msra.mxu0 0.0
        %1652 = vmatprep.subr.mxu0 0.0
        %1653 = vmatpush1.msra.mxu0 0.0
        %1654 = vmatprep.subr.mxu0 0.0
        %1655 = vmatpush1.msra.mxu0 0.0
        %1656 = vmatprep.subr.mxu0 %v1597
        %1657 = vmatpush1.msra.mxu0 %v1596
        %1658 = vmatprep.subr.mxu0 %v1592
        %1659 = vmatpush1.msra.mxu0 %v1591
        %1660 = vmatprep.subr.mxu0 %v1587
        %1661 = vmatpush1.msra.mxu0 %v1586
        %1662 = vmatprep.subr.mxu0 %v1582
        %1663 = vmatpush1.msra.mxu0 %v1581
        %1664 = vmatprep.subr.mxu0 0.0
        %1665 = vmatpush2.msra.mxu0 0.0
        %1666 = vmatprep.subr.mxu0 0.0
        %1667 = vmatpush2.msra.mxu0 0.0
        %1668 = vmatprep.subr.mxu0 0.0
        %1669 = vmatpush2.msra.mxu0 0.0
        %1670 = vmatprep.subr.mxu0 0.0
        %1671 = vmatpush2.msra.mxu0 0.0
        %1672 = vmatprep.subr.mxu0 0.0
        %1673 = vmatpush2.msra.mxu0 0.0
        %1674 = vmatprep.subr.mxu0 0.0
        %1675 = vmatpush2.msra.mxu0 0.0
        %1676 = vmatprep.subr.mxu0 0.0
        %1677 = vmatpush2.msra.mxu0 0.0
        %1678 = vmatprep.subr.mxu0 0.0
        %1679 = vmatpush2.msra.mxu0 0.0
        %1680 = vmatprep.subr.mxu0 0.0
        %1681 = vmatpush2.msra.mxu0 0.0
        %1682 = vmatprep.subr.mxu0 0.0
        %1683 = vmatpush2.msra.mxu0 0.0
        %1684 = vmatprep.subr.mxu0 0.0
        %1685 = vmatpush2.msra.mxu0 0.0
        %1686 = vmatprep.subr.mxu0 0.0
        %1687 = vmatpush2.msra.mxu0 0.0
        %1688 = vmatprep.subr.mxu0 0.0
        %1689 = vmatpush2.msra.mxu0 0.0
        %1690 = vmatprep.subr.mxu0 0.0
        %1691 = vmatpush2.msra.mxu0 0.0
        %1692 = vmatprep.subr.mxu0 0.0
        %1693 = vmatpush2.msra.mxu0 0.0
        %1694 = vmatprep.subr.mxu0 0.0
        %1695 = vmatpush2.msra.mxu0 0.0
        %1696 = vmatprep.mubr.f32.mxu0 0.0
        %1697 = vmatmul.mubr.f32.gmra.mxu0 %v1630
        %v1698 = vpop.f32.mrf.mxu0
        %v1699 = vadd.f32 %v1607, %v1698
        %v1700 = vpop.f32.mrf.mxu0
        %v1701 = vadd.f32 %v1611, %v1700
        %1702 = vdwg.mxu0
        %1703 = vmatprep.subr.mxu0 0.0
        %1704 = vmatpush1.msra.mxu0 0.0
        %1705 = vmatprep.subr.mxu0 0.0
        %1706 = vmatpush1.msra.mxu0 0.0
        %1707 = vmatprep.subr.mxu0 0.0
        %1708 = vmatpush1.msra.mxu0 0.0
        %1709 = vmatprep.subr.mxu0 0.0
        %1710 = vmatpush1.msra.mxu0 0.0
        %1711 = vmatprep.subr.mxu0 0.0
        %1712 = vmatpush1.msra.mxu0 0.0
        %1713 = vmatprep.subr.mxu0 0.0
        %1714 = vmatpush1.msra.mxu0 0.0
        %1715 = vmatprep.subr.mxu0 0.0
        %1716 = vmatpush1.msra.mxu0 0.0
        %1717 = vmatprep.subr.mxu0 0.0
        %1718 = vmatpush1.msra.mxu0 0.0
        %1719 = vmatprep.subr.mxu0 0.0
        %1720 = vmatpush1.msra.mxu0 0.0
        %1721 = vmatprep.subr.mxu0 0.0
        %1722 = vmatpush1.msra.mxu0 0.0
        %1723 = vmatprep.subr.mxu0 0.0
        %1724 = vmatpush1.msra.mxu0 0.0
        %1725 = vmatprep.subr.mxu0 0.0
        %1726 = vmatpush1.msra.mxu0 0.0
        %1727 = vmatprep.subr.mxu0 %v1599
        %1728 = vmatpush1.msra.mxu0 %v1598
        %1729 = vmatprep.subr.mxu0 %v1594
        %1730 = vmatpush1.msra.mxu0 %v1593
        %1731 = vmatprep.subr.mxu0 %v1589
        %1732 = vmatpush1.msra.mxu0 %v1588
        %1733 = vmatprep.subr.mxu0 %v1584
        %1734 = vmatpush1.msra.mxu0 %v1583
        %1735 = vmatprep.subr.mxu0 0.0
        %1736 = vmatpush2.msra.mxu0 0.0
        %1737 = vmatprep.subr.mxu0 0.0
        %1738 = vmatpush2.msra.mxu0 0.0
        %1739 = vmatprep.subr.mxu0 0.0
        %1740 = vmatpush2.msra.mxu0 0.0
        %1741 = vmatprep.subr.mxu0 0.0
        %1742 = vmatpush2.msra.mxu0 0.0
        %1743 = vmatprep.subr.mxu0 0.0
        %1744 = vmatpush2.msra.mxu0 0.0
        %1745 = vmatprep.subr.mxu0 0.0
        %1746 = vmatpush2.msra.mxu0 0.0
        %1747 = vmatprep.subr.mxu0 0.0
        %1748 = vmatpush2.msra.mxu0 0.0
        %1749 = vmatprep.subr.mxu0 0.0
        %1750 = vmatpush2.msra.mxu0 0.0
        %1751 = vmatprep.subr.mxu0 0.0
        %1752 = vmatpush2.msra.mxu0 0.0
        %1753 = vmatprep.subr.mxu0 0.0
        %1754 = vmatpush2.msra.mxu0 0.0
        %1755 = vmatprep.subr.mxu0 0.0
        %1756 = vmatpush2.msra.mxu0 0.0
        %1757 = vmatprep.subr.mxu0 0.0
        %1758 = vmatpush2.msra.mxu0 0.0
        %1759 = vmatprep.subr.mxu0 0.0
        %1760 = vmatpush2.msra.mxu0 0.0
        %1761 = vmatprep.subr.mxu0 0.0
        %1762 = vmatpush2.msra.mxu0 0.0
        %1763 = vmatprep.subr.mxu0 0.0
        %1764 = vmatpush2.msra.mxu0 0.0
        %1765 = vmatprep.subr.mxu0 0.0
        %1766 = vmatpush2.msra.mxu0 0.0
        %1767 = vmatprep.mubr.f32.mxu0 0.0
        %1768 = vmatmul.mubr.f32.gmra.mxu0 %v1630
        %v1769 = vpop.f32.mrf.mxu0
        %v1770 = vadd.f32 %v1615, %v1769
        %v1771 = vpop.f32.mrf.mxu0
        %v1772 = vadd.f32 %v1619, %v1771
        %1773 = vdwg.mxu0
        %1774 = vmatprep.subr.mxu0 0.0
        %1775 = vmatpush1.msra.mxu0 0.0
        %1776 = vmatprep.subr.mxu0 0.0
        %1777 = vmatpush1.msra.mxu0 0.0
        %1778 = vmatprep.subr.mxu0 0.0
        %1779 = vmatpush1.msra.mxu0 0.0
        %1780 = vmatprep.subr.mxu0 0.0
        %1781 = vmatpush1.msra.mxu0 0.0
        %1782 = vmatprep.subr.mxu0 0.0
        %1783 = vmatpush1.msra.mxu0 0.0
        %1784 = vmatprep.subr.mxu0 0.0
        %1785 = vmatpush1.msra.mxu0 0.0
        %1786 = vmatprep.subr.mxu0 0.0
        %1787 = vmatpush1.msra.mxu0 0.0
        %1788 = vmatprep.subr.mxu0 0.0
        %1789 = vmatpush1.msra.mxu0 0.0
        %1790 = vmatprep.subr.mxu0 0.0
        %1791 = vmatpush1.msra.mxu0 0.0
        %1792 = vmatprep.subr.mxu0 0.0
        %1793 = vmatpush1.msra.mxu0 0.0
        %1794 = vmatprep.subr.mxu0 0.0
        %1795 = vmatpush1.msra.mxu0 0.0
        %1796 = vmatprep.subr.mxu0 0.0
        %1797 = vmatpush1.msra.mxu0 0.0
        %1798 = vmatprep.subr.mxu0 0.0
        %1799 = vmatpush1.msra.mxu0 %v1600
        %1800 = vmatprep.subr.mxu0 0.0
        %1801 = vmatpush1.msra.mxu0 %v1595
        %1802 = vmatprep.subr.mxu0 0.0
        %1803 = vmatpush1.msra.mxu0 %v1590
        %1804 = vmatprep.subr.mxu0 0.0
        %1805 = vmatpush1.msra.mxu0 %v1585
        %1806 = vmatprep.subr.mxu0 0.0
        %1807 = vmatpush2.msra.mxu0 0.0
        %1808 = vmatprep.subr.mxu0 0.0
        %1809 = vmatpush2.msra.mxu0 0.0
        %1810 = vmatprep.subr.mxu0 0.0
        %1811 = vmatpush2.msra.mxu0 0.0
        %1812 = vmatprep.subr.mxu0 0.0
        %1813 = vmatpush2.msra.mxu0 0.0
        %1814 = vmatprep.subr.mxu0 0.0
        %1815 = vmatpush2.msra.mxu0 0.0
        %1816 = vmatprep.subr.mxu0 0.0
        %1817 = vmatpush2.msra.mxu0 0.0
        %1818 = vmatprep.subr.mxu0 0.0
        %1819 = vmatpush2.msra.mxu0 0.0
        %1820 = vmatprep.subr.mxu0 0.0
        %1821 = vmatpush2.msra.mxu0 0.0
        %1822 = vmatprep.subr.mxu0 0.0
        %1823 = vmatpush2.msra.mxu0 0.0
        %1824 = vmatprep.subr.mxu0 0.0
        %1825 = vmatpush2.msra.mxu0 0.0
        %1826 = vmatprep.subr.mxu0 0.0
        %1827 = vmatpush2.msra.mxu0 0.0
        %1828 = vmatprep.subr.mxu0 0.0
        %1829 = vmatpush2.msra.mxu0 0.0
        %1830 = vmatprep.subr.mxu0 0.0
        %1831 = vmatpush2.msra.mxu0 0.0
        %1832 = vmatprep.subr.mxu0 0.0
        %1833 = vmatpush2.msra.mxu0 0.0
        %1834 = vmatprep.subr.mxu0 0.0
        %1835 = vmatpush2.msra.mxu0 0.0
        %1836 = vmatprep.subr.mxu0 0.0
        %1837 = vmatpush2.msra.mxu0 0.0
        %1838 = vmatprep.mubr.f32.mxu0 0.0
        %1839 = vmatmul.mubr.f32.gmra.mxu0 %v1630
        %v1840 = vpop.f32.mrf.mxu0
        %v1841 = vadd.f32 %v1623, %v1840
        %v1842 = vpop.f32.mrf.mxu0
        %1843 = vdwg.mxu0
        %v1844 = vmul.f32 %v1699, %v694
        %v1845 = vmul.f32 %v1772, %v695
        %v1846 = vadd.f32 %v1844, %v1845
        %v1847 = vmul.f32 %v1701, %v694
        %v1848 = vmul.f32 %v1841, %v695
        %v1849 = vadd.f32 %v1847, %v1848
        %v1850 = vmul.f32 %v1849, %v997
        %v1851 = vmul.f32 %v1849, %v1006
        %v1852 = vmul.f32 %v1849, %v1015
        %v1853 = vmul.f32 %v1849, %v1024
        %v1854 = vmul.f32 %v1770, %v997
        %v1855 = vmul.f32 %v1770, %v1006
        %v1856 = vmul.f32 %v1770, %v1015
        %v1857 = vmul.f32 %v1770, %v1024
        %v1859 = vsel %vm703, %v1846, 0
        %v1862 = vsel %vm703, %v1850, 0
        %v1865 = vsel %vm703, %v1851, 0
        %v1868 = vsel %vm703, %v1852, 0
        %v1871 = vsel %vm703, %v1853, 0
        %1873 = vmatprep.subr.mxu0 0.0
        %1874 = vmatpush1.xpose.msra.mxu0 0.0
        %1875 = vmatprep.subr.mxu0 0.0
        %1876 = vmatpush1.xpose.msra.mxu0 0.0
        %1877 = vmatprep.subr.mxu0 0.0
        %1878 = vmatpush1.xpose.msra.mxu0 0.0
        %1879 = vmatprep.subr.mxu0 0.0
        %1880 = vmatpush1.xpose.msra.mxu0 0.0
        %1881 = vmatprep.subr.mxu0 0.0
        %1882 = vmatpush1.xpose.msra.mxu0 0.0
        %1883 = vmatprep.subr.mxu0 0.0
        %1884 = vmatpush1.xpose.msra.mxu0 0.0
        %1885 = vmatprep.subr.mxu0 0.0
        %1886 = vmatpush1.xpose.msra.mxu0 0.0
        %1887 = vmatprep.subr.mxu0 0.0
        %1888 = vmatpush1.xpose.msra.mxu0 0.0
        %1889 = vmatprep.subr.mxu0 0.0
        %1890 = vmatpush1.xpose.msra.mxu0 0.0
        %1891 = vmatprep.subr.mxu0 0.0
        %1892 = vmatpush1.xpose.msra.mxu0 0.0
        %1893 = vmatprep.subr.mxu0 0.0
        %1894 = vmatpush1.xpose.msra.mxu0 0.0
        %1895 = vmatprep.subr.mxu0 0.0
        %1896 = vmatpush1.xpose.msra.mxu0 0.0
        %1897 = vmatprep.subr.mxu0 0.0
        %1898 = vmatpush1.xpose.msra.mxu0 %v1871
        %1899 = vmatprep.subr.mxu0 0.0
        %1900 = vmatpush1.xpose.msra.mxu0 %v1868
        %1901 = vmatprep.subr.mxu0 0.0
        %1902 = vmatpush1.xpose.msra.mxu0 %v1865
        %1903 = vmatprep.subr.mxu0 0.0
        %1904 = vmatpush1.xpose.msra.mxu0 %v1862
        %1905 = vmatprep.subr.mxu0 0.0
        %1906 = vmatpush2.xpose.msra.mxu0 0.0
        %1907 = vmatprep.subr.mxu0 0.0
        %1908 = vmatpush2.xpose.msra.mxu0 0.0
        %1909 = vmatprep.subr.mxu0 0.0
        %1910 = vmatpush2.xpose.msra.mxu0 0.0
        %1911 = vmatprep.subr.mxu0 0.0
        %1912 = vmatpush2.xpose.msra.mxu0 0.0
        %1913 = vmatprep.subr.mxu0 0.0
        %1914 = vmatpush2.xpose.msra.mxu0 0.0
        %1915 = vmatprep.subr.mxu0 0.0
        %1916 = vmatpush2.xpose.msra.mxu0 0.0
        %1917 = vmatprep.subr.mxu0 0.0
        %1918 = vmatpush2.xpose.msra.mxu0 0.0
        %1919 = vmatprep.subr.mxu0 0.0
        %1920 = vmatpush2.xpose.msra.mxu0 0.0
        %1921 = vmatprep.subr.mxu0 0.0
        %1922 = vmatpush2.xpose.msra.mxu0 0.0
        %1923 = vmatprep.subr.mxu0 0.0
        %1924 = vmatpush2.xpose.msra.mxu0 0.0
        %1925 = vmatprep.subr.mxu0 0.0
        %1926 = vmatpush2.xpose.msra.mxu0 0.0
        %1927 = vmatprep.subr.mxu0 0.0
        %1928 = vmatpush2.xpose.msra.mxu0 0.0
        %1929 = vmatprep.subr.mxu0 0.0
        %1930 = vmatpush2.xpose.msra.mxu0 0.0
        %1931 = vmatprep.subr.mxu0 0.0
        %1932 = vmatpush2.xpose.msra.mxu0 0.0
        %1933 = vmatprep.subr.mxu0 0.0
        %1934 = vmatpush2.xpose.msra.mxu0 0.0
        %1935 = vmatprep.subr.mxu0 0.0
        %1936 = vmatpush2.xpose.msra.mxu0 0.0
        %1937 = vmatprep.mubr.f32.mxu0 0.0
        %1938 = vmatmul.mubr.f32.gmra.mxu0 %v1859
        %v1939 = vpop.f32.mrf.mxu0
        %v1940 = vadd.f32 %v696, %v1939
        %v1941 = vpop.f32.mrf.mxu0
        %1942 = vdwg.mxu0
        %v1943 = vsel %vm703, %v1940, -inf
        %1944 = vmax.xlane.f32.xlu0 %v1943
        %v1945 = vpop.xlane.xlu0 %1944
        %v1946 = vsub.f32 %v1940, %v1945
        %v1947 = vmul.f32 %v1946, 1.442695
        %v1948 = vpow.pop %v1947
        %v1950 = vsel %vm703, %v1948, 0
        %1952 = vmatprep.subr.mxu0 0.0
        %1953 = vmatpush1.msra.mxu0 0.0
        %1954 = vmatprep.subr.mxu0 0.0
        %1955 = vmatpush1.msra.mxu0 0.0
        %1956 = vmatprep.subr.mxu0 0.0
        %1957 = vmatpush1.msra.mxu0 0.0
        %1958 = vmatprep.subr.mxu0 0.0
        %1959 = vmatpush1.msra.mxu0 0.0
        %1960 = vmatprep.subr.mxu0 0.0
        %1961 = vmatpush1.msra.mxu0 0.0
        %1962 = vmatprep.subr.mxu0 0.0
        %1963 = vmatpush1.msra.mxu0 0.0
        %1964 = vmatprep.subr.mxu0 0.0
        %1965 = vmatpush1.msra.mxu0 0.0
        %1966 = vmatprep.subr.mxu0 0.0
        %1967 = vmatpush1.msra.mxu0 0.0
        %1968 = vmatprep.subr.mxu0 0.0
        %1969 = vmatpush1.msra.mxu0 0.0
        %1970 = vmatprep.subr.mxu0 0.0
        %1971 = vmatpush1.msra.mxu0 0.0
        %1972 = vmatprep.subr.mxu0 0.0
        %1973 = vmatpush1.msra.mxu0 0.0
        %1974 = vmatprep.subr.mxu0 0.0
        %1975 = vmatpush1.msra.mxu0 0.0
        %1976 = vmatprep.subr.mxu0 0.0
        %1977 = vmatpush1.msra.mxu0 %v700
        %1978 = vmatprep.subr.mxu0 0.0
        %1979 = vmatpush1.msra.mxu0 %v699
        %1980 = vmatprep.subr.mxu0 0.0
        %1981 = vmatpush1.msra.mxu0 %v698
        %1982 = vmatprep.subr.mxu0 0.0
        %1983 = vmatpush1.msra.mxu0 %v697
        %1984 = vmatprep.subr.mxu0 0.0
        %1985 = vmatpush2.msra.mxu0 0.0
        %1986 = vmatprep.subr.mxu0 0.0
        %1987 = vmatpush2.msra.mxu0 0.0
        %1988 = vmatprep.subr.mxu0 0.0
        %1989 = vmatpush2.msra.mxu0 0.0
        %1990 = vmatprep.subr.mxu0 0.0
        %1991 = vmatpush2.msra.mxu0 0.0
        %1992 = vmatprep.subr.mxu0 0.0
        %1993 = vmatpush2.msra.mxu0 0.0
        %1994 = vmatprep.subr.mxu0 0.0
        %1995 = vmatpush2.msra.mxu0 0.0
        %1996 = vmatprep.subr.mxu0 0.0
        %1997 = vmatpush2.msra.mxu0 0.0
        %1998 = vmatprep.subr.mxu0 0.0
        %1999 = vmatpush2.msra.mxu0 0.0
        %2000 = vmatprep.subr.mxu0 0.0
        %2001 = vmatpush2.msra.mxu0 0.0
        %2002 = vmatprep.subr.mxu0 0.0
        %2003 = vmatpush2.msra.mxu0 0.0
        %2004 = vmatprep.subr.mxu0 0.0
        %2005 = vmatpush2.msra.mxu0 0.0
        %2006 = vmatprep.subr.mxu0 0.0
        %2007 = vmatpush2.msra.mxu0 0.0
        %2008 = vmatprep.subr.mxu0 0.0
        %2009 = vmatpush2.msra.mxu0 0.0
        %2010 = vmatprep.subr.mxu0 0.0
        %2011 = vmatpush2.msra.mxu0 0.0
        %2012 = vmatprep.subr.mxu0 0.0
        %2013 = vmatpush2.msra.mxu0 0.0
        %2014 = vmatprep.subr.mxu0 0.0
        %2015 = vmatpush2.msra.mxu0 0.0
        %2016 = vmatprep.mubr.f32.mxu0 0.0
        %2017 = vmatmul.mubr.f32.gmra.mxu0 %v1950
        %v2018 = vpop.f32.mrf.mxu0
        %v2019 = vadd.f32 0.0, %v2018
        %v2020 = vpop.f32.mrf.mxu0
        %2021 = vdwg.mxu0
        %2022 = vmatprep.subr.mxu0 0.0
        %2023 = vmatpush1.msra.mxu0 0.0
        %2024 = vmatprep.subr.mxu0 0.0
        %2025 = vmatpush1.msra.mxu0 0.0
        %2026 = vmatprep.subr.mxu0 0.0
        %2027 = vmatpush1.msra.mxu0 0.0
        %2028 = vmatprep.subr.mxu0 0.0
        %2029 = vmatpush1.msra.mxu0 0.0
        %2030 = vmatprep.subr.mxu0 0.0
        %2031 = vmatpush1.msra.mxu0 0.0
        %2032 = vmatprep.subr.mxu0 0.0
        %2033 = vmatpush1.msra.mxu0 0.0
        %2034 = vmatprep.subr.mxu0 0.0
        %2035 = vmatpush1.msra.mxu0 0.0
        %2036 = vmatprep.subr.mxu0 0.0
        %2037 = vmatpush1.msra.mxu0 0.0
        %2038 = vmatprep.subr.mxu0 0.0
        %2039 = vmatpush1.msra.mxu0 0.0
        %2040 = vmatprep.subr.mxu0 0.0
        %2041 = vmatpush1.msra.mxu0 0.0
        %2042 = vmatprep.subr.mxu0 0.0
        %2043 = vmatpush1.msra.mxu0 0.0
        %2044 = vmatprep.subr.mxu0 0.0
        %2045 = vmatpush1.msra.mxu0 0.0
        %2046 = vmatprep.subr.mxu0 0.0
        %2047 = vmatpush1.msra.mxu0 %v1857
        %2048 = vmatprep.subr.mxu0 0.0
        %2049 = vmatpush1.msra.mxu0 %v1856
        %2050 = vmatprep.subr.mxu0 0.0
        %2051 = vmatpush1.msra.mxu0 %v1855
        %2052 = vmatprep.subr.mxu0 0.0
        %2053 = vmatpush1.msra.mxu0 %v1854
        %2054 = vmatprep.subr.mxu0 0.0
        %2055 = vmatpush2.msra.mxu0 0.0
        %2056 = vmatprep.subr.mxu0 0.0
        %2057 = vmatpush2.msra.mxu0 0.0
        %2058 = vmatprep.subr.mxu0 0.0
        %2059 = vmatpush2.msra.mxu0 0.0
        %2060 = vmatprep.subr.mxu0 0.0
        %2061 = vmatpush2.msra.mxu0 0.0
        %2062 = vmatprep.subr.mxu0 0.0
        %2063 = vmatpush2.msra.mxu0 0.0
        %2064 = vmatprep.subr.mxu0 0.0
        %2065 = vmatpush2.msra.mxu0 0.0
        %2066 = vmatprep.subr.mxu0 0.0
        %2067 = vmatpush2.msra.mxu0 0.0
        %2068 = vmatprep.subr.mxu0 0.0
        %2069 = vmatpush2.msra.mxu0 0.0
        %2070 = vmatprep.subr.mxu0 0.0
        %2071 = vmatpush2.msra.mxu0 0.0
        %2072 = vmatprep.subr.mxu0 0.0
        %2073 = vmatpush2.msra.mxu0 0.0
        %2074 = vmatprep.subr.mxu0 0.0
        %2075 = vmatpush2.msra.mxu0 0.0
        %2076 = vmatprep.subr.mxu0 0.0
        %2077 = vmatpush2.msra.mxu0 0.0
        %2078 = vmatprep.subr.mxu0 0.0
        %2079 = vmatpush2.msra.mxu0 0.0
        %2080 = vmatprep.subr.mxu0 0.0
        %2081 = vmatpush2.msra.mxu0 0.0
        %2082 = vmatprep.subr.mxu0 0.0
        %2083 = vmatpush2.msra.mxu0 0.0
        %2084 = vmatprep.subr.mxu0 0.0
        %2085 = vmatpush2.msra.mxu0 0.0
        %2086 = vmatprep.mubr.f32.mxu0 0.0
        %2087 = vmatmul.mubr.f32.gmra.mxu0 %v1950
        %v2088 = vpop.f32.mrf.mxu0
        %v2089 = vadd.f32 0.0, %v2088
        %v2090 = vpop.f32.mrf.mxu0
        %2091 = vdwg.mxu0
        %v2092 = vrcp.pop %v2019
        %v2093 = vmul.f32 %v2089, %v2092
        %s2094 = scalar_lea.vmem %s4, 32
        %v2095 = vld [vmem:[%s2094] sm:$0xff]
        %v2096 = vld [vmem:[%s2094 + $0x8] sm:$0xff]
        %v2097 = vld [vmem:[%s2094 + $0x10] sm:$0xff]
        %v2098 = vld [vmem:[%s2094 + $0x18] sm:$0xff]
        %v2100 = vsel %vm703, %v2093, 0
        %2102 = vmatprep.subr.mxu0 0.0
        %2103 = vmatpush1.msra.mxu0 0.0
        %2104 = vmatprep.subr.mxu0 0.0
        %2105 = vmatpush1.msra.mxu0 0.0
        %2106 = vmatprep.subr.mxu0 0.0
        %2107 = vmatpush1.msra.mxu0 0.0
        %2108 = vmatprep.subr.mxu0 0.0
        %2109 = vmatpush1.msra.mxu0 0.0
        %2110 = vmatprep.subr.mxu0 0.0
        %2111 = vmatpush1.msra.mxu0 0.0
        %2112 = vmatprep.subr.mxu0 0.0
        %2113 = vmatpush1.msra.mxu0 0.0
        %2114 = vmatprep.subr.mxu0 0.0
        %2115 = vmatpush1.msra.mxu0 0.0
        %2116 = vmatprep.subr.mxu0 0.0
        %2117 = vmatpush1.msra.mxu0 0.0
        %2118 = vmatprep.subr.mxu0 0.0
        %2119 = vmatpush1.msra.mxu0 0.0
        %2120 = vmatprep.subr.mxu0 0.0
        %2121 = vmatpush1.msra.mxu0 0.0
        %2122 = vmatprep.subr.mxu0 0.0
        %2123 = vmatpush1.msra.mxu0 0.0
        %2124 = vmatprep.subr.mxu0 0.0
        %2125 = vmatpush1.msra.mxu0 0.0
        %2126 = vmatprep.subr.mxu0 0.0
        %2127 = vmatpush1.msra.mxu0 %v2098
        %2128 = vmatprep.subr.mxu0 0.0
        %2129 = vmatpush1.msra.mxu0 %v2097
        %2130 = vmatprep.subr.mxu0 0.0
        %2131 = vmatpush1.msra.mxu0 %v2096
        %2132 = vmatprep.subr.mxu0 0.0
        %2133 = vmatpush1.msra.mxu0 %v2095
        %2134 = vmatprep.subr.mxu0 0.0
        %2135 = vmatpush2.msra.mxu0 0.0
        %2136 = vmatprep.subr.mxu0 0.0
        %2137 = vmatpush2.msra.mxu0 0.0
        %2138 = vmatprep.subr.mxu0 0.0
        %2139 = vmatpush2.msra.mxu0 0.0
        %2140 = vmatprep.subr.mxu0 0.0
        %2141 = vmatpush2.msra.mxu0 0.0
        %2142 = vmatprep.subr.mxu0 0.0
        %2143 = vmatpush2.msra.mxu0 0.0
        %2144 = vmatprep.subr.mxu0 0.0
        %2145 = vmatpush2.msra.mxu0 0.0
        %2146 = vmatprep.subr.mxu0 0.0
        %2147 = vmatpush2.msra.mxu0 0.0
        %2148 = vmatprep.subr.mxu0 0.0
        %2149 = vmatpush2.msra.mxu0 0.0
        %2150 = vmatprep.subr.mxu0 0.0
        %2151 = vmatpush2.msra.mxu0 0.0
        %2152 = vmatprep.subr.mxu0 0.0
        %2153 = vmatpush2.msra.mxu0 0.0
        %2154 = vmatprep.subr.mxu0 0.0
        %2155 = vmatpush2.msra.mxu0 0.0
        %2156 = vmatprep.subr.mxu0 0.0
        %2157 = vmatpush2.msra.mxu0 0.0
        %2158 = vmatprep.subr.mxu0 0.0
        %2159 = vmatpush2.msra.mxu0 0.0
        %2160 = vmatprep.subr.mxu0 0.0
        %2161 = vmatpush2.msra.mxu0 0.0
        %2162 = vmatprep.subr.mxu0 0.0
        %2163 = vmatpush2.msra.mxu0 0.0
        %2164 = vmatprep.subr.mxu0 0.0
        %2165 = vmatpush2.msra.mxu0 0.0
        %2166 = vmatprep.mubr.f32.mxu0 0.0
        %2167 = vmatmul.mubr.f32.gmra.mxu0 %v2100
        %v2168 = vpop.f32.mrf.mxu0
        %v2169 = vadd.f32 0.0, %v2168
        %v2170 = vpop.f32.mrf.mxu0
        %2171 = vdwg.mxu0
        %v2172 = vadd.f32 %v1556, %v2169
        %s2173 = scalar_lea.vmem [#allocation10], 1
        %v2174 = vld [vmem:[%s2173] sm:$0x1]
        %v2176 = vlaneseq
        %v2177 = vshrl.u32 %v2176, 7
        %v2178 = vsub.s32 0, %v2177
        %v2179 = vrot.slane %v2174, %v2178
        %v2181 = vadd.f32 %v2172, %v2179
        %s2182 = scalar_lea.vmem [#allocation11], 1
        %v2183 = vld [vmem:[%s2182] sm:$0x1]
        %v2184 = vmul.f32 %v2181, %v2181
        %v2185 = vsel %vm703, %v2184, 0.0
        %2186 = vadd.xlane.f32.xlu0 %v2185
        %v2187 = vpop.xlane.xlu0 %2186
        %v2188 = vrsqrt.pop %v2187
        %v2189 = vmul.f32 %v2187, %v2188
        %vm2190 = vcmp.eq.f32.partialorder %v2187, inf
        %v2191 = vsel %vm2190, %v2187, %v2189
        %vm2192 = vcmp.eq.f32.partialorder %v2187, 0.0
        %v2193 = vand.u32 %v2187, 2147483648
        %v2194 = vsel %vm2192, %v2193, %v2191
        %v2195 = vadd.f32 %v2194, 1e-06
        %v2196 = vrcp.pop %v2195
        %v2198 = vlaneseq
        %v2199 = vshrl.u32 %v2198, 7
        %v2200 = vsub.s32 0, %v2199
        %v2201 = vrot.slane %v2183, %v2200
        %v2203 = vmul.f32 %v2201, %v2196
        %v2204 = vmul.f32 %v2181, %v2203
        %s2205 = scalar_lea.vmem %s7, 32
        %v2206 = vld [vmem:[%s2205] sm:$0xff]
        %v2207 = vld [vmem:[%s2205 + $0x8] sm:$0xff]
        %v2208 = vld [vmem:[%s2205 + $0x10] sm:$0xff]
        %v2209 = vld [vmem:[%s2205 + $0x18] sm:$0xff]
        %s2210 = scalar_lea.vmem [#allocation13], 1
        %v2211 = vld [vmem:[%s2210] sm:$0x1]
        %v2213 = vlaneseq
        %v2214 = vshrl.u32 %v2213, 7
        %v2215 = vsub.s32 0, %v2214
        %v2216 = vrot.slane %v2211, %v2215
        %v2219 = vsel %vm703, %v2204, 0
        %2221 = vmatprep.subr.mxu0 0.0
        %2222 = vmatpush1.msra.mxu0 0.0
        %2223 = vmatprep.subr.mxu0 0.0
        %2224 = vmatpush1.msra.mxu0 0.0
        %2225 = vmatprep.subr.mxu0 0.0
        %2226 = vmatpush1.msra.mxu0 0.0
        %2227 = vmatprep.subr.mxu0 0.0
        %2228 = vmatpush1.msra.mxu0 0.0
        %2229 = vmatprep.subr.mxu0 0.0
        %2230 = vmatpush1.msra.mxu0 0.0
        %2231 = vmatprep.subr.mxu0 0.0
        %2232 = vmatpush1.msra.mxu0 0.0
        %2233 = vmatprep.subr.mxu0 0.0
        %2234 = vmatpush1.msra.mxu0 0.0
        %2235 = vmatprep.subr.mxu0 0.0
        %2236 = vmatpush1.msra.mxu0 0.0
        %2237 = vmatprep.subr.mxu0 0.0
        %2238 = vmatpush1.msra.mxu0 0.0
        %2239 = vmatprep.subr.mxu0 0.0
        %2240 = vmatpush1.msra.mxu0 0.0
        %2241 = vmatprep.subr.mxu0 0.0
        %2242 = vmatpush1.msra.mxu0 0.0
        %2243 = vmatprep.subr.mxu0 0.0
        %2244 = vmatpush1.msra.mxu0 0.0
        %2245 = vmatprep.subr.mxu0 0.0
        %2246 = vmatpush1.msra.mxu0 %v2209
        %2247 = vmatprep.subr.mxu0 0.0
        %2248 = vmatpush1.msra.mxu0 %v2208
        %2249 = vmatprep.subr.mxu0 0.0
        %2250 = vmatpush1.msra.mxu0 %v2207
        %2251 = vmatprep.subr.mxu0 0.0
        %2252 = vmatpush1.msra.mxu0 %v2206
        %2253 = vmatprep.subr.mxu0 0.0
        %2254 = vmatpush2.msra.mxu0 0.0
        %2255 = vmatprep.subr.mxu0 0.0
        %2256 = vmatpush2.msra.mxu0 0.0
        %2257 = vmatprep.subr.mxu0 0.0
        %2258 = vmatpush2.msra.mxu0 0.0
        %2259 = vmatprep.subr.mxu0 0.0
        %2260 = vmatpush2.msra.mxu0 0.0
        %2261 = vmatprep.subr.mxu0 0.0
        %2262 = vmatpush2.msra.mxu0 0.0
        %2263 = vmatprep.subr.mxu0 0.0
        %2264 = vmatpush2.msra.mxu0 0.0
        %2265 = vmatprep.subr.mxu0 0.0
        %2266 = vmatpush2.msra.mxu0 0.0
        %2267 = vmatprep.subr.mxu0 0.0
        %2268 = vmatpush2.msra.mxu0 0.0
        %2269 = vmatprep.subr.mxu0 0.0
        %2270 = vmatpush2.msra.mxu0 0.0
        %2271 = vmatprep.subr.mxu0 0.0
        %2272 = vmatpush2.msra.mxu0 0.0
        %2273 = vmatprep.subr.mxu0 0.0
        %2274 = vmatpush2.msra.mxu0 0.0
        %2275 = vmatprep.subr.mxu0 0.0
        %2276 = vmatpush2.msra.mxu0 0.0
        %2277 = vmatprep.subr.mxu0 0.0
        %2278 = vmatpush2.msra.mxu0 0.0
        %2279 = vmatprep.subr.mxu0 0.0
        %2280 = vmatpush2.msra.mxu0 0.0
        %2281 = vmatprep.subr.mxu0 0.0
        %2282 = vmatpush2.msra.mxu0 0.0
        %2283 = vmatprep.subr.mxu0 0.0
        %2284 = vmatpush2.msra.mxu0 0.0
        %2285 = vmatprep.mubr.f32.mxu0 0.0
        %2286 = vmatmul.mubr.f32.gmra.mxu0 %v2219
        %v2287 = vpop.f32.mrf.mxu0
        %v2288 = vadd.f32 %v2216, %v2287
        %v2289 = vpop.f32.mrf.mxu0
        %2290 = vdwg.mxu0
        %v2291 = vxor.u32 %v2288, 2147483648
        %v2292 = vmul.f32 %v2291, 1.442695
        %v2293 = vpow.pop %v2292
        %v2294 = vadd.f32 %v2293, 1.0
        %v2295 = vrcp.pop %v2294
        %v2296 = vmul.f32 1.0, %v2295
        %v2297 = vmul.f32 %v2288, %v2296
        %s2298 = scalar_lea.vmem %s9, 64
        %v2299 = vld [vmem:[%s2298] sm:$0xff]
        %v2300 = vld [vmem:[%s2298 + $0x8] sm:$0xff]
        %v2301 = vld [vmem:[%s2298 + $0x10] sm:$0xff]
        %v2302 = vld [vmem:[%s2298 + $0x18] sm:$0xff]
        %v2303 = vld [vmem:[%s2298 + $0x20] sm:$0xff]
        %v2304 = vld [vmem:[%s2298 + $0x28] sm:$0xff]
        %v2305 = vld [vmem:[%s2298 + $0x30] sm:$0xff]
        %v2306 = vld [vmem:[%s2298 + $0x38] sm:$0xff]
        %v2308 = vsel %vm1474, %v2297, 0
        %2310 = vmatprep.subr.mxu0 0.0
        %2311 = vmatpush1.msra.mxu0 0.0
        %2312 = vmatprep.subr.mxu0 0.0
        %2313 = vmatpush1.msra.mxu0 0.0
        %2314 = vmatprep.subr.mxu0 0.0
        %2315 = vmatpush1.msra.mxu0 0.0
        %2316 = vmatprep.subr.mxu0 0.0
        %2317 = vmatpush1.msra.mxu0 0.0
        %2318 = vmatprep.subr.mxu0 0.0
        %2319 = vmatpush1.msra.mxu0 0.0
        %2320 = vmatprep.subr.mxu0 0.0
        %2321 = vmatpush1.msra.mxu0 0.0
        %2322 = vmatprep.subr.mxu0 0.0
        %2323 = vmatpush1.msra.mxu0 0.0
        %2324 = vmatprep.subr.mxu0 0.0
        %2325 = vmatpush1.msra.mxu0 0.0
        %2326 = vmatprep.subr.mxu0 0.0
        %2327 = vmatpush1.msra.mxu0 %v2306
        %2328 = vmatprep.subr.mxu0 0.0
        %2329 = vmatpush1.msra.mxu0 %v2305
        %2330 = vmatprep.subr.mxu0 0.0
        %2331 = vmatpush1.msra.mxu0 %v2304
        %2332 = vmatprep.subr.mxu0 0.0
        %2333 = vmatpush1.msra.mxu0 %v2303
        %2334 = vmatprep.subr.mxu0 0.0
        %2335 = vmatpush1.msra.mxu0 %v2302
        %2336 = vmatprep.subr.mxu0 0.0
        %2337 = vmatpush1.msra.mxu0 %v2301
        %2338 = vmatprep.subr.mxu0 0.0
        %2339 = vmatpush1.msra.mxu0 %v2300
        %2340 = vmatprep.subr.mxu0 0.0
        %2341 = vmatpush1.msra.mxu0 %v2299
        %2342 = vmatprep.subr.mxu0 0.0
        %2343 = vmatpush2.msra.mxu0 0.0
        %2344 = vmatprep.subr.mxu0 0.0
        %2345 = vmatpush2.msra.mxu0 0.0
        %2346 = vmatprep.subr.mxu0 0.0
        %2347 = vmatpush2.msra.mxu0 0.0
        %2348 = vmatprep.subr.mxu0 0.0
        %2349 = vmatpush2.msra.mxu0 0.0
        %2350 = vmatprep.subr.mxu0 0.0
        %2351 = vmatpush2.msra.mxu0 0.0
        %2352 = vmatprep.subr.mxu0 0.0
        %2353 = vmatpush2.msra.mxu0 0.0
        %2354 = vmatprep.subr.mxu0 0.0
        %2355 = vmatpush2.msra.mxu0 0.0
        %2356 = vmatprep.subr.mxu0 0.0
        %2357 = vmatpush2.msra.mxu0 0.0
        %2358 = vmatprep.subr.mxu0 0.0
        %2359 = vmatpush2.msra.mxu0 0.0
        %2360 = vmatprep.subr.mxu0 0.0
        %2361 = vmatpush2.msra.mxu0 0.0
        %2362 = vmatprep.subr.mxu0 0.0
        %2363 = vmatpush2.msra.mxu0 0.0
        %2364 = vmatprep.subr.mxu0 0.0
        %2365 = vmatpush2.msra.mxu0 0.0
        %2366 = vmatprep.subr.mxu0 0.0
        %2367 = vmatpush2.msra.mxu0 0.0
        %2368 = vmatprep.subr.mxu0 0.0
        %2369 = vmatpush2.msra.mxu0 0.0
        %2370 = vmatprep.subr.mxu0 0.0
        %2371 = vmatpush2.msra.mxu0 0.0
        %2372 = vmatprep.subr.mxu0 0.0
        %2373 = vmatpush2.msra.mxu0 0.0
        %2374 = vmatprep.mubr.f32.mxu0 0.0
        %2375 = vmatmul.mubr.f32.gmra.mxu0 %v2308
        %v2376 = vpop.f32.mrf.mxu0
        %v2377 = vadd.f32 0.0, %v2376
        %v2378 = vpop.f32.mrf.mxu0
        %2379 = vdwg.mxu0
        %v2380 = vadd.f32 %v2181, %v2377
        %s2381 = scalar_lea.vmem [#allocation14], 1
        %v2382 = vld [vmem:[%s2381] sm:$0x1]
        %v2384 = vlaneseq
        %v2385 = vshrl.u32 %v2384, 7
        %v2386 = vsub.s32 0, %v2385
        %v2387 = vrot.slane %v2382, %v2386
        %v2389 = vadd.f32 %v2380, %v2387
        %v2390 = vld [vmem:[%s11] sm:$0x1]
        %v2391 = vmul.f32 %v2389, %v2389
        %v2392 = vsel %vm703, %v2391, 0.0
        %2393 = vadd.xlane.f32.xlu0 %v2392
        %v2394 = vpop.xlane.xlu0 %2393
        %v2395 = vrsqrt.pop %v2394
        %v2396 = vmul.f32 %v2394, %v2395
        %vm2397 = vcmp.eq.f32.partialorder %v2394, inf
        %v2398 = vsel %vm2397, %v2394, %v2396
        %vm2399 = vcmp.eq.f32.partialorder %v2394, 0.0
        %v2400 = vand.u32 %v2394, 2147483648
        %v2401 = vsel %vm2399, %v2400, %v2398
        %v2402 = vadd.f32 %v2401, 1e-06
        %v2403 = vrcp.pop %v2402
        %v2405 = vlaneseq
        %v2406 = vshrl.u32 %v2405, 7
        %v2407 = vsub.s32 0, %v2406
        %v2408 = vrot.slane %v2390, %v2407
        %v2410 = vmul.f32 %v2408, %v2403
        %v2411 = vmul.f32 %v2389, %v2410
        %v2412 = vld [vmem:[%s12] sm:$0xff]
        %v2413 = vld [vmem:[%s12 + $0x8] sm:$0xff]
        %v2414 = vld [vmem:[%s12 + $0x10] sm:$0xff]
        %v2415 = vld [vmem:[%s12 + $0x18] sm:$0xff]
        %v2417 = vsel %vm703, %v2411, 0
        %2419 = vmatprep.subr.mxu0 0.0
        %2420 = vmatpush1.msra.mxu0 0.0
        %2421 = vmatprep.subr.mxu0 0.0
        %2422 = vmatpush1.msra.mxu0 0.0
        %2423 = vmatprep.subr.mxu0 0.0
        %2424 = vmatpush1.msra.mxu0 0.0
        %2425 = vmatprep.subr.mxu0 0.0
        %2426 = vmatpush1.msra.mxu0 0.0
        %2427 = vmatprep.subr.mxu0 0.0
        %2428 = vmatpush1.msra.mxu0 0.0
        %2429 = vmatprep.subr.mxu0 0.0
        %2430 = vmatpush1.msra.mxu0 0.0
        %2431 = vmatprep.subr.mxu0 0.0
        %2432 = vmatpush1.msra.mxu0 0.0
        %2433 = vmatprep.subr.mxu0 0.0
        %2434 = vmatpush1.msra.mxu0 0.0
        %2435 = vmatprep.subr.mxu0 0.0
        %2436 = vmatpush1.msra.mxu0 0.0
        %2437 = vmatprep.subr.mxu0 0.0
        %2438 = vmatpush1.msra.mxu0 0.0
        %2439 = vmatprep.subr.mxu0 0.0
        %2440 = vmatpush1.msra.mxu0 0.0
        %2441 = vmatprep.subr.mxu0 0.0
        %2442 = vmatpush1.msra.mxu0 0.0
        %2443 = vmatprep.subr.mxu0 0.0
        %2444 = vmatpush1.msra.mxu0 %v2415
        %2445 = vmatprep.subr.mxu0 0.0
        %2446 = vmatpush1.msra.mxu0 %v2414
        %2447 = vmatprep.subr.mxu0 0.0
        %2448 = vmatpush1.msra.mxu0 %v2413
        %2449 = vmatprep.subr.mxu0 0.0
        %2450 = vmatpush1.msra.mxu0 %v2412
        %2451 = vmatprep.subr.mxu0 0.0
        %2452 = vmatpush2.msra.mxu0 0.0
        %2453 = vmatprep.subr.mxu0 0.0
        %2454 = vmatpush2.msra.mxu0 0.0
        %2455 = vmatprep.subr.mxu0 0.0
        %2456 = vmatpush2.msra.mxu0 0.0
        %2457 = vmatprep.subr.mxu0 0.0
        %2458 = vmatpush2.msra.mxu0 0.0
        %2459 = vmatprep.subr.mxu0 0.0
        %2460 = vmatpush2.msra.mxu0 0.0
        %2461 = vmatprep.subr.mxu0 0.0
        %2462 = vmatpush2.msra.mxu0 0.0
        %2463 = vmatprep.subr.mxu0 0.0
        %2464 = vmatpush2.msra.mxu0 0.0
        %2465 = vmatprep.subr.mxu0 0.0
        %2466 = vmatpush2.msra.mxu0 0.0
        %2467 = vmatprep.subr.mxu0 0.0
        %2468 = vmatpush2.msra.mxu0 0.0
        %2469 = vmatprep.subr.mxu0 0.0
        %2470 = vmatpush2.msra.mxu0 0.0
        %2471 = vmatprep.subr.mxu0 0.0
        %2472 = vmatpush2.msra.mxu0 0.0
        %2473 = vmatprep.subr.mxu0 0.0
        %2474 = vmatpush2.msra.mxu0 0.0
        %2475 = vmatprep.subr.mxu0 0.0
        %2476 = vmatpush2.msra.mxu0 0.0
        %2477 = vmatprep.subr.mxu0 0.0
        %2478 = vmatpush2.msra.mxu0 0.0
        %2479 = vmatprep.subr.mxu0 0.0
        %2480 = vmatpush2.msra.mxu0 0.0
        %2481 = vmatprep.subr.mxu0 0.0
        %2482 = vmatpush2.msra.mxu0 0.0
        %2483 = vmatprep.mubr.f32.mxu0 0.0
        %2484 = vmatmul.mubr.f32.gmra.mxu0 %v2417
        %v2485 = vpop.f32.mrf.mxu0
        %v2486 = vadd.f32 0.0, %v2485
        %v2487 = vpop.f32.mrf.mxu0
        %2488 = vdwg.mxu0
        %2489 = vst [vmem:[%s692] sm:$0xff] %v2486
        %s2490 = sand.u32 %s430, 1
        %s2491 = scalar_lea.sflag [#allocation4], %s2490
        %s2492 = sand.u32 %s430, 1
        %s2493 = smul.addr %s2492, 8
        %s2494 = scalar_lea.vmem [#allocation16], %s2493
        // Predicated region
        $region125: #{tpu_custom_call.1} parent=91 // pred_check
          %p2495 = pneg %p440
        $region126: #{tpu_custom_call.1} parent=91 // pred_check_branch
          %2497 = sbr.rel (%p2495) target = $region128
        $region127: #{tpu_custom_call.1} parent=91 // pred_region
          %s2499 = ssub.s32 128, 128
          %2500 = vsyncadd %s2491, %s2499
          %s2501 = smul.addr %s39, 128
          %s2502 = scalar_lea.hbm %s18, %s2501
          %s2504 = sshll.u32 %s2494, 4
          %s2505 = int_to_ptr.vmem [resolvable:$true] %s2504
          %2507 = dma.vmem_to_hbm [thread:$0]  %s2505, 128, %s2502, %s2491
        $region128: #{tpu_custom_call.1} parent=91 // pred_fallthru
          _
      $region92: #{tpu_custom_call.1} parent=5 // pred_fallthru
        _
      %p2508 = scmp.le.s32.totalorder 2, %s34
      // Predicated region
      $region129: #{tpu_custom_call.1} parent=5 // pred_check
        %p2509 = pneg %p2508
      $region130: #{tpu_custom_call.1} parent=5 // pred_check_branch
        %2511 = sbr.rel (%p2509) target = $region132
      $region131: #{tpu_custom_call.1} parent=5 // pred_region
        %s2512 = ssub.s32 %s34, 2
        // Predicated region
        $region133: #{tpu_custom_call.1} parent=131 // pred_check
          %p2513 = pneg %p446
        $region134: #{tpu_custom_call.1} parent=131 // pred_check_branch
          %2515 = sbr.rel (%p2513) target = $region136
        $region135: #{tpu_custom_call.1} parent=131 // pred_region
          %s2516 = sand.u32 %s431, 1
          %s2517 = scalar_lea.sflag [#allocation4], %s2516
          %s2518 = sand.u32 %s431, 1
          %s2519 = smul.addr %s2518, 8
          %s2520 = scalar_lea.vmem [#allocation16], %s2519
          %2521 = dma.done %s2517, 128
        $region136: #{tpu_custom_call.1} parent=131 // pred_fallthru
          _
      $region132: #{tpu_custom_call.1} parent=5 // pred_fallthru
        _
    $region6: #{tpu_custom_call.1} parent=1 // loop_footer
      %s38 = sadd.s32 1, %s34
    $region7: #{tpu_custom_call.1} parent=1 // loop_footer_branch
      %33 = sbr.rel target = $region3
    $region8: #{tpu_custom_call.1} parent=1 // loop_exit
      _
    %2522 = vsyncpa [#allocation3], 1
    %s2523 = scalar_lea.sflag [#allocation3], 1
    %2524 = vsyncpa %s2523, 1
    %2525 = vsyncpa [#allocation6], 1
    %2526 = vsyncpa [#allocation9], 1
    %2527 = vsyncpa [#allocation12], 1
    %2528 = vsyncpa [#allocation15], 1
    %2529 = vsyncpa [#allocation4], 1
    %s2530 = scalar_lea.sflag [#allocation4], 1
    %2531 = vsyncpa %s2530, 1

</llo_original>
